<compile_context>
chip_gen: v7x
topology: tpu7x:2x2x1
jax: 0.10.0
libtpu: 0.0.40
codegen_flags: <defaults>
</compile_context>

<pallas_src>
import math

import jax
import jax.numpy as jnp
from jax.experimental import pallas as pl

# Model / problem sizes (small, consistent with the module's forward).
B, S, SM, D, H, DFF = 2, 8, 8, 32, 4, 64
DK = D // H
EPS = 1e-6  # LayerNorm eps (added to std, exactly as in the PyTorch module)


def decoder_layer_kernel(x_ref, mem_ref, tgt_bias_ref, src_bias_ref,
                         w_attn_ref, vecs_ref,
                         ff_w1_ref, ff_b1_ref, ff_w2_ref,
                         o_ref):
    x = x_ref[...]            # (B*S, D)   all batches flattened to rows
    mem = mem_ref[...]        # (B*SM, D)
    vecs = vecs_ref[...]      # (15, D)
    w_attn = w_attn_ref[...]  # (8, D, D) = [saQ*, saK, saV, saO, caQ*, caK, caV, caO]

    ln_a = vecs[0:3]          # (3, D)
    ln_b = vecs[3:6]          # (3, D)
    attn_b = vecs[6:14]       # (8, D)   (Q rows pre-scaled by 1/sqrt(dk))
    ff_b2 = vecs[14:15]       # (1, D)

    def layer_norm(v, idx):
        # Matches PyTorch: mean over last dim, *unbiased* std (ddof=1),
        # eps added to std (not variance).
        mean = jnp.mean(v, axis=-1, keepdims=True)
        var = jnp.sum((v - mean) ** 2, axis=-1, keepdims=True) * (1.0 / (D - 1))
        inv = pl.reciprocal(jnp.sqrt(var) + EPS)          # exact (approx=False)
        return ln_a[idx:idx + 1] * (v - mean) * inv + ln_b[idx:idx + 1]

    def split_heads(t, s):
        # (B*s, D) -> (H*B, s, DK); only free major splits + lane slices +
        # a major-axis concat (no lane-crossing reshape / transpose).
        t3 = t.reshape(B, s, D)
        return jnp.concatenate(
            [t3[:, :, h * DK:(h + 1) * DK] for h in range(H)], axis=0)

    def merge_heads(o, s):
        # (H*B, s, DK) -> (B*s, D) via lane concat of per-head slabs.
        return jnp.concatenate(
            [o[h * B:(h + 1) * B].reshape(B * s, DK) for h in range(H)], axis=-1)

    def mha(q_rows, kv_rows, bias, widx, s_q, s_kv):
        # widx: 0 = self-attn weights, 4 = src-attn weights.
        q = jnp.dot(q_rows, w_attn[widx + 0],
                    preferred_element_type=jnp.float32) + attn_b[widx + 0:widx + 1]
        k = jnp.dot(kv_rows, w_attn[widx + 1],
                    preferred_element_type=jnp.float32) + attn_b[widx + 1:widx + 2]
        v = jnp.dot(kv_rows, w_attn[widx + 2],
                    preferred_element_type=jnp.float32) + attn_b[widx + 2:widx + 3]
        qh = split_heads(q, s_q)     # (H*B, s_q,  DK)
        kh = split_heads(k, s_kv)    # (H*B, s_kv, DK)
        vh = split_heads(v, s_kv)    # (H*B, s_kv, DK)
        # Head-batched score matmul; 1/sqrt(dk) already folded into Wq/bq;
        # mask is an additive bias (0 keep / -1e9 masked).
        scores = jnp.einsum('bqd,bkd->bqk', qh, kh,
                            preferred_element_type=jnp.float32) + bias
        smax = jnp.max(scores, axis=-1, keepdims=True)
        p = jnp.exp(scores - smax)
        p = p * pl.reciprocal(jnp.sum(p, axis=-1, keepdims=True))
        o = jnp.einsum('bqk,bkd->bqd', p, vh,
                       preferred_element_type=jnp.float32)   # (H*B, s_q, DK)
        merged = merge_heads(o, s_q)                          # (B*s_q, D)
        return jnp.dot(merged, w_attn[widx + 3],
                       preferred_element_type=jnp.float32) + attn_b[widx + 3:widx + 4]

    # TODO(synk): dropout in SublayerConnection / attention / FFN is omitted
    # (eval mode -> identity).

    # Sublayer 0: self-attention with pre-norm + residual.
    xn0 = layer_norm(x, 0)
    x1 = x + mha(xn0, xn0, tgt_bias_ref[...], 0, S, S)

    # Sublayer 1: src-attention (queries from norm(x1), keys/values from raw memory).
    xn1 = layer_norm(x1, 1)
    x2 = x1 + mha(xn1, mem, src_bias_ref[...], 4, S, SM)

    # Sublayer 2: position-wise feed-forward (ReLU).
    xn2 = layer_norm(x2, 2)
    hid = jnp.maximum(
        jnp.dot(xn2, ff_w1_ref[...], preferred_element_type=jnp.float32)
        + ff_b1_ref[...], 0.0)
    x3 = x2 + jnp.dot(hid, ff_w2_ref[...],
                      preferred_element_type=jnp.float32) + ff_b2   # (B*S, D)

    # Lane-dense output (B, S*D) = (2, 256): free major split + lane concats.
    x3b = x3.reshape(B, S, D)
    o_ref[...] = jnp.concatenate([x3b[:, s, :] for s in range(S)], axis=-1)


def decoder_layer(x, memory, tgt_mask, src_mask, params):
    """Host wrapper: packs params, precomputes additive mask biases and the
    lane-dense layout, then calls the fused Pallas kernel once (no grid)."""
    ln_a, ln_b, sa_w, sa_b, ca_w, ca_b, ff_w1, ff_b1, ff_w2, ff_b2 = params
    scale = 1.0 / math.sqrt(DK)

    # Weight stack (8, D, D); 1/sqrt(dk) folded into the Q projections.
    w_attn = jnp.concatenate(
        [sa_w[0:1] * scale, sa_w[1:4], ca_w[0:1] * scale, ca_w[1:4]], axis=0)
    # Vector stack (15, D): ln_a(3), ln_b(3), attn biases(8, Q rows scaled), ff_b2(1).
    attn_b = jnp.concatenate(
        [sa_b[0:1] * scale, sa_b[1:4], ca_b[0:1] * scale, ca_b[1:4]], axis=0)
    vecs = jnp.concatenate([ln_a, ln_b, attn_b, ff_b2], axis=0)

    def to_bias(mask, s_q, s_kv):
        # 1/0 keep-mask -> additive bias (0 / -1e9), broadcast over heads with
        # head-major ordering (index = h*B + b) to match the kernel.
        bias = (mask - 1.0) * 1e9
        return jnp.broadcast_to(bias[None], (H, B, s_q, s_kv)).reshape(H * B, s_q, s_kv)

    tgt_bias = to_bias(tgt_mask, S, S)
    src_bias = to_bias(src_mask, S, SM)

    x2d = x.reshape(B * S, D)
    mem2d = memory.reshape(B * SM, D)

    out2d = pl.pallas_call(
        decoder_layer_kernel,
        out_shape=jax.ShapeDtypeStruct((B, S * D), jnp.float32),
    )(x2d, mem2d, tgt_bias, src_bias, w_attn, vecs, ff_w1, ff_b1, ff_w2)
    return out2d.reshape(B, S, D)


def reference(x, memory, tgt_mask, src_mask, params):
    """Pure-JAX mirror of the PyTorch DecoderLayer forward (eval mode)."""
    ln_a, ln_b, sa_w, sa_b, ca_w, ca_b, ff_w1, ff_b1, ff_w2, ff_b2 = params

    def layer_norm(v, idx):
        mean = v.mean(-1, keepdims=True)
        std = jnp.std(v, axis=-1, ddof=1, keepdims=True)
        return ln_a[idx] * (v - mean) / (std + EPS) + ln_b[idx]

    def mha(q_in, kv_in, mask, w, b):
        q = q_in @ w[0] + b[0]
        k = kv_in @ w[1] + b[1]
        v = kv_in @ w[2] + b[2]

        def split(t):
            return t.reshape(t.shape[0], t.shape[1], H, DK).transpose(0, 2, 1, 3)

        qh, kh, vh = split(q), split(k), split(v)
        scores = jnp.einsum('bhqd,bhkd->bhqk', qh, kh) / math.sqrt(DK)
        scores = jnp.where(mask[:, None, :, :] == 0, -1e9, scores)
        p = jax.nn.softmax(scores, axis=-1)
        o = jnp.einsum('bhqk,bhkd->bhqd', p, vh)
        o = o.transpose(0, 2, 1, 3).reshape(q.shape[0], q.shape[1], D)
        return o @ w[3] + b[3]

    xn0 = layer_norm(x, 0)
    x1 = x + mha(xn0, xn0, tgt_mask, sa_w, sa_b)
    xn1 = layer_norm(x1, 1)
    x2 = x1 + mha(xn1, memory, src_mask, ca_w, ca_b)
    xn2 = layer_norm(x2, 2)
    x3 = x2 + jax.nn.relu(xn2 @ ff_w1 + ff_b1[0]) @ ff_w2 + ff_b2[0]
    return x3


def make_params(key):
    ks = jax.random.split(key, 8)
    scale = 0.1
    ln_a = jnp.ones((3, D), jnp.float32)     # LayerNorm a_2 init = ones
    ln_b = jnp.zeros((3, D), jnp.float32)    # LayerNorm b_2 init = zeros
    sa_w = scale * jax.random.normal(ks[0], (4, D, D), jnp.float32)
    sa_b = scale * jax.random.normal(ks[1], (4, D), jnp.float32)
    ca_w = scale * jax.random.normal(ks[2], (4, D, D), jnp.float32)
    ca_b = scale * jax.random.normal(ks[3], (4, D), jnp.float32)
    ff_w1 = scale * jax.random.normal(ks[4], (D, DFF), jnp.float32)
    ff_b1 = scale * jax.random.normal(ks[5], (1, DFF), jnp.float32)
    ff_w2 = scale * jax.random.normal(ks[6], (DFF, D), jnp.float32)
    ff_b2 = scale * jax.random.normal(ks[7], (1, D), jnp.float32)
    return (ln_a, ln_b, sa_w, sa_b, ca_w, ca_b, ff_w1, ff_b1, ff_w2, ff_b2)


if __name__ == "__main__":
    key = jax.random.PRNGKey(0)
    kx, km, kp = jax.random.split(key, 3)
    x = jax.random.normal(kx, (B, S, D), jnp.float32)
    memory = jax.random.normal(km, (B, SM, D), jnp.float32)
    # Causal target mask, all-ones source mask.
    tgt_mask = jnp.broadcast_to(jnp.tril(jnp.ones((S, S), jnp.float32)), (B, S, S))
    src_mask = jnp.ones((B, S, SM), jnp.float32)
    params = make_params(kp)

    out = decoder_layer(x, memory, tgt_mask, src_mask, params)
    out = jax.block_until_ready(out)

    ref = reference(x, memory, tgt_mask, src_mask, params)
    assert out.shape == (B, S, D)
    err = jnp.max(jnp.abs(out - ref))
    assert jnp.allclose(out, ref, rtol=1e-3, atol=1e-3), f"max abs err = {err}"
    print("KERNEL_OK")
</pallas_src>

<mosaic_0001>
module attributes {stable_mosaic.version = 11 : i64} {
  func.func @decoder_layer_kernel(%arg0: memref<16x32xf32, #tpu.memory_space<vmem>>, %arg1: memref<16x32xf32, #tpu.memory_space<vmem>>, %arg2: memref<8x8x8xf32, #tpu.memory_space<vmem>>, %arg3: memref<8x8x8xf32, #tpu.memory_space<vmem>>, %arg4: memref<8x32x32xf32, #tpu.memory_space<vmem>>, %arg5: memref<15x32xf32, #tpu.memory_space<vmem>>, %arg6: memref<32x64xf32, #tpu.memory_space<vmem>>, %arg7: memref<1x64xf32, #tpu.memory_space<vmem>>, %arg8: memref<64x32xf32, #tpu.memory_space<vmem>>, %arg9: memref<2x256xf32, #tpu.memory_space<vmem>>) attributes {dimension_semantics = [], scalar_prefetch = 0 : i64, scratch_operands = 0 : i64, tpu.core_type = #tpu.core_type<tc>} {
    %c0 = arith.constant 0 : index
    %c0_0 = arith.constant 0 : index
    %0 = vector.load %arg0[%c0, %c0_0] : memref<16x32xf32, #tpu.memory_space<vmem>>, vector<16x32xf32>
    %c0_1 = arith.constant 0 : index
    %c0_2 = arith.constant 0 : index
    %1 = vector.load %arg1[%c0_1, %c0_2] : memref<16x32xf32, #tpu.memory_space<vmem>>, vector<16x32xf32>
    %c0_3 = arith.constant 0 : index
    %c0_4 = arith.constant 0 : index
    %2 = vector.load %arg5[%c0_3, %c0_4] : memref<15x32xf32, #tpu.memory_space<vmem>>, vector<15x32xf32>
    %c0_5 = arith.constant 0 : index
    %c0_6 = arith.constant 0 : index
    %c0_7 = arith.constant 0 : index
    %3 = vector.load %arg4[%c0_5, %c0_6, %c0_7] : memref<8x32x32xf32, #tpu.memory_space<vmem>>, vector<8x32x32xf32>
    %4 = vector.extract_strided_slice %2 {offsets = [0, 0], sizes = [3, 32], strides = [1, 1]} : vector<15x32xf32> to vector<3x32xf32>
    %5 = vector.extract_strided_slice %2 {offsets = [3, 0], sizes = [3, 32], strides = [1, 1]} : vector<15x32xf32> to vector<3x32xf32>
    %6 = vector.extract_strided_slice %2 {offsets = [6, 0], sizes = [8, 32], strides = [1, 1]} : vector<15x32xf32> to vector<8x32xf32>
    %7 = vector.extract_strided_slice %2 {offsets = [14, 0], sizes = [1, 32], strides = [1, 1]} : vector<15x32xf32> to vector<1x32xf32>
    %cst = arith.constant dense<0.000000e+00> : vector<16xf32>
    %8 = vector.multi_reduction <add>, %0, %cst [1] : vector<16x32xf32> to vector<16xf32>
    %9 = vector.shape_cast %8 : vector<16xf32> to vector<16x1xf32>
    %cst_8 = arith.constant 3.200000e+01 : f32
    %10 = vector.broadcast %cst_8 : f32 to vector<16x1xf32>
    %11 = arith.divf %9, %10 : vector<16x1xf32>
    %12 = vector.broadcast %11 : vector<16x1xf32> to vector<16x32xf32>
    %13 = arith.subf %0, %12 : vector<16x32xf32>
    %14 = arith.mulf %13, %13 : vector<16x32xf32>
    %cst_9 = arith.constant dense<0.000000e+00> : vector<16xf32>
    %15 = vector.multi_reduction <add>, %14, %cst_9 [1] : vector<16x32xf32> to vector<16xf32>
    %16 = vector.shape_cast %15 : vector<16xf32> to vector<16x1xf32>
    %cst_10 = arith.constant 0.0322580636 : f32
    %17 = vector.broadcast %cst_10 : f32 to vector<16x1xf32>
    %18 = arith.mulf %16, %17 : vector<16x1xf32>
    %19 = math.sqrt %18 : vector<16x1xf32>
    %cst_11 = arith.constant 9.99999997E-7 : f32
    %20 = vector.broadcast %cst_11 : f32 to vector<16x1xf32>
    %21 = arith.addf %19, %20 : vector<16x1xf32>
    %22 = tpu.reciprocal %21 : vector<16x1xf32> -> vector<16x1xf32>
    %23 = vector.extract_strided_slice %4 {offsets = [0, 0], sizes = [1, 32], strides = [1, 1]} : vector<3x32xf32> to vector<1x32xf32>
    %24 = vector.broadcast %11 : vector<16x1xf32> to vector<16x32xf32>
    %25 = arith.subf %0, %24 : vector<16x32xf32>
    %26 = vector.broadcast %23 : vector<1x32xf32> to vector<16x32xf32>
    %27 = arith.mulf %26, %25 : vector<16x32xf32>
    %28 = vector.broadcast %22 : vector<16x1xf32> to vector<16x32xf32>
    %29 = arith.mulf %27, %28 : vector<16x32xf32>
    %30 = vector.extract_strided_slice %5 {offsets = [0, 0], sizes = [1, 32], strides = [1, 1]} : vector<3x32xf32> to vector<1x32xf32>
    %31 = vector.broadcast %30 : vector<1x32xf32> to vector<16x32xf32>
    %32 = arith.addf %29, %31 : vector<16x32xf32>
    %c0_12 = arith.constant 0 : index
    %c0_13 = arith.constant 0 : index
    %c0_14 = arith.constant 0 : index
    %33 = vector.load %arg2[%c0_12, %c0_13, %c0_14] : memref<8x8x8xf32, #tpu.memory_space<vmem>>, vector<8x8x8xf32>
    %34 = vector.extract_strided_slice %3 {offsets = [0, 0, 0], sizes = [1, 32, 32], strides = [1, 1, 1]} : vector<8x32x32xf32> to vector<1x32x32xf32>
    %35 = vector.shape_cast %34 : vector<1x32x32xf32> to vector<32x32xf32>
    %cst_15 = arith.constant dense<0.000000e+00> : vector<16x32xf32>
    %36 = tpu.matmul %32, %35, %cst_15 {dimension_numbers = #tpu.dot_dimension_numbers<[1], [0], [0], [1], [0, 0, 1, 1], [], []>} : vector<16x32xf32>, vector<32x32xf32>, vector<16x32xf32> -> vector<16x32xf32>
    %37 = vector.extract_strided_slice %6 {offsets = [0, 0], sizes = [1, 32], strides = [1, 1]} : vector<8x32xf32> to vector<1x32xf32>
    %38 = vector.broadcast %37 : vector<1x32xf32> to vector<16x32xf32>
    %39 = arith.addf %36, %38 : vector<16x32xf32>
    %40 = vector.extract_strided_slice %3 {offsets = [1, 0, 0], sizes = [1, 32, 32], strides = [1, 1, 1]} : vector<8x32x32xf32> to vector<1x32x32xf32>
    %41 = vector.shape_cast %40 : vector<1x32x32xf32> to vector<32x32xf32>
    %cst_16 = arith.constant dense<0.000000e+00> : vector<16x32xf32>
    %42 = tpu.matmul %32, %41, %cst_16 {dimension_numbers = #tpu.dot_dimension_numbers<[1], [0], [0], [1], [0, 0, 1, 1], [], []>} : vector<16x32xf32>, vector<32x32xf32>, vector<16x32xf32> -> vector<16x32xf32>
    %43 = vector.extract_strided_slice %6 {offsets = [1, 0], sizes = [1, 32], strides = [1, 1]} : vector<8x32xf32> to vector<1x32xf32>
    %44 = vector.broadcast %43 : vector<1x32xf32> to vector<16x32xf32>
    %45 = arith.addf %42, %44 : vector<16x32xf32>
    %46 = vector.extract_strided_slice %3 {offsets = [2, 0, 0], sizes = [1, 32, 32], strides = [1, 1, 1]} : vector<8x32x32xf32> to vector<1x32x32xf32>
    %47 = vector.shape_cast %46 : vector<1x32x32xf32> to vector<32x32xf32>
    %cst_17 = arith.constant dense<0.000000e+00> : vector<16x32xf32>
    %48 = tpu.matmul %32, %47, %cst_17 {dimension_numbers = #tpu.dot_dimension_numbers<[1], [0], [0], [1], [0, 0, 1, 1], [], []>} : vector<16x32xf32>, vector<32x32xf32>, vector<16x32xf32> -> vector<16x32xf32>
    %49 = vector.extract_strided_slice %6 {offsets = [2, 0], sizes = [1, 32], strides = [1, 1]} : vector<8x32xf32> to vector<1x32xf32>
    %50 = vector.broadcast %49 : vector<1x32xf32> to vector<16x32xf32>
    %51 = arith.addf %48, %50 : vector<16x32xf32>
    %52 = vector.shape_cast %39 : vector<16x32xf32> to vector<2x8x32xf32>
    %53 = vector.extract_strided_slice %52 {offsets = [0, 0, 0], sizes = [2, 8, 8], strides = [1, 1, 1]} : vector<2x8x32xf32> to vector<2x8x8xf32>
    %54 = vector.extract_strided_slice %52 {offsets = [0, 0, 8], sizes = [2, 8, 8], strides = [1, 1, 1]} : vector<2x8x32xf32> to vector<2x8x8xf32>
    %55 = vector.extract_strided_slice %52 {offsets = [0, 0, 16], sizes = [2, 8, 8], strides = [1, 1, 1]} : vector<2x8x32xf32> to vector<2x8x8xf32>
    %56 = vector.extract_strided_slice %52 {offsets = [0, 0, 24], sizes = [2, 8, 8], strides = [1, 1, 1]} : vector<2x8x32xf32> to vector<2x8x8xf32>
    %57 = tpu.concatenate %53, %54, %55, %56 in 0 : vector<2x8x8xf32>, vector<2x8x8xf32>, vector<2x8x8xf32>, vector<2x8x8xf32> -> vector<8x8x8xf32>
    %58 = vector.shape_cast %45 : vector<16x32xf32> to vector<2x8x32xf32>
    %59 = vector.extract_strided_slice %58 {offsets = [0, 0, 0], sizes = [2, 8, 8], strides = [1, 1, 1]} : vector<2x8x32xf32> to vector<2x8x8xf32>
    %60 = vector.extract_strided_slice %58 {offsets = [0, 0, 8], sizes = [2, 8, 8], strides = [1, 1, 1]} : vector<2x8x32xf32> to vector<2x8x8xf32>
    %61 = vector.extract_strided_slice %58 {offsets = [0, 0, 16], sizes = [2, 8, 8], strides = [1, 1, 1]} : vector<2x8x32xf32> to vector<2x8x8xf32>
    %62 = vector.extract_strided_slice %58 {offsets = [0, 0, 24], sizes = [2, 8, 8], strides = [1, 1, 1]} : vector<2x8x32xf32> to vector<2x8x8xf32>
    %63 = tpu.concatenate %59, %60, %61, %62 in 0 : vector<2x8x8xf32>, vector<2x8x8xf32>, vector<2x8x8xf32>, vector<2x8x8xf32> -> vector<8x8x8xf32>
    %64 = vector.shape_cast %51 : vector<16x32xf32> to vector<2x8x32xf32>
    %65 = vector.extract_strided_slice %64 {offsets = [0, 0, 0], sizes = [2, 8, 8], strides = [1, 1, 1]} : vector<2x8x32xf32> to vector<2x8x8xf32>
    %66 = vector.extract_strided_slice %64 {offsets = [0, 0, 8], sizes = [2, 8, 8], strides = [1, 1, 1]} : vector<2x8x32xf32> to vector<2x8x8xf32>
    %67 = vector.extract_strided_slice %64 {offsets = [0, 0, 16], sizes = [2, 8, 8], strides = [1, 1, 1]} : vector<2x8x32xf32> to vector<2x8x8xf32>
    %68 = vector.extract_strided_slice %64 {offsets = [0, 0, 24], sizes = [2, 8, 8], strides = [1, 1, 1]} : vector<2x8x32xf32> to vector<2x8x8xf32>
    %69 = tpu.concatenate %65, %66, %67, %68 in 0 : vector<2x8x8xf32>, vector<2x8x8xf32>, vector<2x8x8xf32>, vector<2x8x8xf32> -> vector<8x8x8xf32>
    "tpu.trace_start"() <{level = 10 : i32, message = "bqd,bkd->bqk"}> : () -> ()
    %cst_18 = arith.constant dense<0.000000e+00> : vector<8x8x8xf32>
    %70 = tpu.matmul %57, %63, %cst_18 {dimension_numbers = #tpu.dot_dimension_numbers<[2], [2], [1], [1], [0, 0, 0, 1, 1, 1], [0], [0]>} : vector<8x8x8xf32>, vector<8x8x8xf32>, vector<8x8x8xf32> -> vector<8x8x8xf32>
    "tpu.trace_stop"() : () -> ()
    %71 = arith.addf %70, %33 : vector<8x8x8xf32>
    %cst_19 = arith.constant dense<0xFF800000> : vector<8x8xf32>
    %72 = vector.multi_reduction <maximumf>, %71, %cst_19 [2] : vector<8x8x8xf32> to vector<8x8xf32>
    %73 = vector.shape_cast %72 : vector<8x8xf32> to vector<8x8x1xf32>
    %74 = vector.broadcast %73 : vector<8x8x1xf32> to vector<8x8x8xf32>
    %75 = arith.subf %71, %74 : vector<8x8x8xf32>
    %76 = math.exp %75 : vector<8x8x8xf32>
    %cst_20 = arith.constant dense<0.000000e+00> : vector<8x8xf32>
    %77 = vector.multi_reduction <add>, %76, %cst_20 [2] : vector<8x8x8xf32> to vector<8x8xf32>
    %78 = vector.shape_cast %77 : vector<8x8xf32> to vector<8x8x1xf32>
    %79 = tpu.reciprocal %78 : vector<8x8x1xf32> -> vector<8x8x1xf32>
    %80 = vector.broadcast %79 : vector<8x8x1xf32> to vector<8x8x8xf32>
    %81 = arith.mulf %76, %80 : vector<8x8x8xf32>
    "tpu.trace_start"() <{level = 10 : i32, message = "bqk,bkd->bqd"}> : () -> ()
    %cst_21 = arith.constant dense<0.000000e+00> : vector<8x8x8xf32>
    %82 = tpu.matmul %81, %69, %cst_21 {dimension_numbers = #tpu.dot_dimension_numbers<[2], [1], [1], [2], [0, 0, 0, 1, 1, 2], [0], [0]>} : vector<8x8x8xf32>, vector<8x8x8xf32>, vector<8x8x8xf32> -> vector<8x8x8xf32>
    "tpu.trace_stop"() : () -> ()
    %83 = vector.extract_strided_slice %82 {offsets = [0, 0, 0], sizes = [2, 8, 8], strides = [1, 1, 1]} : vector<8x8x8xf32> to vector<2x8x8xf32>
    %84 = vector.shape_cast %83 : vector<2x8x8xf32> to vector<16x8xf32>
    %85 = vector.extract_strided_slice %82 {offsets = [2, 0, 0], sizes = [2, 8, 8], strides = [1, 1, 1]} : vector<8x8x8xf32> to vector<2x8x8xf32>
    %86 = vector.shape_cast %85 : vector<2x8x8xf32> to vector<16x8xf32>
    %87 = vector.extract_strided_slice %82 {offsets = [4, 0, 0], sizes = [2, 8, 8], strides = [1, 1, 1]} : vector<8x8x8xf32> to vector<2x8x8xf32>
    %88 = vector.shape_cast %87 : vector<2x8x8xf32> to vector<16x8xf32>
    %89 = vector.extract_strided_slice %82 {offsets = [6, 0, 0], sizes = [2, 8, 8], strides = [1, 1, 1]} : vector<8x8x8xf32> to vector<2x8x8xf32>
    %90 = vector.shape_cast %89 : vector<2x8x8xf32> to vector<16x8xf32>
    %91 = tpu.concatenate %84, %86, %88, %90 in 1 : vector<16x8xf32>, vector<16x8xf32>, vector<16x8xf32>, vector<16x8xf32> -> vector<16x32xf32>
    %92 = vector.extract_strided_slice %3 {offsets = [3, 0, 0], sizes = [1, 32, 32], strides = [1, 1, 1]} : vector<8x32x32xf32> to vector<1x32x32xf32>
    %93 = vector.shape_cast %92 : vector<1x32x32xf32> to vector<32x32xf32>
    %cst_22 = arith.constant dense<0.000000e+00> : vector<16x32xf32>
    %94 = tpu.matmul %91, %93, %cst_22 {dimension_numbers = #tpu.dot_dimension_numbers<[1], [0], [0], [1], [0, 0, 1, 1], [], []>} : vector<16x32xf32>, vector<32x32xf32>, vector<16x32xf32> -> vector<16x32xf32>
    %95 = vector.extract_strided_slice %6 {offsets = [3, 0], sizes = [1, 32], strides = [1, 1]} : vector<8x32xf32> to vector<1x32xf32>
    %96 = vector.broadcast %95 : vector<1x32xf32> to vector<16x32xf32>
    %97 = arith.addf %94, %96 : vector<16x32xf32>
    %98 = arith.addf %0, %97 : vector<16x32xf32>
    %cst_23 = arith.constant dense<0.000000e+00> : vector<16xf32>
    %99 = vector.multi_reduction <add>, %98, %cst_23 [1] : vector<16x32xf32> to vector<16xf32>
    %100 = vector.shape_cast %99 : vector<16xf32> to vector<16x1xf32>
    %cst_24 = arith.constant 3.200000e+01 : f32
    %101 = vector.broadcast %cst_24 : f32 to vector<16x1xf32>
    %102 = arith.divf %100, %101 : vector<16x1xf32>
    %103 = vector.broadcast %102 : vector<16x1xf32> to vector<16x32xf32>
    %104 = arith.subf %98, %103 : vector<16x32xf32>
    %105 = arith.mulf %104, %104 : vector<16x32xf32>
    %cst_25 = arith.constant dense<0.000000e+00> : vector<16xf32>
    %106 = vector.multi_reduction <add>, %105, %cst_25 [1] : vector<16x32xf32> to vector<16xf32>
    %107 = vector.shape_cast %106 : vector<16xf32> to vector<16x1xf32>
    %cst_26 = arith.constant 0.0322580636 : f32
    %108 = vector.broadcast %cst_26 : f32 to vector<16x1xf32>
    %109 = arith.mulf %107, %108 : vector<16x1xf32>
    %110 = math.sqrt %109 : vector<16x1xf32>
    %cst_27 = arith.constant 9.99999997E-7 : f32
    %111 = vector.broadcast %cst_27 : f32 to vector<16x1xf32>
    %112 = arith.addf %110, %111 : vector<16x1xf32>
    %113 = tpu.reciprocal %112 : vector<16x1xf32> -> vector<16x1xf32>
    %114 = vector.extract_strided_slice %4 {offsets = [1, 0], sizes = [1, 32], strides = [1, 1]} : vector<3x32xf32> to vector<1x32xf32>
    %115 = vector.broadcast %102 : vector<16x1xf32> to vector<16x32xf32>
    %116 = arith.subf %98, %115 : vector<16x32xf32>
    %117 = vector.broadcast %114 : vector<1x32xf32> to vector<16x32xf32>
    %118 = arith.mulf %117, %116 : vector<16x32xf32>
    %119 = vector.broadcast %113 : vector<16x1xf32> to vector<16x32xf32>
    %120 = arith.mulf %118, %119 : vector<16x32xf32>
    %121 = vector.extract_strided_slice %5 {offsets = [1, 0], sizes = [1, 32], strides = [1, 1]} : vector<3x32xf32> to vector<1x32xf32>
    %122 = vector.broadcast %121 : vector<1x32xf32> to vector<16x32xf32>
    %123 = arith.addf %120, %122 : vector<16x32xf32>
    %c0_28 = arith.constant 0 : index
    %c0_29 = arith.constant 0 : index
    %c0_30 = arith.constant 0 : index
    %124 = vector.load %arg3[%c0_28, %c0_29, %c0_30] : memref<8x8x8xf32, #tpu.memory_space<vmem>>, vector<8x8x8xf32>
    %125 = vector.extract_strided_slice %3 {offsets = [4, 0, 0], sizes = [1, 32, 32], strides = [1, 1, 1]} : vector<8x32x32xf32> to vector<1x32x32xf32>
    %126 = vector.shape_cast %125 : vector<1x32x32xf32> to vector<32x32xf32>
    %cst_31 = arith.constant dense<0.000000e+00> : vector<16x32xf32>
    %127 = tpu.matmul %123, %126, %cst_31 {dimension_numbers = #tpu.dot_dimension_numbers<[1], [0], [0], [1], [0, 0, 1, 1], [], []>} : vector<16x32xf32>, vector<32x32xf32>, vector<16x32xf32> -> vector<16x32xf32>
    %128 = vector.extract_strided_slice %6 {offsets = [4, 0], sizes = [1, 32], strides = [1, 1]} : vector<8x32xf32> to vector<1x32xf32>
    %129 = vector.broadcast %128 : vector<1x32xf32> to vector<16x32xf32>
    %130 = arith.addf %127, %129 : vector<16x32xf32>
    %131 = vector.extract_strided_slice %3 {offsets = [5, 0, 0], sizes = [1, 32, 32], strides = [1, 1, 1]} : vector<8x32x32xf32> to vector<1x32x32xf32>
    %132 = vector.shape_cast %131 : vector<1x32x32xf32> to vector<32x32xf32>
    %cst_32 = arith.constant dense<0.000000e+00> : vector<16x32xf32>
    %133 = tpu.matmul %1, %132, %cst_32 {dimension_numbers = #tpu.dot_dimension_numbers<[1], [0], [0], [1], [0, 0, 1, 1], [], []>} : vector<16x32xf32>, vector<32x32xf32>, vector<16x32xf32> -> vector<16x32xf32>
    %134 = vector.extract_strided_slice %6 {offsets = [5, 0], sizes = [1, 32], strides = [1, 1]} : vector<8x32xf32> to vector<1x32xf32>
    %135 = vector.broadcast %134 : vector<1x32xf32> to vector<16x32xf32>
    %136 = arith.addf %133, %135 : vector<16x32xf32>
    %137 = vector.extract_strided_slice %3 {offsets = [6, 0, 0], sizes = [1, 32, 32], strides = [1, 1, 1]} : vector<8x32x32xf32> to vector<1x32x32xf32>
    %138 = vector.shape_cast %137 : vector<1x32x32xf32> to vector<32x32xf32>
    %cst_33 = arith.constant dense<0.000000e+00> : vector<16x32xf32>
    %139 = tpu.matmul %1, %138, %cst_33 {dimension_numbers = #tpu.dot_dimension_numbers<[1], [0], [0], [1], [0, 0, 1, 1], [], []>} : vector<16x32xf32>, vector<32x32xf32>, vector<16x32xf32> -> vector<16x32xf32>
    %140 = vector.extract_strided_slice %6 {offsets = [6, 0], sizes = [1, 32], strides = [1, 1]} : vector<8x32xf32> to vector<1x32xf32>
    %141 = vector.broadcast %140 : vector<1x32xf32> to vector<16x32xf32>
    %142 = arith.addf %139, %141 : vector<16x32xf32>
    %143 = vector.shape_cast %130 : vector<16x32xf32> to vector<2x8x32xf32>
    %144 = vector.extract_strided_slice %143 {offsets = [0, 0, 0], sizes = [2, 8, 8], strides = [1, 1, 1]} : vector<2x8x32xf32> to vector<2x8x8xf32>
    %145 = vector.extract_strided_slice %143 {offsets = [0, 0, 8], sizes = [2, 8, 8], strides = [1, 1, 1]} : vector<2x8x32xf32> to vector<2x8x8xf32>
    %146 = vector.extract_strided_slice %143 {offsets = [0, 0, 16], sizes = [2, 8, 8], strides = [1, 1, 1]} : vector<2x8x32xf32> to vector<2x8x8xf32>
    %147 = vector.extract_strided_slice %143 {offsets = [0, 0, 24], sizes = [2, 8, 8], strides = [1, 1, 1]} : vector<2x8x32xf32> to vector<2x8x8xf32>
    %148 = tpu.concatenate %144, %145, %146, %147 in 0 : vector<2x8x8xf32>, vector<2x8x8xf32>, vector<2x8x8xf32>, vector<2x8x8xf32> -> vector<8x8x8xf32>
    %149 = vector.shape_cast %136 : vector<16x32xf32> to vector<2x8x32xf32>
    %150 = vector.extract_strided_slice %149 {offsets = [0, 0, 0], sizes = [2, 8, 8], strides = [1, 1, 1]} : vector<2x8x32xf32> to vector<2x8x8xf32>
    %151 = vector.extract_strided_slice %149 {offsets = [0, 0, 8], sizes = [2, 8, 8], strides = [1, 1, 1]} : vector<2x8x32xf32> to vector<2x8x8xf32>
    %152 = vector.extract_strided_slice %149 {offsets = [0, 0, 16], sizes = [2, 8, 8], strides = [1, 1, 1]} : vector<2x8x32xf32> to vector<2x8x8xf32>
    %153 = vector.extract_strided_slice %149 {offsets = [0, 0, 24], sizes = [2, 8, 8], strides = [1, 1, 1]} : vector<2x8x32xf32> to vector<2x8x8xf32>
    %154 = tpu.concatenate %150, %151, %152, %153 in 0 : vector<2x8x8xf32>, vector<2x8x8xf32>, vector<2x8x8xf32>, vector<2x8x8xf32> -> vector<8x8x8xf32>
    %155 = vector.shape_cast %142 : vector<16x32xf32> to vector<2x8x32xf32>
    %156 = vector.extract_strided_slice %155 {offsets = [0, 0, 0], sizes = [2, 8, 8], strides = [1, 1, 1]} : vector<2x8x32xf32> to vector<2x8x8xf32>
    %157 = vector.extract_strided_slice %155 {offsets = [0, 0, 8], sizes = [2, 8, 8], strides = [1, 1, 1]} : vector<2x8x32xf32> to vector<2x8x8xf32>
    %158 = vector.extract_strided_slice %155 {offsets = [0, 0, 16], sizes = [2, 8, 8], strides = [1, 1, 1]} : vector<2x8x32xf32> to vector<2x8x8xf32>
    %159 = vector.extract_strided_slice %155 {offsets = [0, 0, 24], sizes = [2, 8, 8], strides = [1, 1, 1]} : vector<2x8x32xf32> to vector<2x8x8xf32>
    %160 = tpu.concatenate %156, %157, %158, %159 in 0 : vector<2x8x8xf32>, vector<2x8x8xf32>, vector<2x8x8xf32>, vector<2x8x8xf32> -> vector<8x8x8xf32>
    "tpu.trace_start"() <{level = 10 : i32, message = "bqd,bkd->bqk"}> : () -> ()
    %cst_34 = arith.constant dense<0.000000e+00> : vector<8x8x8xf32>
    %161 = tpu.matmul %148, %154, %cst_34 {dimension_numbers = #tpu.dot_dimension_numbers<[2], [2], [1], [1], [0, 0, 0, 1, 1, 1], [0], [0]>} : vector<8x8x8xf32>, vector<8x8x8xf32>, vector<8x8x8xf32> -> vector<8x8x8xf32>
    "tpu.trace_stop"() : () -> ()
    %162 = arith.addf %161, %124 : vector<8x8x8xf32>
    %cst_35 = arith.constant dense<0xFF800000> : vector<8x8xf32>
    %163 = vector.multi_reduction <maximumf>, %162, %cst_35 [2] : vector<8x8x8xf32> to vector<8x8xf32>
    %164 = vector.shape_cast %163 : vector<8x8xf32> to vector<8x8x1xf32>
    %165 = vector.broadcast %164 : vector<8x8x1xf32> to vector<8x8x8xf32>
    %166 = arith.subf %162, %165 : vector<8x8x8xf32>
    %167 = math.exp %166 : vector<8x8x8xf32>
    %cst_36 = arith.constant dense<0.000000e+00> : vector<8x8xf32>
    %168 = vector.multi_reduction <add>, %167, %cst_36 [2] : vector<8x8x8xf32> to vector<8x8xf32>
    %169 = vector.shape_cast %168 : vector<8x8xf32> to vector<8x8x1xf32>
    %170 = tpu.reciprocal %169 : vector<8x8x1xf32> -> vector<8x8x1xf32>
    %171 = vector.broadcast %170 : vector<8x8x1xf32> to vector<8x8x8xf32>
    %172 = arith.mulf %167, %171 : vector<8x8x8xf32>
    "tpu.trace_start"() <{level = 10 : i32, message = "bqk,bkd->bqd"}> : () -> ()
    %cst_37 = arith.constant dense<0.000000e+00> : vector<8x8x8xf32>
    %173 = tpu.matmul %172, %160, %cst_37 {dimension_numbers = #tpu.dot_dimension_numbers<[2], [1], [1], [2], [0, 0, 0, 1, 1, 2], [0], [0]>} : vector<8x8x8xf32>, vector<8x8x8xf32>, vector<8x8x8xf32> -> vector<8x8x8xf32>
    "tpu.trace_stop"() : () -> ()
    %174 = vector.extract_strided_slice %173 {offsets = [0, 0, 0], sizes = [2, 8, 8], strides = [1, 1, 1]} : vector<8x8x8xf32> to vector<2x8x8xf32>
    %175 = vector.shape_cast %174 : vector<2x8x8xf32> to vector<16x8xf32>
    %176 = vector.extract_strided_slice %173 {offsets = [2, 0, 0], sizes = [2, 8, 8], strides = [1, 1, 1]} : vector<8x8x8xf32> to vector<2x8x8xf32>
    %177 = vector.shape_cast %176 : vector<2x8x8xf32> to vector<16x8xf32>
    %178 = vector.extract_strided_slice %173 {offsets = [4, 0, 0], sizes = [2, 8, 8], strides = [1, 1, 1]} : vector<8x8x8xf32> to vector<2x8x8xf32>
    %179 = vector.shape_cast %178 : vector<2x8x8xf32> to vector<16x8xf32>
    %180 = vector.extract_strided_slice %173 {offsets = [6, 0, 0], sizes = [2, 8, 8], strides = [1, 1, 1]} : vector<8x8x8xf32> to vector<2x8x8xf32>
    %181 = vector.shape_cast %180 : vector<2x8x8xf32> to vector<16x8xf32>
    %182 = tpu.concatenate %175, %177, %179, %181 in 1 : vector<16x8xf32>, vector<16x8xf32>, vector<16x8xf32>, vector<16x8xf32> -> vector<16x32xf32>
    %183 = vector.extract_strided_slice %3 {offsets = [7, 0, 0], sizes = [1, 32, 32], strides = [1, 1, 1]} : vector<8x32x32xf32> to vector<1x32x32xf32>
    %184 = vector.shape_cast %183 : vector<1x32x32xf32> to vector<32x32xf32>
    %cst_38 = arith.constant dense<0.000000e+00> : vector<16x32xf32>
    %185 = tpu.matmul %182, %184, %cst_38 {dimension_numbers = #tpu.dot_dimension_numbers<[1], [0], [0], [1], [0, 0, 1, 1], [], []>} : vector<16x32xf32>, vector<32x32xf32>, vector<16x32xf32> -> vector<16x32xf32>
    %186 = vector.extract_strided_slice %6 {offsets = [7, 0], sizes = [1, 32], strides = [1, 1]} : vector<8x32xf32> to vector<1x32xf32>
    %187 = vector.broadcast %186 : vector<1x32xf32> to vector<16x32xf32>
    %188 = arith.addf %185, %187 : vector<16x32xf32>
    %189 = arith.addf %98, %188 : vector<16x32xf32>
    %cst_39 = arith.constant dense<0.000000e+00> : vector<16xf32>
    %190 = vector.multi_reduction <add>, %189, %cst_39 [1] : vector<16x32xf32> to vector<16xf32>
    %191 = vector.shape_cast %190 : vector<16xf32> to vector<16x1xf32>
    %cst_40 = arith.constant 3.200000e+01 : f32
    %192 = vector.broadcast %cst_40 : f32 to vector<16x1xf32>
    %193 = arith.divf %191, %192 : vector<16x1xf32>
    %194 = vector.broadcast %193 : vector<16x1xf32> to vector<16x32xf32>
    %195 = arith.subf %189, %194 : vector<16x32xf32>
    %196 = arith.mulf %195, %195 : vector<16x32xf32>
    %cst_41 = arith.constant dense<0.000000e+00> : vector<16xf32>
    %197 = vector.multi_reduction <add>, %196, %cst_41 [1] : vector<16x32xf32> to vector<16xf32>
    %198 = vector.shape_cast %197 : vector<16xf32> to vector<16x1xf32>
    %cst_42 = arith.constant 0.0322580636 : f32
    %199 = vector.broadcast %cst_42 : f32 to vector<16x1xf32>
    %200 = arith.mulf %198, %199 : vector<16x1xf32>
    %201 = math.sqrt %200 : vector<16x1xf32>
    %cst_43 = arith.constant 9.99999997E-7 : f32
    %202 = vector.broadcast %cst_43 : f32 to vector<16x1xf32>
    %203 = arith.addf %201, %202 : vector<16x1xf32>
    %204 = tpu.reciprocal %203 : vector<16x1xf32> -> vector<16x1xf32>
    %205 = vector.extract_strided_slice %4 {offsets = [2, 0], sizes = [1, 32], strides = [1, 1]} : vector<3x32xf32> to vector<1x32xf32>
    %206 = vector.broadcast %193 : vector<16x1xf32> to vector<16x32xf32>
    %207 = arith.subf %189, %206 : vector<16x32xf32>
    %208 = vector.broadcast %205 : vector<1x32xf32> to vector<16x32xf32>
    %209 = arith.mulf %208, %207 : vector<16x32xf32>
    %210 = vector.broadcast %204 : vector<16x1xf32> to vector<16x32xf32>
    %211 = arith.mulf %209, %210 : vector<16x32xf32>
    %212 = vector.extract_strided_slice %5 {offsets = [2, 0], sizes = [1, 32], strides = [1, 1]} : vector<3x32xf32> to vector<1x32xf32>
    %213 = vector.broadcast %212 : vector<1x32xf32> to vector<16x32xf32>
    %214 = arith.addf %211, %213 : vector<16x32xf32>
    %c0_44 = arith.constant 0 : index
    %c0_45 = arith.constant 0 : index
    %215 = vector.load %arg6[%c0_44, %c0_45] : memref<32x64xf32, #tpu.memory_space<vmem>>, vector<32x64xf32>
    %cst_46 = arith.constant dense<0.000000e+00> : vector<16x64xf32>
    %216 = tpu.matmul %214, %215, %cst_46 {dimension_numbers = #tpu.dot_dimension_numbers<[1], [0], [0], [1], [0, 0, 1, 1], [], []>} : vector<16x32xf32>, vector<32x64xf32>, vector<16x64xf32> -> vector<16x64xf32>
    %c0_47 = arith.constant 0 : index
    %c0_48 = arith.constant 0 : index
    %217 = vector.load %arg7[%c0_47, %c0_48] : memref<1x64xf32, #tpu.memory_space<vmem>>, vector<1x64xf32>
    %218 = vector.broadcast %217 : vector<1x64xf32> to vector<16x64xf32>
    %219 = arith.addf %216, %218 : vector<16x64xf32>
    %cst_49 = arith.constant 0.000000e+00 : f32
    %220 = vector.broadcast %cst_49 : f32 to vector<16x64xf32>
    %221 = arith.maximumf %219, %220 : vector<16x64xf32>
    %c0_50 = arith.constant 0 : index
    %c0_51 = arith.constant 0 : index
    %222 = vector.load %arg8[%c0_50, %c0_51] : memref<64x32xf32, #tpu.memory_space<vmem>>, vector<64x32xf32>
    %cst_52 = arith.constant dense<0.000000e+00> : vector<16x32xf32>
    %223 = tpu.matmul %221, %222, %cst_52 {dimension_numbers = #tpu.dot_dimension_numbers<[1], [0], [0], [1], [0, 0, 1, 1], [], []>} : vector<16x64xf32>, vector<64x32xf32>, vector<16x32xf32> -> vector<16x32xf32>
    %224 = arith.addf %189, %223 : vector<16x32xf32>
    %225 = vector.broadcast %7 : vector<1x32xf32> to vector<16x32xf32>
    %226 = arith.addf %224, %225 : vector<16x32xf32>
    %227 = vector.shape_cast %226 : vector<16x32xf32> to vector<2x8x32xf32>
    %228 = vector.extract_strided_slice %227 {offsets = [0, 0, 0], sizes = [2, 1, 32], strides = [1, 1, 1]} : vector<2x8x32xf32> to vector<2x1x32xf32>
    %229 = vector.shape_cast %228 : vector<2x1x32xf32> to vector<2x32xf32>
    %230 = vector.extract_strided_slice %227 {offsets = [0, 1, 0], sizes = [2, 1, 32], strides = [1, 1, 1]} : vector<2x8x32xf32> to vector<2x1x32xf32>
    %231 = vector.shape_cast %230 : vector<2x1x32xf32> to vector<2x32xf32>
    %232 = vector.extract_strided_slice %227 {offsets = [0, 2, 0], sizes = [2, 1, 32], strides = [1, 1, 1]} : vector<2x8x32xf32> to vector<2x1x32xf32>
    %233 = vector.shape_cast %232 : vector<2x1x32xf32> to vector<2x32xf32>
    %234 = vector.extract_strided_slice %227 {offsets = [0, 3, 0], sizes = [2, 1, 32], strides = [1, 1, 1]} : vector<2x8x32xf32> to vector<2x1x32xf32>
    %235 = vector.shape_cast %234 : vector<2x1x32xf32> to vector<2x32xf32>
    %236 = vector.extract_strided_slice %227 {offsets = [0, 4, 0], sizes = [2, 1, 32], strides = [1, 1, 1]} : vector<2x8x32xf32> to vector<2x1x32xf32>
    %237 = vector.shape_cast %236 : vector<2x1x32xf32> to vector<2x32xf32>
    %238 = vector.extract_strided_slice %227 {offsets = [0, 5, 0], sizes = [2, 1, 32], strides = [1, 1, 1]} : vector<2x8x32xf32> to vector<2x1x32xf32>
    %239 = vector.shape_cast %238 : vector<2x1x32xf32> to vector<2x32xf32>
    %240 = vector.extract_strided_slice %227 {offsets = [0, 6, 0], sizes = [2, 1, 32], strides = [1, 1, 1]} : vector<2x8x32xf32> to vector<2x1x32xf32>
    %241 = vector.shape_cast %240 : vector<2x1x32xf32> to vector<2x32xf32>
    %242 = vector.extract_strided_slice %227 {offsets = [0, 7, 0], sizes = [2, 1, 32], strides = [1, 1, 1]} : vector<2x8x32xf32> to vector<2x1x32xf32>
    %243 = vector.shape_cast %242 : vector<2x1x32xf32> to vector<2x32xf32>
    %244 = tpu.concatenate %229, %231, %233, %235, %237, %239, %241, %243 in 1 : vector<2x32xf32>, vector<2x32xf32>, vector<2x32xf32>, vector<2x32xf32>, vector<2x32xf32>, vector<2x32xf32>, vector<2x32xf32>, vector<2x32xf32> -> vector<2x256xf32>
    %c0_53 = arith.constant 0 : index
    %c0_54 = arith.constant 0 : index
    %245 = vector.load %arg9[%c0_53, %c0_54] : memref<2x256xf32, #tpu.memory_space<vmem>>, vector<2x256xf32>
    tpu.vector_store %arg9[%c0_53, %c0_54], %244 {strides = array<i32>} : memref<2x256xf32, #tpu.memory_space<vmem>>, vector<2x256xf32>,
    return
  }
}

</mosaic_0001>

<llo_original>
// kernel: tpu_custom_call.1
$region0: #{tpu_custom_call.1}
  #allocation0 [shape = 'u32[]', space=smem, size = 0x4, offset = 0x4, fixed_abs, tag = 'smem constant byte address 0x4 - core index']
  #allocation1 [shape = 'u32[144,128]{1,0:T(1,128)}', space=vmem, size = 0x12000, scoped, tag = 'internal scratch']
  %s0 = inlined_call_operand.hbm [shape: f32[16,32], index: 0, kind: input, shape index: {}]
  %s1 = inlined_call_operand.hbm [shape: f32[16,32], index: 1, kind: input, shape index: {}]
  %s2 = inlined_call_operand.vmem [shape: f32[8,8,8], index: 2, kind: input, shape index: {}]
  %s3 = inlined_call_operand.hbm [shape: f32[8,8,8], index: 3, kind: input, shape index: {}]
  %s4 = inlined_call_operand.hbm [shape: f32[8,32,32], index: 4, kind: input, shape index: {}]
  %s5 = inlined_call_operand.vmem [shape: f32[15,32], index: 5, kind: input, shape index: {}]
  %s6 = inlined_call_operand.vmem [shape: f32[32,64], index: 6, kind: input, shape index: {}]
  %s7 = inlined_call_operand.vmem [shape: f32[1,64], index: 7, kind: input, shape index: {}]
  %s8 = inlined_call_operand.vmem [shape: f32[64,32], index: 8, kind: input, shape index: {}]
  %s9 = inlined_call_operand.hbm [shape: f32[2,256], index: 9, kind: output, shape index: {}]
  %s10 = sld [smem:[#allocation0]]
  $region62: #{tpu_custom_call.1} parent=0
    _
  %s12 = ssub.s32 1, %s10
  %s13 = scalar_select 0, %s12, %s10
  $region1: #{tpu_custom_call.1} parent=0
    #allocation2 [shape = 'u8[8192]{0}', space=vmem, size = 0x2000, scoped, tag = 'input window, operand 0, single buffered']
    #allocation3 [shape = 's32[1]{0}', space=sflag, size = 0x4, scoped, tag = 'scoped memory for tpu_custom_call.1']
    #allocation4 [shape = 's32[1]{0}', space=sflag, size = 0x4, scoped, tag = 'scoped memory for tpu_custom_call.1']
    #allocation5 [shape = 'u8[8192]{0}', space=vmem, size = 0x2000, scoped, tag = 'input window, operand 1, single buffered']
    #allocation6 [shape = 's32[1]{0}', space=sflag, size = 0x4, scoped, tag = 'scoped memory for tpu_custom_call.1']
    #allocation7 [shape = 'u8[32768]{0}', space=vmem, size = 0x8000, scoped, tag = 'input window, operand 3, single buffered']
    #allocation8 [shape = 'u8[131072]{0}', space=vmem, size = 0x20000, scoped, tag = 'input window, operand 4, single buffered']
    #allocation9 [shape = 's32[1]{0}', space=sflag, size = 0x4, scoped, tag = 'scoped memory for tpu_custom_call.1']
    #allocation10 [shape = 'u8[2048]{0}', space=vmem, size = 0x800, scoped, tag = 'output window, operand 0, single buffered']
    %14 = vsyncpa [#allocation3], 0
    %15 = vsyncpa [#allocation6], 0
    %16 = vsyncpa [#allocation9], 0
    %17 = vsyncpa [#allocation4], 0
    // Predicated region
    $region2: #{tpu_custom_call.1} parent=1 // pred_check
      _
    $region3: #{tpu_custom_call.1} parent=1 // pred_check_branch
      %19 = sbr.rel (0) target = $region5
    $region4: #{tpu_custom_call.1} parent=1 // pred_region
      %s21 = ssub.s32 256, 256
      %22 = vsyncadd [#allocation3], %s21
      %s23 = sshll.u32 [#allocation2], 4
      %s24 = int_to_ptr.vmem [resolvable:$true] %s23
      %29 = dma.hbm_to_vmem [thread:$0]  %s0, 256, %s24, [#allocation3], 128, 128, 8
    $region5: #{tpu_custom_call.1} parent=1 // pred_fallthru
      _
    // Predicated region
    $region6: #{tpu_custom_call.1} parent=1 // pred_check
      _
    $region7: #{tpu_custom_call.1} parent=1 // pred_check_branch
      %31 = sbr.rel (0) target = $region9
    $region8: #{tpu_custom_call.1} parent=1 // pred_region
      %s33 = ssub.s32 256, 256
      %34 = vsyncadd [#allocation6], %s33
      %s35 = sshll.u32 [#allocation5], 4
      %s36 = int_to_ptr.vmem [resolvable:$true] %s35
      %41 = dma.hbm_to_vmem [thread:$0]  %s1, 256, %s36, [#allocation6], 128, 128, 8
    $region9: #{tpu_custom_call.1} parent=1 // pred_fallthru
      _
    // Predicated region
    $region10: #{tpu_custom_call.1} parent=1 // pred_check
      _
    $region11: #{tpu_custom_call.1} parent=1 // pred_check_branch
      %43 = sbr.rel (0) target = $region13
    $region12: #{tpu_custom_call.1} parent=1 // pred_region
      _
    $region13: #{tpu_custom_call.1} parent=1 // pred_fallthru
      _
    // Predicated region
    $region14: #{tpu_custom_call.1} parent=1 // pred_check
      _
    $region15: #{tpu_custom_call.1} parent=1 // pred_check_branch
      %45 = sbr.rel (0) target = $region17
    $region16: #{tpu_custom_call.1} parent=1 // pred_region
      %s47 = ssub.s32 1024, 1024
      %48 = vsyncadd [#allocation6], %s47
      %s49 = sshll.u32 [#allocation7], 4
      %s50 = int_to_ptr.vmem [resolvable:$true] %s49
      %55 = dma.hbm_to_vmem [thread:$0]  %s3, 1024, %s50, [#allocation6], 128, 128, 8
    $region17: #{tpu_custom_call.1} parent=1 // pred_fallthru
      _
    // Predicated region
    $region18: #{tpu_custom_call.1} parent=1 // pred_check
      _
    $region19: #{tpu_custom_call.1} parent=1 // pred_check_branch
      %57 = sbr.rel (0) target = $region21
    $region20: #{tpu_custom_call.1} parent=1 // pred_region
      %s59 = ssub.s32 4096, 4096
      %60 = vsyncadd [#allocation9], %s59
      %s61 = sshll.u32 [#allocation8], 4
      %s62 = int_to_ptr.vmem [resolvable:$true] %s61
      %67 = dma.hbm_to_vmem [thread:$0]  %s4, 4096, %s62, [#allocation9], 128, 128, 8
    $region21: #{tpu_custom_call.1} parent=1 // pred_fallthru
      _
    // Predicated region
    $region22: #{tpu_custom_call.1} parent=1 // pred_check
      _
    $region23: #{tpu_custom_call.1} parent=1 // pred_check_branch
      %69 = sbr.rel (0) target = $region25
    $region24: #{tpu_custom_call.1} parent=1 // pred_region
      _
    $region25: #{tpu_custom_call.1} parent=1 // pred_fallthru
      _
    // Predicated region
    $region26: #{tpu_custom_call.1} parent=1 // pred_check
      _
    $region27: #{tpu_custom_call.1} parent=1 // pred_check_branch
      %71 = sbr.rel (0) target = $region29
    $region28: #{tpu_custom_call.1} parent=1 // pred_region
      _
    $region29: #{tpu_custom_call.1} parent=1 // pred_fallthru
      _
    // Predicated region
    $region30: #{tpu_custom_call.1} parent=1 // pred_check
      _
    $region31: #{tpu_custom_call.1} parent=1 // pred_check_branch
      %73 = sbr.rel (0) target = $region33
    $region32: #{tpu_custom_call.1} parent=1 // pred_region
      _
    $region33: #{tpu_custom_call.1} parent=1 // pred_fallthru
      _
    // Predicated region
    $region34: #{tpu_custom_call.1} parent=1 // pred_check
      _
    $region35: #{tpu_custom_call.1} parent=1 // pred_check_branch
      %75 = sbr.rel (0) target = $region37
    $region36: #{tpu_custom_call.1} parent=1 // pred_region
      _
    $region37: #{tpu_custom_call.1} parent=1 // pred_fallthru
      _
    // Predicated region
    $region38: #{tpu_custom_call.1} parent=1 // pred_check
      _
    $region39: #{tpu_custom_call.1} parent=1 // pred_check_branch
      %77 = sbr.rel (0) target = $region41
    $region40: #{tpu_custom_call.1} parent=1 // pred_region
      %78 = dma.done [#allocation3], 256
    $region41: #{tpu_custom_call.1} parent=1 // pred_fallthru
      _
    // Predicated region
    $region42: #{tpu_custom_call.1} parent=1 // pred_check
      _
    $region43: #{tpu_custom_call.1} parent=1 // pred_check_branch
      %80 = sbr.rel (0) target = $region45
    $region44: #{tpu_custom_call.1} parent=1 // pred_region
      %81 = dma.done [#allocation6], 256
    $region45: #{tpu_custom_call.1} parent=1 // pred_fallthru
      _
    // Predicated region
    $region46: #{tpu_custom_call.1} parent=1 // pred_check
      _
    $region47: #{tpu_custom_call.1} parent=1 // pred_check_branch
      %83 = sbr.rel (0) target = $region49
    $region48: #{tpu_custom_call.1} parent=1 // pred_region
      %84 = dma.done [#allocation6], 1024
    $region49: #{tpu_custom_call.1} parent=1 // pred_fallthru
      _
    // Predicated region
    $region50: #{tpu_custom_call.1} parent=1 // pred_check
      _
    $region51: #{tpu_custom_call.1} parent=1 // pred_check_branch
      %86 = sbr.rel (0) target = $region53
    $region52: #{tpu_custom_call.1} parent=1 // pred_region
      %87 = dma.done [#allocation9], 4096
    $region53: #{tpu_custom_call.1} parent=1 // pred_fallthru
      _
    %v88 = vld [vmem:[#allocation2] sm:$0xff]
    %v89 = vld [vmem:[#allocation2 + $0x8] sm:$0xff]
    %v90 = vld [vmem:[#allocation5] sm:$0xff]
    %v91 = vld [vmem:[#allocation5 + $0x8] sm:$0xff]
    %v92 = vld [vmem:[%s5] sm:$0xff]
    %v93 = vld [vmem:[%s5 + $0x8] sm:$0x7f]
    %v94 = vld [vmem:[#allocation8] sm:$0xff]
    %v95 = vld [vmem:[#allocation8 + $0x8] sm:$0xff]
    %v96 = vld [vmem:[#allocation8 + $0x10] sm:$0xff]
    %v97 = vld [vmem:[#allocation8 + $0x18] sm:$0xff]
    %v98 = vld [vmem:[#allocation8 + $0x20] sm:$0xff]
    %v99 = vld [vmem:[#allocation8 + $0x28] sm:$0xff]
    %v100 = vld [vmem:[#allocation8 + $0x30] sm:$0xff]
    %v101 = vld [vmem:[#allocation8 + $0x38] sm:$0xff]
    %v102 = vld [vmem:[#allocation8 + $0x40] sm:$0xff]
    %v103 = vld [vmem:[#allocation8 + $0x48] sm:$0xff]
    %v104 = vld [vmem:[#allocation8 + $0x50] sm:$0xff]
    %v105 = vld [vmem:[#allocation8 + $0x58] sm:$0xff]
    %v106 = vld [vmem:[#allocation8 + $0x60] sm:$0xff]
    %v107 = vld [vmem:[#allocation8 + $0x68] sm:$0xff]
    %v108 = vld [vmem:[#allocation8 + $0x70] sm:$0xff]
    %v109 = vld [vmem:[#allocation8 + $0x78] sm:$0xff]
    %v110 = vld [vmem:[#allocation8 + $0x80] sm:$0xff]
    %v111 = vld [vmem:[#allocation8 + $0x88] sm:$0xff]
    %v112 = vld [vmem:[#allocation8 + $0x90] sm:$0xff]
    %v113 = vld [vmem:[#allocation8 + $0x98] sm:$0xff]
    %v114 = vld [vmem:[#allocation8 + $0xa0] sm:$0xff]
    %v115 = vld [vmem:[#allocation8 + $0xa8] sm:$0xff]
    %v116 = vld [vmem:[#allocation8 + $0xb0] sm:$0xff]
    %v117 = vld [vmem:[#allocation8 + $0xb8] sm:$0xff]
    %v118 = vld [vmem:[#allocation8 + $0xc0] sm:$0xff]
    %v119 = vld [vmem:[#allocation8 + $0xc8] sm:$0xff]
    %v120 = vld [vmem:[#allocation8 + $0xd0] sm:$0xff]
    %v121 = vld [vmem:[#allocation8 + $0xd8] sm:$0xff]
    %v122 = vld [vmem:[#allocation8 + $0xe0] sm:$0xff]
    %v123 = vld [vmem:[#allocation8 + $0xe8] sm:$0xff]
    %v124 = vld [vmem:[#allocation8 + $0xf0] sm:$0xff]
    %v125 = vld [vmem:[#allocation8 + $0xf8] sm:$0xff]
    %vm126 = vcmask 261120
    %v127 = vsel %vm126, %v88, 0.0
    %128 = vadd.xlane.f32.xlu0 %v127
    %v129 = vpop.xlane.xlu0 %128
    %v130 = vsel %vm126, %v89, 0.0
    %131 = vadd.xlane.f32.xlu0 %v130
    %v132 = vpop.xlane.xlu0 %131
    %v133 = vrcp.pop 32.0
    %v134 = vmul.f32 %v129, %v133
    %v135 = vmul.f32 %v132, %v133
    %v136 = vsub.f32 %v88, %v134
    %v137 = vsub.f32 %v89, %v135
    %v138 = vmul.f32 %v136, %v136
    %v139 = vmul.f32 %v137, %v137
    %v140 = vsel %vm126, %v138, 0.0
    %141 = vadd.xlane.f32.xlu0 %v140
    %v142 = vpop.xlane.xlu0 %141
    %v143 = vsel %vm126, %v139, 0.0
    %144 = vadd.xlane.f32.xlu0 %v143
    %v145 = vpop.xlane.xlu0 %144
    %v146 = vmul.f32 %v142, 0.032258064
    %v147 = vmul.f32 %v145, 0.032258064
    %v148 = vrsqrt.pop %v146
    %v149 = vmul.f32 %v146, %v148
    %vm150 = vcmp.eq.f32.partialorder %v146, inf
    %v151 = vsel %vm150, %v146, %v149
    %vm152 = vcmp.eq.f32.partialorder %v146, 0.0
    %v153 = vand.u32 %v146, 2147483648
    %v154 = vsel %vm152, %v153, %v151
    %v155 = vrsqrt.pop %v147
    %v156 = vmul.f32 %v147, %v155
    %vm157 = vcmp.eq.f32.partialorder %v147, inf
    %v158 = vsel %vm157, %v147, %v156
    %vm159 = vcmp.eq.f32.partialorder %v147, 0.0
    %v160 = vand.u32 %v147, 2147483648
    %v161 = vsel %vm159, %v160, %v158
    %v162 = vadd.f32 %v154, 1e-06
    %v163 = vadd.f32 %v161, 1e-06
    %v164 = vrcp.pop %v162
    %v165 = vrcp.pop %v163
    %v166 = vlaneseq
    %v167 = vshrl.u32 %v166, 7
    %v168 = vsub.s32 0, %v167
    %v169 = vrot.slane %v92, %v168
    %v170 = vmul.f32 %v169, %v136
    %v171 = vmul.f32 %v169, %v137
    %v172 = vmul.f32 %v170, %v164
    %v173 = vmul.f32 %v171, %v165
    %v174 = vlaneseq
    %v175 = vshrl.u32 %v174, 7
    %v176 = vsub.s32 3, %v175
    %v177 = vrot.slane %v92, %v176
    %v178 = vadd.f32 %v172, %v177
    %v179 = vadd.f32 %v173, %v177
    %v180 = vld [vmem:[%s2] sm:$0xff]
    %v181 = vld [vmem:[%s2 + $0x8] sm:$0xff]
    %v182 = vld [vmem:[%s2 + $0x10] sm:$0xff]
    %v183 = vld [vmem:[%s2 + $0x18] sm:$0xff]
    %v184 = vld [vmem:[%s2 + $0x20] sm:$0xff]
    %v185 = vld [vmem:[%s2 + $0x28] sm:$0xff]
    %v186 = vld [vmem:[%s2 + $0x30] sm:$0xff]
    %v187 = vld [vmem:[%s2 + $0x38] sm:$0xff]
    %v188 = vlaneseq
    %v189 = vshrl.u32 %v188, 7
    %v190 = vsub.s32 6, %v189
    %v191 = vrot.slane %v92, %v190
    %v193 = vsel %vm126, %v178, 0
    %v196 = vsel %vm126, %v179, 0
    %198 = vmatprep.subr.mxu0 0.0
    %199 = vmatpush1.msra.mxu0 %v94
    %200 = vmatprep.subr.mxu0 0.0
    %201 = vmatpush1.msra.mxu0 %v95
    %202 = vmatprep.subr.mxu0 0.0
    %203 = vmatpush1.msra.mxu0 %v96
    %204 = vmatprep.subr.mxu0 0.0
    %205 = vmatpush1.msra.mxu0 %v97
    %206 = vmatprep.subr.mxu0 0.0
    %207 = vmatpush1.msra.mxu0 0.0
    %208 = vmatprep.subr.mxu0 0.0
    %209 = vmatpush1.msra.mxu0 0.0
    %210 = vmatprep.subr.mxu0 0.0
    %211 = vmatpush1.msra.mxu0 0.0
    %212 = vmatprep.subr.mxu0 0.0
    %213 = vmatpush1.msra.mxu0 0.0
    %214 = vmatprep.subr.mxu0 0.0
    %215 = vmatpush1.msra.mxu0 0.0
    %216 = vmatprep.subr.mxu0 0.0
    %217 = vmatpush1.msra.mxu0 0.0
    %218 = vmatprep.subr.mxu0 0.0
    %219 = vmatpush1.msra.mxu0 0.0
    %220 = vmatprep.subr.mxu0 0.0
    %221 = vmatpush1.msra.mxu0 0.0
    %222 = vmatprep.subr.mxu0 0.0
    %223 = vmatpush1.msra.mxu0 0.0
    %224 = vmatprep.subr.mxu0 0.0
    %225 = vmatpush1.msra.mxu0 0.0
    %226 = vmatprep.subr.mxu0 0.0
    %227 = vmatpush1.msra.mxu0 0.0
    %228 = vmatprep.subr.mxu0 0.0
    %229 = vmatpush1.msra.mxu0 0.0
    %230 = vmatprep.subr.mxu0 0.0
    %231 = vmatpush1.msra.mxu0 0.0
    %232 = vmatprep.subr.mxu0 0.0
    %233 = vmatpush1.msra.mxu0 0.0
    %234 = vmatprep.subr.mxu0 0.0
    %235 = vmatpush1.msra.mxu0 0.0
    %236 = vmatprep.subr.mxu0 0.0
    %237 = vmatpush1.msra.mxu0 0.0
    %238 = vmatprep.subr.mxu0 0.0
    %239 = vmatpush1.msra.mxu0 0.0
    %240 = vmatprep.subr.mxu0 0.0
    %241 = vmatpush1.msra.mxu0 0.0
    %242 = vmatprep.subr.mxu0 0.0
    %243 = vmatpush1.msra.mxu0 0.0
    %244 = vmatprep.subr.mxu0 0.0
    %245 = vmatpush1.msra.mxu0 0.0
    %246 = vmatprep.subr.mxu0 0.0
    %247 = vmatpush1.msra.mxu0 0.0
    %248 = vmatprep.subr.mxu0 0.0
    %249 = vmatpush1.msra.mxu0 0.0
    %250 = vmatprep.subr.mxu0 0.0
    %251 = vmatpush1.msra.mxu0 0.0
    %252 = vmatprep.subr.mxu0 0.0
    %253 = vmatpush1.msra.mxu0 0.0
    %254 = vmatprep.subr.mxu0 0.0
    %255 = vmatpush1.msra.mxu0 0.0
    %256 = vmatprep.subr.mxu0 0.0
    %257 = vmatpush1.msra.mxu0 0.0
    %258 = vmatprep.subr.mxu0 0.0
    %259 = vmatpush1.msra.mxu0 0.0
    %260 = vmatprep.subr.mxu0 0.0
    %261 = vmatpush1.msra.mxu0 0.0
    %262 = vmatprep.mubr.f32.mxu0 0.0
    %263 = vmatmul.mubr.f32.gmra.mrb[0].mxu0 %v193
    %v264 = vpop.f32.mrb[0].mxu0
    %v265 = vadd.f32 %v191, %v264
    %v266 = vpop.f32.mrb[0].mxu0
    %267 = vmatprep.mubr.f32.mxu0 0.0
    %268 = vmatmul.mubr.f32.gmra.mrb[0].mxu0 %v196
    %v269 = vpop.f32.mrb[0].mxu0
    %v270 = vadd.f32 %v191, %v269
    %v271 = vpop.f32.mrb[0].mxu0
    %272 = vdwg.mxu0
    %v273 = vlaneseq
    %v274 = vshrl.u32 %v273, 7
    %v275 = vsub.s32 7, %v274
    %v276 = vrot.slane %v92, %v275
    %277 = vmatprep.subr.mxu0 0.0
    %278 = vmatpush1.msra.mxu0 %v98
    %279 = vmatprep.subr.mxu0 0.0
    %280 = vmatpush1.msra.mxu0 %v99
    %281 = vmatprep.subr.mxu0 0.0
    %282 = vmatpush1.msra.mxu0 %v100
    %283 = vmatprep.subr.mxu0 0.0
    %284 = vmatpush1.msra.mxu0 %v101
    %285 = vmatprep.subr.mxu0 0.0
    %286 = vmatpush1.msra.mxu0 0.0
    %287 = vmatprep.subr.mxu0 0.0
    %288 = vmatpush1.msra.mxu0 0.0
    %289 = vmatprep.subr.mxu0 0.0
    %290 = vmatpush1.msra.mxu0 0.0
    %291 = vmatprep.subr.mxu0 0.0
    %292 = vmatpush1.msra.mxu0 0.0
    %293 = vmatprep.subr.mxu0 0.0
    %294 = vmatpush1.msra.mxu0 0.0
    %295 = vmatprep.subr.mxu0 0.0
    %296 = vmatpush1.msra.mxu0 0.0
    %297 = vmatprep.subr.mxu0 0.0
    %298 = vmatpush1.msra.mxu0 0.0
    %299 = vmatprep.subr.mxu0 0.0
    %300 = vmatpush1.msra.mxu0 0.0
    %301 = vmatprep.subr.mxu0 0.0
    %302 = vmatpush1.msra.mxu0 0.0
    %303 = vmatprep.subr.mxu0 0.0
    %304 = vmatpush1.msra.mxu0 0.0
    %305 = vmatprep.subr.mxu0 0.0
    %306 = vmatpush1.msra.mxu0 0.0
    %307 = vmatprep.subr.mxu0 0.0
    %308 = vmatpush1.msra.mxu0 0.0
    %309 = vmatprep.subr.mxu0 0.0
    %310 = vmatpush1.msra.mxu0 0.0
    %311 = vmatprep.subr.mxu0 0.0
    %312 = vmatpush1.msra.mxu0 0.0
    %313 = vmatprep.subr.mxu0 0.0
    %314 = vmatpush1.msra.mxu0 0.0
    %315 = vmatprep.subr.mxu0 0.0
    %316 = vmatpush1.msra.mxu0 0.0
    %317 = vmatprep.subr.mxu0 0.0
    %318 = vmatpush1.msra.mxu0 0.0
    %319 = vmatprep.subr.mxu0 0.0
    %320 = vmatpush1.msra.mxu0 0.0
    %321 = vmatprep.subr.mxu0 0.0
    %322 = vmatpush1.msra.mxu0 0.0
    %323 = vmatprep.subr.mxu0 0.0
    %324 = vmatpush1.msra.mxu0 0.0
    %325 = vmatprep.subr.mxu0 0.0
    %326 = vmatpush1.msra.mxu0 0.0
    %327 = vmatprep.subr.mxu0 0.0
    %328 = vmatpush1.msra.mxu0 0.0
    %329 = vmatprep.subr.mxu0 0.0
    %330 = vmatpush1.msra.mxu0 0.0
    %331 = vmatprep.subr.mxu0 0.0
    %332 = vmatpush1.msra.mxu0 0.0
    %333 = vmatprep.subr.mxu0 0.0
    %334 = vmatpush1.msra.mxu0 0.0
    %335 = vmatprep.subr.mxu0 0.0
    %336 = vmatpush1.msra.mxu0 0.0
    %337 = vmatprep.subr.mxu0 0.0
    %338 = vmatpush1.msra.mxu0 0.0
    %339 = vmatprep.subr.mxu0 0.0
    %340 = vmatpush1.msra.mxu0 0.0
    %341 = vmatprep.mubr.f32.mxu0 0.0
    %342 = vmatmul.mubr.f32.gmra.mrb[0].mxu0 %v193
    %v343 = vpop.f32.mrb[0].mxu0
    %v344 = vadd.f32 %v276, %v343
    %v345 = vpop.f32.mrb[0].mxu0
    %346 = vmatprep.mubr.f32.mxu0 0.0
    %347 = vmatmul.mubr.f32.gmra.mrb[0].mxu0 %v196
    %v348 = vpop.f32.mrb[0].mxu0
    %v349 = vadd.f32 %v276, %v348
    %v350 = vpop.f32.mrb[0].mxu0
    %351 = vdwg.mxu0
    %v352 = vlaneseq
    %v353 = vshrl.u32 %v352, 7
    %v354 = vsub.s32 0, %v353
    %v355 = vrot.slane %v93, %v354
    %356 = vmatprep.subr.mxu0 0.0
    %357 = vmatpush1.msra.mxu0 %v102
    %358 = vmatprep.subr.mxu0 0.0
    %359 = vmatpush1.msra.mxu0 %v103
    %360 = vmatprep.subr.mxu0 0.0
    %361 = vmatpush1.msra.mxu0 %v104
    %362 = vmatprep.subr.mxu0 0.0
    %363 = vmatpush1.msra.mxu0 %v105
    %364 = vmatprep.subr.mxu0 0.0
    %365 = vmatpush1.msra.mxu0 0.0
    %366 = vmatprep.subr.mxu0 0.0
    %367 = vmatpush1.msra.mxu0 0.0
    %368 = vmatprep.subr.mxu0 0.0
    %369 = vmatpush1.msra.mxu0 0.0
    %370 = vmatprep.subr.mxu0 0.0
    %371 = vmatpush1.msra.mxu0 0.0
    %372 = vmatprep.subr.mxu0 0.0
    %373 = vmatpush1.msra.mxu0 0.0
    %374 = vmatprep.subr.mxu0 0.0
    %375 = vmatpush1.msra.mxu0 0.0
    %376 = vmatprep.subr.mxu0 0.0
    %377 = vmatpush1.msra.mxu0 0.0
    %378 = vmatprep.subr.mxu0 0.0
    %379 = vmatpush1.msra.mxu0 0.0
    %380 = vmatprep.subr.mxu0 0.0
    %381 = vmatpush1.msra.mxu0 0.0
    %382 = vmatprep.subr.mxu0 0.0
    %383 = vmatpush1.msra.mxu0 0.0
    %384 = vmatprep.subr.mxu0 0.0
    %385 = vmatpush1.msra.mxu0 0.0
    %386 = vmatprep.subr.mxu0 0.0
    %387 = vmatpush1.msra.mxu0 0.0
    %388 = vmatprep.subr.mxu0 0.0
    %389 = vmatpush1.msra.mxu0 0.0
    %390 = vmatprep.subr.mxu0 0.0
    %391 = vmatpush1.msra.mxu0 0.0
    %392 = vmatprep.subr.mxu0 0.0
    %393 = vmatpush1.msra.mxu0 0.0
    %394 = vmatprep.subr.mxu0 0.0
    %395 = vmatpush1.msra.mxu0 0.0
    %396 = vmatprep.subr.mxu0 0.0
    %397 = vmatpush1.msra.mxu0 0.0
    %398 = vmatprep.subr.mxu0 0.0
    %399 = vmatpush1.msra.mxu0 0.0
    %400 = vmatprep.subr.mxu0 0.0
    %401 = vmatpush1.msra.mxu0 0.0
    %402 = vmatprep.subr.mxu0 0.0
    %403 = vmatpush1.msra.mxu0 0.0
    %404 = vmatprep.subr.mxu0 0.0
    %405 = vmatpush1.msra.mxu0 0.0
    %406 = vmatprep.subr.mxu0 0.0
    %407 = vmatpush1.msra.mxu0 0.0
    %408 = vmatprep.subr.mxu0 0.0
    %409 = vmatpush1.msra.mxu0 0.0
    %410 = vmatprep.subr.mxu0 0.0
    %411 = vmatpush1.msra.mxu0 0.0
    %412 = vmatprep.subr.mxu0 0.0
    %413 = vmatpush1.msra.mxu0 0.0
    %414 = vmatprep.subr.mxu0 0.0
    %415 = vmatpush1.msra.mxu0 0.0
    %416 = vmatprep.subr.mxu0 0.0
    %417 = vmatpush1.msra.mxu0 0.0
    %418 = vmatprep.subr.mxu0 0.0
    %419 = vmatpush1.msra.mxu0 0.0
    %420 = vmatprep.mubr.f32.mxu0 0.0
    %421 = vmatmul.mubr.f32.gmra.mrb[0].mxu0 %v193
    %v422 = vpop.f32.mrb[0].mxu0
    %v423 = vadd.f32 %v355, %v422
    %v424 = vpop.f32.mrb[0].mxu0
    %425 = vmatprep.mubr.f32.mxu0 0.0
    %426 = vmatmul.mubr.f32.gmra.mrb[0].mxu0 %v196
    %v427 = vpop.f32.mrb[0].mxu0
    %v428 = vadd.f32 %v355, %v427
    %v429 = vpop.f32.mrb[0].mxu0
    %430 = vdwg.mxu0
    %433 = vrot.lane.b32.xlu0 %v265, 120
    %v434 = vpop.permute.xlu0 %433
    %435 = vrot.lane.b32.xlu0 %v270, 120
    %v436 = vpop.permute.xlu0 %435
    %437 = vrot.lane.b32.xlu0 %v265, 112
    %v438 = vpop.permute.xlu0 %437
    %439 = vrot.lane.b32.xlu0 %v270, 112
    %v440 = vpop.permute.xlu0 %439
    %441 = vrot.lane.b32.xlu0 %v265, 104
    %v442 = vpop.permute.xlu0 %441
    %443 = vrot.lane.b32.xlu0 %v270, 104
    %v444 = vpop.permute.xlu0 %443
    %447 = vrot.lane.b32.xlu0 %v344, 120
    %v448 = vpop.permute.xlu0 %447
    %449 = vrot.lane.b32.xlu0 %v349, 120
    %v450 = vpop.permute.xlu0 %449
    %451 = vrot.lane.b32.xlu0 %v344, 112
    %v452 = vpop.permute.xlu0 %451
    %453 = vrot.lane.b32.xlu0 %v349, 112
    %v454 = vpop.permute.xlu0 %453
    %455 = vrot.lane.b32.xlu0 %v344, 104
    %v456 = vpop.permute.xlu0 %455
    %457 = vrot.lane.b32.xlu0 %v349, 104
    %v458 = vpop.permute.xlu0 %457
    %461 = vrot.lane.b32.xlu0 %v423, 120
    %v462 = vpop.permute.xlu0 %461
    %463 = vrot.lane.b32.xlu0 %v428, 120
    %v464 = vpop.permute.xlu0 %463
    %467 = vrot.lane.b32.xlu0 %v423, 112
    %v468 = vpop.permute.xlu0 %467
    %469 = vrot.lane.b32.xlu0 %v428, 112
    %v470 = vpop.permute.xlu0 %469
    %473 = vrot.lane.b32.xlu0 %v423, 104
    %v474 = vpop.permute.xlu0 %473
    %475 = vrot.lane.b32.xlu0 %v428, 104
    %v476 = vpop.permute.xlu0 %475
    %vm479 = vcmask 64512
    %v480 = vsel %vm479, %v265, 0
    %v482 = vsel %vm479, %v344, 0
    %484 = vmatprep.subr.mxu0 0.0
    %485 = vmatpush1.xpose.msra.mxu0 %v482
    %486 = vmatprep.subr.mxu0 0.0
    %487 = vmatpush1.xpose.msra.mxu0 0.0
    %488 = vmatprep.subr.mxu0 0.0
    %489 = vmatpush1.xpose.msra.mxu0 0.0
    %490 = vmatprep.subr.mxu0 0.0
    %491 = vmatpush1.xpose.msra.mxu0 0.0
    %492 = vmatprep.subr.mxu0 0.0
    %493 = vmatpush1.xpose.msra.mxu0 0.0
    %494 = vmatprep.subr.mxu0 0.0
    %495 = vmatpush1.xpose.msra.mxu0 0.0
    %496 = vmatprep.subr.mxu0 0.0
    %497 = vmatpush1.xpose.msra.mxu0 0.0
    %498 = vmatprep.subr.mxu0 0.0
    %499 = vmatpush1.xpose.msra.mxu0 0.0
    %500 = vmatprep.subr.mxu0 0.0
    %501 = vmatpush1.xpose.msra.mxu0 0.0
    %502 = vmatprep.subr.mxu0 0.0
    %503 = vmatpush1.xpose.msra.mxu0 0.0
    %504 = vmatprep.subr.mxu0 0.0
    %505 = vmatpush1.xpose.msra.mxu0 0.0
    %506 = vmatprep.subr.mxu0 0.0
    %507 = vmatpush1.xpose.msra.mxu0 0.0
    %508 = vmatprep.subr.mxu0 0.0
    %509 = vmatpush1.xpose.msra.mxu0 0.0
    %510 = vmatprep.subr.mxu0 0.0
    %511 = vmatpush1.xpose.msra.mxu0 0.0
    %512 = vmatprep.subr.mxu0 0.0
    %513 = vmatpush1.xpose.msra.mxu0 0.0
    %514 = vmatprep.subr.mxu0 0.0
    %515 = vmatpush1.xpose.msra.mxu0 0.0
    %516 = vmatprep.subr.mxu0 0.0
    %517 = vmatpush1.xpose.msra.mxu0 0.0
    %518 = vmatprep.subr.mxu0 0.0
    %519 = vmatpush1.xpose.msra.mxu0 0.0
    %520 = vmatprep.subr.mxu0 0.0
    %521 = vmatpush1.xpose.msra.mxu0 0.0
    %522 = vmatprep.subr.mxu0 0.0
    %523 = vmatpush1.xpose.msra.mxu0 0.0
    %524 = vmatprep.subr.mxu0 0.0
    %525 = vmatpush1.xpose.msra.mxu0 0.0
    %526 = vmatprep.subr.mxu0 0.0
    %527 = vmatpush1.xpose.msra.mxu0 0.0
    %528 = vmatprep.subr.mxu0 0.0
    %529 = vmatpush1.xpose.msra.mxu0 0.0
    %530 = vmatprep.subr.mxu0 0.0
    %531 = vmatpush1.xpose.msra.mxu0 0.0
    %532 = vmatprep.subr.mxu0 0.0
    %533 = vmatpush1.xpose.msra.mxu0 0.0
    %534 = vmatprep.subr.mxu0 0.0
    %535 = vmatpush1.xpose.msra.mxu0 0.0
    %536 = vmatprep.subr.mxu0 0.0
    %537 = vmatpush1.xpose.msra.mxu0 0.0
    %538 = vmatprep.subr.mxu0 0.0
    %539 = vmatpush1.xpose.msra.mxu0 0.0
    %540 = vmatprep.subr.mxu0 0.0
    %541 = vmatpush1.xpose.msra.mxu0 0.0
    %542 = vmatprep.subr.mxu0 0.0
    %543 = vmatpush1.xpose.msra.mxu0 0.0
    %544 = vmatprep.subr.mxu0 0.0
    %545 = vmatpush1.xpose.msra.mxu0 0.0
    %546 = vmatprep.subr.mxu0 0.0
    %547 = vmatpush1.xpose.msra.mxu0 0.0
    %548 = vmatprep.mubr.f32.mxu0 0.0
    %549 = vmatmul.mubr.f32.gmra.mrb[0].mxu0 %v480
    %v550 = vpop.f32.mrb[0].mxu0
    %v551 = vadd.f32 %v180, %v550
    %v552 = vpop.f32.mrb[0].mxu0
    %553 = vdwg.mxu0
    %v554 = vsel %vm479, %v270, 0
    %v556 = vsel %vm479, %v349, 0
    %558 = vmatprep.subr.mxu0 0.0
    %559 = vmatpush1.xpose.msra.mxu0 %v556
    %560 = vmatprep.subr.mxu0 0.0
    %561 = vmatpush1.xpose.msra.mxu0 0.0
    %562 = vmatprep.subr.mxu0 0.0
    %563 = vmatpush1.xpose.msra.mxu0 0.0
    %564 = vmatprep.subr.mxu0 0.0
    %565 = vmatpush1.xpose.msra.mxu0 0.0
    %566 = vmatprep.subr.mxu0 0.0
    %567 = vmatpush1.xpose.msra.mxu0 0.0
    %568 = vmatprep.subr.mxu0 0.0
    %569 = vmatpush1.xpose.msra.mxu0 0.0
    %570 = vmatprep.subr.mxu0 0.0
    %571 = vmatpush1.xpose.msra.mxu0 0.0
    %572 = vmatprep.subr.mxu0 0.0
    %573 = vmatpush1.xpose.msra.mxu0 0.0
    %574 = vmatprep.subr.mxu0 0.0
    %575 = vmatpush1.xpose.msra.mxu0 0.0
    %576 = vmatprep.subr.mxu0 0.0
    %577 = vmatpush1.xpose.msra.mxu0 0.0
    %578 = vmatprep.subr.mxu0 0.0
    %579 = vmatpush1.xpose.msra.mxu0 0.0
    %580 = vmatprep.subr.mxu0 0.0
    %581 = vmatpush1.xpose.msra.mxu0 0.0
    %582 = vmatprep.subr.mxu0 0.0
    %583 = vmatpush1.xpose.msra.mxu0 0.0
    %584 = vmatprep.subr.mxu0 0.0
    %585 = vmatpush1.xpose.msra.mxu0 0.0
    %586 = vmatprep.subr.mxu0 0.0
    %587 = vmatpush1.xpose.msra.mxu0 0.0
    %588 = vmatprep.subr.mxu0 0.0
    %589 = vmatpush1.xpose.msra.mxu0 0.0
    %590 = vmatprep.subr.mxu0 0.0
    %591 = vmatpush1.xpose.msra.mxu0 0.0
    %592 = vmatprep.subr.mxu0 0.0
    %593 = vmatpush1.xpose.msra.mxu0 0.0
    %594 = vmatprep.subr.mxu0 0.0
    %595 = vmatpush1.xpose.msra.mxu0 0.0
    %596 = vmatprep.subr.mxu0 0.0
    %597 = vmatpush1.xpose.msra.mxu0 0.0
    %598 = vmatprep.subr.mxu0 0.0
    %599 = vmatpush1.xpose.msra.mxu0 0.0
    %600 = vmatprep.subr.mxu0 0.0
    %601 = vmatpush1.xpose.msra.mxu0 0.0
    %602 = vmatprep.subr.mxu0 0.0
    %603 = vmatpush1.xpose.msra.mxu0 0.0
    %604 = vmatprep.subr.mxu0 0.0
    %605 = vmatpush1.xpose.msra.mxu0 0.0
    %606 = vmatprep.subr.mxu0 0.0
    %607 = vmatpush1.xpose.msra.mxu0 0.0
    %608 = vmatprep.subr.mxu0 0.0
    %609 = vmatpush1.xpose.msra.mxu0 0.0
    %610 = vmatprep.subr.mxu0 0.0
    %611 = vmatpush1.xpose.msra.mxu0 0.0
    %612 = vmatprep.subr.mxu0 0.0
    %613 = vmatpush1.xpose.msra.mxu0 0.0
    %614 = vmatprep.subr.mxu0 0.0
    %615 = vmatpush1.xpose.msra.mxu0 0.0
    %616 = vmatprep.subr.mxu0 0.0
    %617 = vmatpush1.xpose.msra.mxu0 0.0
    %618 = vmatprep.subr.mxu0 0.0
    %619 = vmatpush1.xpose.msra.mxu0 0.0
    %620 = vmatprep.subr.mxu0 0.0
    %621 = vmatpush1.xpose.msra.mxu0 0.0
    %622 = vmatprep.mubr.f32.mxu0 0.0
    %623 = vmatmul.mubr.f32.gmra.mrb[0].mxu0 %v554
    %v624 = vpop.f32.mrb[0].mxu0
    %v625 = vadd.f32 %v181, %v624
    %v626 = vpop.f32.mrb[0].mxu0
    %627 = vdwg.mxu0
    %v628 = vsel %vm479, %v434, 0
    %v630 = vsel %vm479, %v448, 0
    %632 = vmatprep.subr.mxu0 0.0
    %633 = vmatpush1.xpose.msra.mxu0 %v630
    %634 = vmatprep.subr.mxu0 0.0
    %635 = vmatpush1.xpose.msra.mxu0 0.0
    %636 = vmatprep.subr.mxu0 0.0
    %637 = vmatpush1.xpose.msra.mxu0 0.0
    %638 = vmatprep.subr.mxu0 0.0
    %639 = vmatpush1.xpose.msra.mxu0 0.0
    %640 = vmatprep.subr.mxu0 0.0
    %641 = vmatpush1.xpose.msra.mxu0 0.0
    %642 = vmatprep.subr.mxu0 0.0
    %643 = vmatpush1.xpose.msra.mxu0 0.0
    %644 = vmatprep.subr.mxu0 0.0
    %645 = vmatpush1.xpose.msra.mxu0 0.0
    %646 = vmatprep.subr.mxu0 0.0
    %647 = vmatpush1.xpose.msra.mxu0 0.0
    %648 = vmatprep.subr.mxu0 0.0
    %649 = vmatpush1.xpose.msra.mxu0 0.0
    %650 = vmatprep.subr.mxu0 0.0
    %651 = vmatpush1.xpose.msra.mxu0 0.0
    %652 = vmatprep.subr.mxu0 0.0
    %653 = vmatpush1.xpose.msra.mxu0 0.0
    %654 = vmatprep.subr.mxu0 0.0
    %655 = vmatpush1.xpose.msra.mxu0 0.0
    %656 = vmatprep.subr.mxu0 0.0
    %657 = vmatpush1.xpose.msra.mxu0 0.0
    %658 = vmatprep.subr.mxu0 0.0
    %659 = vmatpush1.xpose.msra.mxu0 0.0
    %660 = vmatprep.subr.mxu0 0.0
    %661 = vmatpush1.xpose.msra.mxu0 0.0
    %662 = vmatprep.subr.mxu0 0.0
    %663 = vmatpush1.xpose.msra.mxu0 0.0
    %664 = vmatprep.subr.mxu0 0.0
    %665 = vmatpush1.xpose.msra.mxu0 0.0
    %666 = vmatprep.subr.mxu0 0.0
    %667 = vmatpush1.xpose.msra.mxu0 0.0
    %668 = vmatprep.subr.mxu0 0.0
    %669 = vmatpush1.xpose.msra.mxu0 0.0
    %670 = vmatprep.subr.mxu0 0.0
    %671 = vmatpush1.xpose.msra.mxu0 0.0
    %672 = vmatprep.subr.mxu0 0.0
    %673 = vmatpush1.xpose.msra.mxu0 0.0
    %674 = vmatprep.subr.mxu0 0.0
    %675 = vmatpush1.xpose.msra.mxu0 0.0
    %676 = vmatprep.subr.mxu0 0.0
    %677 = vmatpush1.xpose.msra.mxu0 0.0
    %678 = vmatprep.subr.mxu0 0.0
    %679 = vmatpush1.xpose.msra.mxu0 0.0
    %680 = vmatprep.subr.mxu0 0.0
    %681 = vmatpush1.xpose.msra.mxu0 0.0
    %682 = vmatprep.subr.mxu0 0.0
    %683 = vmatpush1.xpose.msra.mxu0 0.0
    %684 = vmatprep.subr.mxu0 0.0
    %685 = vmatpush1.xpose.msra.mxu0 0.0
    %686 = vmatprep.subr.mxu0 0.0
    %687 = vmatpush1.xpose.msra.mxu0 0.0
    %688 = vmatprep.subr.mxu0 0.0
    %689 = vmatpush1.xpose.msra.mxu0 0.0
    %690 = vmatprep.subr.mxu0 0.0
    %691 = vmatpush1.xpose.msra.mxu0 0.0
    %692 = vmatprep.subr.mxu0 0.0
    %693 = vmatpush1.xpose.msra.mxu0 0.0
    %694 = vmatprep.subr.mxu0 0.0
    %695 = vmatpush1.xpose.msra.mxu0 0.0
    %696 = vmatprep.mubr.f32.mxu0 0.0
    %697 = vmatmul.mubr.f32.gmra.mrb[0].mxu0 %v628
    %v698 = vpop.f32.mrb[0].mxu0
    %v699 = vadd.f32 %v182, %v698
    %v700 = vpop.f32.mrb[0].mxu0
    %701 = vdwg.mxu0
    %v702 = vsel %vm479, %v436, 0
    %v704 = vsel %vm479, %v450, 0
    %706 = vmatprep.subr.mxu0 0.0
    %707 = vmatpush1.xpose.msra.mxu0 %v704
    %708 = vmatprep.subr.mxu0 0.0
    %709 = vmatpush1.xpose.msra.mxu0 0.0
    %710 = vmatprep.subr.mxu0 0.0
    %711 = vmatpush1.xpose.msra.mxu0 0.0
    %712 = vmatprep.subr.mxu0 0.0
    %713 = vmatpush1.xpose.msra.mxu0 0.0
    %714 = vmatprep.subr.mxu0 0.0
    %715 = vmatpush1.xpose.msra.mxu0 0.0
    %716 = vmatprep.subr.mxu0 0.0
    %717 = vmatpush1.xpose.msra.mxu0 0.0
    %718 = vmatprep.subr.mxu0 0.0
    %719 = vmatpush1.xpose.msra.mxu0 0.0
    %720 = vmatprep.subr.mxu0 0.0
    %721 = vmatpush1.xpose.msra.mxu0 0.0
    %722 = vmatprep.subr.mxu0 0.0
    %723 = vmatpush1.xpose.msra.mxu0 0.0
    %724 = vmatprep.subr.mxu0 0.0
    %725 = vmatpush1.xpose.msra.mxu0 0.0
    %726 = vmatprep.subr.mxu0 0.0
    %727 = vmatpush1.xpose.msra.mxu0 0.0
    %728 = vmatprep.subr.mxu0 0.0
    %729 = vmatpush1.xpose.msra.mxu0 0.0
    %730 = vmatprep.subr.mxu0 0.0
    %731 = vmatpush1.xpose.msra.mxu0 0.0
    %732 = vmatprep.subr.mxu0 0.0
    %733 = vmatpush1.xpose.msra.mxu0 0.0
    %734 = vmatprep.subr.mxu0 0.0
    %735 = vmatpush1.xpose.msra.mxu0 0.0
    %736 = vmatprep.subr.mxu0 0.0
    %737 = vmatpush1.xpose.msra.mxu0 0.0
    %738 = vmatprep.subr.mxu0 0.0
    %739 = vmatpush1.xpose.msra.mxu0 0.0
    %740 = vmatprep.subr.mxu0 0.0
    %741 = vmatpush1.xpose.msra.mxu0 0.0
    %742 = vmatprep.subr.mxu0 0.0
    %743 = vmatpush1.xpose.msra.mxu0 0.0
    %744 = vmatprep.subr.mxu0 0.0
    %745 = vmatpush1.xpose.msra.mxu0 0.0
    %746 = vmatprep.subr.mxu0 0.0
    %747 = vmatpush1.xpose.msra.mxu0 0.0
    %748 = vmatprep.subr.mxu0 0.0
    %749 = vmatpush1.xpose.msra.mxu0 0.0
    %750 = vmatprep.subr.mxu0 0.0
    %751 = vmatpush1.xpose.msra.mxu0 0.0
    %752 = vmatprep.subr.mxu0 0.0
    %753 = vmatpush1.xpose.msra.mxu0 0.0
    %754 = vmatprep.subr.mxu0 0.0
    %755 = vmatpush1.xpose.msra.mxu0 0.0
    %756 = vmatprep.subr.mxu0 0.0
    %757 = vmatpush1.xpose.msra.mxu0 0.0
    %758 = vmatprep.subr.mxu0 0.0
    %759 = vmatpush1.xpose.msra.mxu0 0.0
    %760 = vmatprep.subr.mxu0 0.0
    %761 = vmatpush1.xpose.msra.mxu0 0.0
    %762 = vmatprep.subr.mxu0 0.0
    %763 = vmatpush1.xpose.msra.mxu0 0.0
    %764 = vmatprep.subr.mxu0 0.0
    %765 = vmatpush1.xpose.msra.mxu0 0.0
    %766 = vmatprep.subr.mxu0 0.0
    %767 = vmatpush1.xpose.msra.mxu0 0.0
    %768 = vmatprep.subr.mxu0 0.0
    %769 = vmatpush1.xpose.msra.mxu0 0.0
    %770 = vmatprep.mubr.f32.mxu0 0.0
    %771 = vmatmul.mubr.f32.gmra.mrb[0].mxu0 %v702
    %v772 = vpop.f32.mrb[0].mxu0
    %v773 = vadd.f32 %v183, %v772
    %v774 = vpop.f32.mrb[0].mxu0
    %775 = vdwg.mxu0
    %v776 = vsel %vm479, %v438, 0
    %v778 = vsel %vm479, %v452, 0
    %780 = vmatprep.subr.mxu0 0.0
    %781 = vmatpush1.xpose.msra.mxu0 %v778
    %782 = vmatprep.subr.mxu0 0.0
    %783 = vmatpush1.xpose.msra.mxu0 0.0
    %784 = vmatprep.subr.mxu0 0.0
    %785 = vmatpush1.xpose.msra.mxu0 0.0
    %786 = vmatprep.subr.mxu0 0.0
    %787 = vmatpush1.xpose.msra.mxu0 0.0
    %788 = vmatprep.subr.mxu0 0.0
    %789 = vmatpush1.xpose.msra.mxu0 0.0
    %790 = vmatprep.subr.mxu0 0.0
    %791 = vmatpush1.xpose.msra.mxu0 0.0
    %792 = vmatprep.subr.mxu0 0.0
    %793 = vmatpush1.xpose.msra.mxu0 0.0
    %794 = vmatprep.subr.mxu0 0.0
    %795 = vmatpush1.xpose.msra.mxu0 0.0
    %796 = vmatprep.subr.mxu0 0.0
    %797 = vmatpush1.xpose.msra.mxu0 0.0
    %798 = vmatprep.subr.mxu0 0.0
    %799 = vmatpush1.xpose.msra.mxu0 0.0
    %800 = vmatprep.subr.mxu0 0.0
    %801 = vmatpush1.xpose.msra.mxu0 0.0
    %802 = vmatprep.subr.mxu0 0.0
    %803 = vmatpush1.xpose.msra.mxu0 0.0
    %804 = vmatprep.subr.mxu0 0.0
    %805 = vmatpush1.xpose.msra.mxu0 0.0
    %806 = vmatprep.subr.mxu0 0.0
    %807 = vmatpush1.xpose.msra.mxu0 0.0
    %808 = vmatprep.subr.mxu0 0.0
    %809 = vmatpush1.xpose.msra.mxu0 0.0
    %810 = vmatprep.subr.mxu0 0.0
    %811 = vmatpush1.xpose.msra.mxu0 0.0
    %812 = vmatprep.subr.mxu0 0.0
    %813 = vmatpush1.xpose.msra.mxu0 0.0
    %814 = vmatprep.subr.mxu0 0.0
    %815 = vmatpush1.xpose.msra.mxu0 0.0
    %816 = vmatprep.subr.mxu0 0.0
    %817 = vmatpush1.xpose.msra.mxu0 0.0
    %818 = vmatprep.subr.mxu0 0.0
    %819 = vmatpush1.xpose.msra.mxu0 0.0
    %820 = vmatprep.subr.mxu0 0.0
    %821 = vmatpush1.xpose.msra.mxu0 0.0
    %822 = vmatprep.subr.mxu0 0.0
    %823 = vmatpush1.xpose.msra.mxu0 0.0
    %824 = vmatprep.subr.mxu0 0.0
    %825 = vmatpush1.xpose.msra.mxu0 0.0
    %826 = vmatprep.subr.mxu0 0.0
    %827 = vmatpush1.xpose.msra.mxu0 0.0
    %828 = vmatprep.subr.mxu0 0.0
    %829 = vmatpush1.xpose.msra.mxu0 0.0
    %830 = vmatprep.subr.mxu0 0.0
    %831 = vmatpush1.xpose.msra.mxu0 0.0
    %832 = vmatprep.subr.mxu0 0.0
    %833 = vmatpush1.xpose.msra.mxu0 0.0
    %834 = vmatprep.subr.mxu0 0.0
    %835 = vmatpush1.xpose.msra.mxu0 0.0
    %836 = vmatprep.subr.mxu0 0.0
    %837 = vmatpush1.xpose.msra.mxu0 0.0
    %838 = vmatprep.subr.mxu0 0.0
    %839 = vmatpush1.xpose.msra.mxu0 0.0
    %840 = vmatprep.subr.mxu0 0.0
    %841 = vmatpush1.xpose.msra.mxu0 0.0
    %842 = vmatprep.subr.mxu0 0.0
    %843 = vmatpush1.xpose.msra.mxu0 0.0
    %844 = vmatprep.mubr.f32.mxu0 0.0
    %845 = vmatmul.mubr.f32.gmra.mrb[0].mxu0 %v776
    %v846 = vpop.f32.mrb[0].mxu0
    %v847 = vadd.f32 %v184, %v846
    %v848 = vpop.f32.mrb[0].mxu0
    %849 = vdwg.mxu0
    %v850 = vsel %vm479, %v440, 0
    %v852 = vsel %vm479, %v454, 0
    %854 = vmatprep.subr.mxu0 0.0
    %855 = vmatpush1.xpose.msra.mxu0 %v852
    %856 = vmatprep.subr.mxu0 0.0
    %857 = vmatpush1.xpose.msra.mxu0 0.0
    %858 = vmatprep.subr.mxu0 0.0
    %859 = vmatpush1.xpose.msra.mxu0 0.0
    %860 = vmatprep.subr.mxu0 0.0
    %861 = vmatpush1.xpose.msra.mxu0 0.0
    %862 = vmatprep.subr.mxu0 0.0
    %863 = vmatpush1.xpose.msra.mxu0 0.0
    %864 = vmatprep.subr.mxu0 0.0
    %865 = vmatpush1.xpose.msra.mxu0 0.0
    %866 = vmatprep.subr.mxu0 0.0
    %867 = vmatpush1.xpose.msra.mxu0 0.0
    %868 = vmatprep.subr.mxu0 0.0
    %869 = vmatpush1.xpose.msra.mxu0 0.0
    %870 = vmatprep.subr.mxu0 0.0
    %871 = vmatpush1.xpose.msra.mxu0 0.0
    %872 = vmatprep.subr.mxu0 0.0
    %873 = vmatpush1.xpose.msra.mxu0 0.0
    %874 = vmatprep.subr.mxu0 0.0
    %875 = vmatpush1.xpose.msra.mxu0 0.0
    %876 = vmatprep.subr.mxu0 0.0
    %877 = vmatpush1.xpose.msra.mxu0 0.0
    %878 = vmatprep.subr.mxu0 0.0
    %879 = vmatpush1.xpose.msra.mxu0 0.0
    %880 = vmatprep.subr.mxu0 0.0
    %881 = vmatpush1.xpose.msra.mxu0 0.0
    %882 = vmatprep.subr.mxu0 0.0
    %883 = vmatpush1.xpose.msra.mxu0 0.0
    %884 = vmatprep.subr.mxu0 0.0
    %885 = vmatpush1.xpose.msra.mxu0 0.0
    %886 = vmatprep.subr.mxu0 0.0
    %887 = vmatpush1.xpose.msra.mxu0 0.0
    %888 = vmatprep.subr.mxu0 0.0
    %889 = vmatpush1.xpose.msra.mxu0 0.0
    %890 = vmatprep.subr.mxu0 0.0
    %891 = vmatpush1.xpose.msra.mxu0 0.0
    %892 = vmatprep.subr.mxu0 0.0
    %893 = vmatpush1.xpose.msra.mxu0 0.0
    %894 = vmatprep.subr.mxu0 0.0
    %895 = vmatpush1.xpose.msra.mxu0 0.0
    %896 = vmatprep.subr.mxu0 0.0
    %897 = vmatpush1.xpose.msra.mxu0 0.0
    %898 = vmatprep.subr.mxu0 0.0
    %899 = vmatpush1.xpose.msra.mxu0 0.0
    %900 = vmatprep.subr.mxu0 0.0
    %901 = vmatpush1.xpose.msra.mxu0 0.0
    %902 = vmatprep.subr.mxu0 0.0
    %903 = vmatpush1.xpose.msra.mxu0 0.0
    %904 = vmatprep.subr.mxu0 0.0
    %905 = vmatpush1.xpose.msra.mxu0 0.0
    %906 = vmatprep.subr.mxu0 0.0
    %907 = vmatpush1.xpose.msra.mxu0 0.0
    %908 = vmatprep.subr.mxu0 0.0
    %909 = vmatpush1.xpose.msra.mxu0 0.0
    %910 = vmatprep.subr.mxu0 0.0
    %911 = vmatpush1.xpose.msra.mxu0 0.0
    %912 = vmatprep.subr.mxu0 0.0
    %913 = vmatpush1.xpose.msra.mxu0 0.0
    %914 = vmatprep.subr.mxu0 0.0
    %915 = vmatpush1.xpose.msra.mxu0 0.0
    %916 = vmatprep.subr.mxu0 0.0
    %917 = vmatpush1.xpose.msra.mxu0 0.0
    %918 = vmatprep.mubr.f32.mxu0 0.0
    %919 = vmatmul.mubr.f32.gmra.mrb[0].mxu0 %v850
    %v920 = vpop.f32.mrb[0].mxu0
    %v921 = vadd.f32 %v185, %v920
    %v922 = vpop.f32.mrb[0].mxu0
    %923 = vdwg.mxu0
    %v924 = vsel %vm479, %v442, 0
    %v926 = vsel %vm479, %v456, 0
    %928 = vmatprep.subr.mxu0 0.0
    %929 = vmatpush1.xpose.msra.mxu0 %v926
    %930 = vmatprep.subr.mxu0 0.0
    %931 = vmatpush1.xpose.msra.mxu0 0.0
    %932 = vmatprep.subr.mxu0 0.0
    %933 = vmatpush1.xpose.msra.mxu0 0.0
    %934 = vmatprep.subr.mxu0 0.0
    %935 = vmatpush1.xpose.msra.mxu0 0.0
    %936 = vmatprep.subr.mxu0 0.0
    %937 = vmatpush1.xpose.msra.mxu0 0.0
    %938 = vmatprep.subr.mxu0 0.0
    %939 = vmatpush1.xpose.msra.mxu0 0.0
    %940 = vmatprep.subr.mxu0 0.0
    %941 = vmatpush1.xpose.msra.mxu0 0.0
    %942 = vmatprep.subr.mxu0 0.0
    %943 = vmatpush1.xpose.msra.mxu0 0.0
    %944 = vmatprep.subr.mxu0 0.0
    %945 = vmatpush1.xpose.msra.mxu0 0.0
    %946 = vmatprep.subr.mxu0 0.0
    %947 = vmatpush1.xpose.msra.mxu0 0.0
    %948 = vmatprep.subr.mxu0 0.0
    %949 = vmatpush1.xpose.msra.mxu0 0.0
    %950 = vmatprep.subr.mxu0 0.0
    %951 = vmatpush1.xpose.msra.mxu0 0.0
    %952 = vmatprep.subr.mxu0 0.0
    %953 = vmatpush1.xpose.msra.mxu0 0.0
    %954 = vmatprep.subr.mxu0 0.0
    %955 = vmatpush1.xpose.msra.mxu0 0.0
    %956 = vmatprep.subr.mxu0 0.0
    %957 = vmatpush1.xpose.msra.mxu0 0.0
    %958 = vmatprep.subr.mxu0 0.0
    %959 = vmatpush1.xpose.msra.mxu0 0.0
    %960 = vmatprep.subr.mxu0 0.0
    %961 = vmatpush1.xpose.msra.mxu0 0.0
    %962 = vmatprep.subr.mxu0 0.0
    %963 = vmatpush1.xpose.msra.mxu0 0.0
    %964 = vmatprep.subr.mxu0 0.0
    %965 = vmatpush1.xpose.msra.mxu0 0.0
    %966 = vmatprep.subr.mxu0 0.0
    %967 = vmatpush1.xpose.msra.mxu0 0.0
    %968 = vmatprep.subr.mxu0 0.0
    %969 = vmatpush1.xpose.msra.mxu0 0.0
    %970 = vmatprep.subr.mxu0 0.0
    %971 = vmatpush1.xpose.msra.mxu0 0.0
    %972 = vmatprep.subr.mxu0 0.0
    %973 = vmatpush1.xpose.msra.mxu0 0.0
    %974 = vmatprep.subr.mxu0 0.0
    %975 = vmatpush1.xpose.msra.mxu0 0.0
    %976 = vmatprep.subr.mxu0 0.0
    %977 = vmatpush1.xpose.msra.mxu0 0.0
    %978 = vmatprep.subr.mxu0 0.0
    %979 = vmatpush1.xpose.msra.mxu0 0.0
    %980 = vmatprep.subr.mxu0 0.0
    %981 = vmatpush1.xpose.msra.mxu0 0.0
    %982 = vmatprep.subr.mxu0 0.0
    %983 = vmatpush1.xpose.msra.mxu0 0.0
    %984 = vmatprep.subr.mxu0 0.0
    %985 = vmatpush1.xpose.msra.mxu0 0.0
    %986 = vmatprep.subr.mxu0 0.0
    %987 = vmatpush1.xpose.msra.mxu0 0.0
    %988 = vmatprep.subr.mxu0 0.0
    %989 = vmatpush1.xpose.msra.mxu0 0.0
    %990 = vmatprep.subr.mxu0 0.0
    %991 = vmatpush1.xpose.msra.mxu0 0.0
    %992 = vmatprep.mubr.f32.mxu0 0.0
    %993 = vmatmul.mubr.f32.gmra.mrb[0].mxu0 %v924
    %v994 = vpop.f32.mrb[0].mxu0
    %v995 = vadd.f32 %v186, %v994
    %v996 = vpop.f32.mrb[0].mxu0
    %997 = vdwg.mxu0
    %v998 = vsel %vm479, %v444, 0
    %v1000 = vsel %vm479, %v458, 0
    %1002 = vmatprep.subr.mxu0 0.0
    %1003 = vmatpush1.xpose.msra.mxu0 %v1000
    %1004 = vmatprep.subr.mxu0 0.0
    %1005 = vmatpush1.xpose.msra.mxu0 0.0
    %1006 = vmatprep.subr.mxu0 0.0
    %1007 = vmatpush1.xpose.msra.mxu0 0.0
    %1008 = vmatprep.subr.mxu0 0.0
    %1009 = vmatpush1.xpose.msra.mxu0 0.0
    %1010 = vmatprep.subr.mxu0 0.0
    %1011 = vmatpush1.xpose.msra.mxu0 0.0
    %1012 = vmatprep.subr.mxu0 0.0
    %1013 = vmatpush1.xpose.msra.mxu0 0.0
    %1014 = vmatprep.subr.mxu0 0.0
    %1015 = vmatpush1.xpose.msra.mxu0 0.0
    %1016 = vmatprep.subr.mxu0 0.0
    %1017 = vmatpush1.xpose.msra.mxu0 0.0
    %1018 = vmatprep.subr.mxu0 0.0
    %1019 = vmatpush1.xpose.msra.mxu0 0.0
    %1020 = vmatprep.subr.mxu0 0.0
    %1021 = vmatpush1.xpose.msra.mxu0 0.0
    %1022 = vmatprep.subr.mxu0 0.0
    %1023 = vmatpush1.xpose.msra.mxu0 0.0
    %1024 = vmatprep.subr.mxu0 0.0
    %1025 = vmatpush1.xpose.msra.mxu0 0.0
    %1026 = vmatprep.subr.mxu0 0.0
    %1027 = vmatpush1.xpose.msra.mxu0 0.0
    %1028 = vmatprep.subr.mxu0 0.0
    %1029 = vmatpush1.xpose.msra.mxu0 0.0
    %1030 = vmatprep.subr.mxu0 0.0
    %1031 = vmatpush1.xpose.msra.mxu0 0.0
    %1032 = vmatprep.subr.mxu0 0.0
    %1033 = vmatpush1.xpose.msra.mxu0 0.0
    %1034 = vmatprep.subr.mxu0 0.0
    %1035 = vmatpush1.xpose.msra.mxu0 0.0
    %1036 = vmatprep.subr.mxu0 0.0
    %1037 = vmatpush1.xpose.msra.mxu0 0.0
    %1038 = vmatprep.subr.mxu0 0.0
    %1039 = vmatpush1.xpose.msra.mxu0 0.0
    %1040 = vmatprep.subr.mxu0 0.0
    %1041 = vmatpush1.xpose.msra.mxu0 0.0
    %1042 = vmatprep.subr.mxu0 0.0
    %1043 = vmatpush1.xpose.msra.mxu0 0.0
    %1044 = vmatprep.subr.mxu0 0.0
    %1045 = vmatpush1.xpose.msra.mxu0 0.0
    %1046 = vmatprep.subr.mxu0 0.0
    %1047 = vmatpush1.xpose.msra.mxu0 0.0
    %1048 = vmatprep.subr.mxu0 0.0
    %1049 = vmatpush1.xpose.msra.mxu0 0.0
    %1050 = vmatprep.subr.mxu0 0.0
    %1051 = vmatpush1.xpose.msra.mxu0 0.0
    %1052 = vmatprep.subr.mxu0 0.0
    %1053 = vmatpush1.xpose.msra.mxu0 0.0
    %1054 = vmatprep.subr.mxu0 0.0
    %1055 = vmatpush1.xpose.msra.mxu0 0.0
    %1056 = vmatprep.subr.mxu0 0.0
    %1057 = vmatpush1.xpose.msra.mxu0 0.0
    %1058 = vmatprep.subr.mxu0 0.0
    %1059 = vmatpush1.xpose.msra.mxu0 0.0
    %1060 = vmatprep.subr.mxu0 0.0
    %1061 = vmatpush1.xpose.msra.mxu0 0.0
    %1062 = vmatprep.subr.mxu0 0.0
    %1063 = vmatpush1.xpose.msra.mxu0 0.0
    %1064 = vmatprep.subr.mxu0 0.0
    %1065 = vmatpush1.xpose.msra.mxu0 0.0
    %1066 = vmatprep.mubr.f32.mxu0 0.0
    %1067 = vmatmul.mubr.f32.gmra.mrb[0].mxu0 %v998
    %v1068 = vpop.f32.mrb[0].mxu0
    %v1069 = vadd.f32 %v187, %v1068
    %v1070 = vpop.f32.mrb[0].mxu0
    %1071 = vdwg.mxu0
    %v1072 = vsel %vm479, %v551, -inf
    %1073 = vmax.xlane.f32.xlu0 %v1072
    %v1074 = vpop.xlane.xlu0 %1073
    %v1075 = vsel %vm479, %v625, -inf
    %1076 = vmax.xlane.f32.xlu0 %v1075
    %v1077 = vpop.xlane.xlu0 %1076
    %v1078 = vsel %vm479, %v699, -inf
    %1079 = vmax.xlane.f32.xlu0 %v1078
    %v1080 = vpop.xlane.xlu0 %1079
    %v1081 = vsel %vm479, %v773, -inf
    %1082 = vmax.xlane.f32.xlu0 %v1081
    %v1083 = vpop.xlane.xlu0 %1082
    %v1084 = vsel %vm479, %v847, -inf
    %1085 = vmax.xlane.f32.xlu0 %v1084
    %v1086 = vpop.xlane.xlu0 %1085
    %v1087 = vsel %vm479, %v921, -inf
    %1088 = vmax.xlane.f32.xlu0 %v1087
    %v1089 = vpop.xlane.xlu0 %1088
    %v1090 = vsel %vm479, %v995, -inf
    %1091 = vmax.xlane.f32.xlu0 %v1090
    %v1092 = vpop.xlane.xlu0 %1091
    %v1093 = vsel %vm479, %v1069, -inf
    %1094 = vmax.xlane.f32.xlu0 %v1093
    %v1095 = vpop.xlane.xlu0 %1094
    %v1096 = vsub.f32 %v551, %v1074
    %v1097 = vsub.f32 %v625, %v1077
    %v1098 = vsub.f32 %v699, %v1080
    %v1099 = vsub.f32 %v773, %v1083
    %v1100 = vsub.f32 %v847, %v1086
    %v1101 = vsub.f32 %v921, %v1089
    %v1102 = vsub.f32 %v995, %v1092
    %v1103 = vsub.f32 %v1069, %v1095
    %v1104 = vmul.f32 %v1096, 1.442695
    %v1105 = vpow.pop %v1104
    %v1106 = vmul.f32 %v1097, 1.442695
    %v1107 = vpow.pop %v1106
    %v1108 = vmul.f32 %v1098, 1.442695
    %v1109 = vpow.pop %v1108
    %v1110 = vmul.f32 %v1099, 1.442695
    %v1111 = vpow.pop %v1110
    %v1112 = vmul.f32 %v1100, 1.442695
    %v1113 = vpow.pop %v1112
    %v1114 = vmul.f32 %v1101, 1.442695
    %v1115 = vpow.pop %v1114
    %v1116 = vmul.f32 %v1102, 1.442695
    %v1117 = vpow.pop %v1116
    %v1118 = vmul.f32 %v1103, 1.442695
    %v1119 = vpow.pop %v1118
    %v1120 = vsel %vm479, %v1105, 0.0
    %1121 = vadd.xlane.f32.xlu0 %v1120
    %v1122 = vpop.xlane.xlu0 %1121
    %v1123 = vsel %vm479, %v1107, 0.0
    %1124 = vadd.xlane.f32.xlu0 %v1123
    %v1125 = vpop.xlane.xlu0 %1124
    %v1126 = vsel %vm479, %v1109, 0.0
    %1127 = vadd.xlane.f32.xlu0 %v1126
    %v1128 = vpop.xlane.xlu0 %1127
    %v1129 = vsel %vm479, %v1111, 0.0
    %1130 = vadd.xlane.f32.xlu0 %v1129
    %v1131 = vpop.xlane.xlu0 %1130
    %v1132 = vsel %vm479, %v1113, 0.0
    %1133 = vadd.xlane.f32.xlu0 %v1132
    %v1134 = vpop.xlane.xlu0 %1133
    %v1135 = vsel %vm479, %v1115, 0.0
    %1136 = vadd.xlane.f32.xlu0 %v1135
    %v1137 = vpop.xlane.xlu0 %1136
    %v1138 = vsel %vm479, %v1117, 0.0
    %1139 = vadd.xlane.f32.xlu0 %v1138
    %v1140 = vpop.xlane.xlu0 %1139
    %v1141 = vsel %vm479, %v1119, 0.0
    %1142 = vadd.xlane.f32.xlu0 %v1141
    %v1143 = vpop.xlane.xlu0 %1142
    %v1144 = vrcp.pop %v1122
    %v1145 = vrcp.pop %v1125
    %v1146 = vrcp.pop %v1128
    %v1147 = vrcp.pop %v1131
    %v1148 = vrcp.pop %v1134
    %v1149 = vrcp.pop %v1137
    %v1150 = vrcp.pop %v1140
    %v1151 = vrcp.pop %v1143
    %v1152 = vmul.f32 %v1105, %v1144
    %v1153 = vmul.f32 %v1107, %v1145
    %v1154 = vmul.f32 %v1109, %v1146
    %v1155 = vmul.f32 %v1111, %v1147
    %v1156 = vmul.f32 %v1113, %v1148
    %v1157 = vmul.f32 %v1115, %v1149
    %v1158 = vmul.f32 %v1117, %v1150
    %v1159 = vmul.f32 %v1119, %v1151
    %v1161 = vsel %vm479, %v1152, 0
    %1163 = vmatprep.subr.mxu0 0.0
    %1164 = vmatpush1.msra.mxu0 %v423
    %1165 = vmatprep.subr.mxu0 0.0
    %1166 = vmatpush1.msra.mxu0 0.0
    %1167 = vmatprep.subr.mxu0 0.0
    %1168 = vmatpush1.msra.mxu0 0.0
    %1169 = vmatprep.subr.mxu0 0.0
    %1170 = vmatpush1.msra.mxu0 0.0
    %1171 = vmatprep.subr.mxu0 0.0
    %1172 = vmatpush1.msra.mxu0 0.0
    %1173 = vmatprep.subr.mxu0 0.0
    %1174 = vmatpush1.msra.mxu0 0.0
    %1175 = vmatprep.subr.mxu0 0.0
    %1176 = vmatpush1.msra.mxu0 0.0
    %1177 = vmatprep.subr.mxu0 0.0
    %1178 = vmatpush1.msra.mxu0 0.0
    %1179 = vmatprep.subr.mxu0 0.0
    %1180 = vmatpush1.msra.mxu0 0.0
    %1181 = vmatprep.subr.mxu0 0.0
    %1182 = vmatpush1.msra.mxu0 0.0
    %1183 = vmatprep.subr.mxu0 0.0
    %1184 = vmatpush1.msra.mxu0 0.0
    %1185 = vmatprep.subr.mxu0 0.0
    %1186 = vmatpush1.msra.mxu0 0.0
    %1187 = vmatprep.subr.mxu0 0.0
    %1188 = vmatpush1.msra.mxu0 0.0
    %1189 = vmatprep.subr.mxu0 0.0
    %1190 = vmatpush1.msra.mxu0 0.0
    %1191 = vmatprep.subr.mxu0 0.0
    %1192 = vmatpush1.msra.mxu0 0.0
    %1193 = vmatprep.subr.mxu0 0.0
    %1194 = vmatpush1.msra.mxu0 0.0
    %1195 = vmatprep.subr.mxu0 0.0
    %1196 = vmatpush1.msra.mxu0 0.0
    %1197 = vmatprep.subr.mxu0 0.0
    %1198 = vmatpush1.msra.mxu0 0.0
    %1199 = vmatprep.subr.mxu0 0.0
    %1200 = vmatpush1.msra.mxu0 0.0
    %1201 = vmatprep.subr.mxu0 0.0
    %1202 = vmatpush1.msra.mxu0 0.0
    %1203 = vmatprep.subr.mxu0 0.0
    %1204 = vmatpush1.msra.mxu0 0.0
    %1205 = vmatprep.subr.mxu0 0.0
    %1206 = vmatpush1.msra.mxu0 0.0
    %1207 = vmatprep.subr.mxu0 0.0
    %1208 = vmatpush1.msra.mxu0 0.0
    %1209 = vmatprep.subr.mxu0 0.0
    %1210 = vmatpush1.msra.mxu0 0.0
    %1211 = vmatprep.subr.mxu0 0.0
    %1212 = vmatpush1.msra.mxu0 0.0
    %1213 = vmatprep.subr.mxu0 0.0
    %1214 = vmatpush1.msra.mxu0 0.0
    %1215 = vmatprep.subr.mxu0 0.0
    %1216 = vmatpush1.msra.mxu0 0.0
    %1217 = vmatprep.subr.mxu0 0.0
    %1218 = vmatpush1.msra.mxu0 0.0
    %1219 = vmatprep.subr.mxu0 0.0
    %1220 = vmatpush1.msra.mxu0 0.0
    %1221 = vmatprep.subr.mxu0 0.0
    %1222 = vmatpush1.msra.mxu0 0.0
    %1223 = vmatprep.subr.mxu0 0.0
    %1224 = vmatpush1.msra.mxu0 0.0
    %1225 = vmatprep.subr.mxu0 0.0
    %1226 = vmatpush1.msra.mxu0 0.0
    %1227 = vmatprep.mubr.f32.mxu0 0.0
    %1228 = vmatmul.mubr.f32.gmra.mrb[0].mxu0 %v1161
    %v1229 = vpop.f32.mrb[0].mxu0
    %v1230 = vadd.f32 0.0, %v1229
    %v1231 = vpop.f32.mrb[0].mxu0
    %1232 = vdwg.mxu0
    %v1234 = vsel %vm479, %v1153, 0
    %1236 = vmatprep.subr.mxu0 0.0
    %1237 = vmatpush1.msra.mxu0 %v428
    %1238 = vmatprep.subr.mxu0 0.0
    %1239 = vmatpush1.msra.mxu0 0.0
    %1240 = vmatprep.subr.mxu0 0.0
    %1241 = vmatpush1.msra.mxu0 0.0
    %1242 = vmatprep.subr.mxu0 0.0
    %1243 = vmatpush1.msra.mxu0 0.0
    %1244 = vmatprep.subr.mxu0 0.0
    %1245 = vmatpush1.msra.mxu0 0.0
    %1246 = vmatprep.subr.mxu0 0.0
    %1247 = vmatpush1.msra.mxu0 0.0
    %1248 = vmatprep.subr.mxu0 0.0
    %1249 = vmatpush1.msra.mxu0 0.0
    %1250 = vmatprep.subr.mxu0 0.0
    %1251 = vmatpush1.msra.mxu0 0.0
    %1252 = vmatprep.subr.mxu0 0.0
    %1253 = vmatpush1.msra.mxu0 0.0
    %1254 = vmatprep.subr.mxu0 0.0
    %1255 = vmatpush1.msra.mxu0 0.0
    %1256 = vmatprep.subr.mxu0 0.0
    %1257 = vmatpush1.msra.mxu0 0.0
    %1258 = vmatprep.subr.mxu0 0.0
    %1259 = vmatpush1.msra.mxu0 0.0
    %1260 = vmatprep.subr.mxu0 0.0
    %1261 = vmatpush1.msra.mxu0 0.0
    %1262 = vmatprep.subr.mxu0 0.0
    %1263 = vmatpush1.msra.mxu0 0.0
    %1264 = vmatprep.subr.mxu0 0.0
    %1265 = vmatpush1.msra.mxu0 0.0
    %1266 = vmatprep.subr.mxu0 0.0
    %1267 = vmatpush1.msra.mxu0 0.0
    %1268 = vmatprep.subr.mxu0 0.0
    %1269 = vmatpush1.msra.mxu0 0.0
    %1270 = vmatprep.subr.mxu0 0.0
    %1271 = vmatpush1.msra.mxu0 0.0
    %1272 = vmatprep.subr.mxu0 0.0
    %1273 = vmatpush1.msra.mxu0 0.0
    %1274 = vmatprep.subr.mxu0 0.0
    %1275 = vmatpush1.msra.mxu0 0.0
    %1276 = vmatprep.subr.mxu0 0.0
    %1277 = vmatpush1.msra.mxu0 0.0
    %1278 = vmatprep.subr.mxu0 0.0
    %1279 = vmatpush1.msra.mxu0 0.0
    %1280 = vmatprep.subr.mxu0 0.0
    %1281 = vmatpush1.msra.mxu0 0.0
    %1282 = vmatprep.subr.mxu0 0.0
    %1283 = vmatpush1.msra.mxu0 0.0
    %1284 = vmatprep.subr.mxu0 0.0
    %1285 = vmatpush1.msra.mxu0 0.0
    %1286 = vmatprep.subr.mxu0 0.0
    %1287 = vmatpush1.msra.mxu0 0.0
    %1288 = vmatprep.subr.mxu0 0.0
    %1289 = vmatpush1.msra.mxu0 0.0
    %1290 = vmatprep.subr.mxu0 0.0
    %1291 = vmatpush1.msra.mxu0 0.0
    %1292 = vmatprep.subr.mxu0 0.0
    %1293 = vmatpush1.msra.mxu0 0.0
    %1294 = vmatprep.subr.mxu0 0.0
    %1295 = vmatpush1.msra.mxu0 0.0
    %1296 = vmatprep.subr.mxu0 0.0
    %1297 = vmatpush1.msra.mxu0 0.0
    %1298 = vmatprep.subr.mxu0 0.0
    %1299 = vmatpush1.msra.mxu0 0.0
    %1300 = vmatprep.mubr.f32.mxu0 0.0
    %1301 = vmatmul.mubr.f32.gmra.mrb[0].mxu0 %v1234
    %v1302 = vpop.f32.mrb[0].mxu0
    %v1303 = vadd.f32 0.0, %v1302
    %v1304 = vpop.f32.mrb[0].mxu0
    %1305 = vdwg.mxu0
    %v1307 = vsel %vm479, %v1154, 0
    %1309 = vmatprep.subr.mxu0 0.0
    %1310 = vmatpush1.msra.mxu0 %v462
    %1311 = vmatprep.subr.mxu0 0.0
    %1312 = vmatpush1.msra.mxu0 0.0
    %1313 = vmatprep.subr.mxu0 0.0
    %1314 = vmatpush1.msra.mxu0 0.0
    %1315 = vmatprep.subr.mxu0 0.0
    %1316 = vmatpush1.msra.mxu0 0.0
    %1317 = vmatprep.subr.mxu0 0.0
    %1318 = vmatpush1.msra.mxu0 0.0
    %1319 = vmatprep.subr.mxu0 0.0
    %1320 = vmatpush1.msra.mxu0 0.0
    %1321 = vmatprep.subr.mxu0 0.0
    %1322 = vmatpush1.msra.mxu0 0.0
    %1323 = vmatprep.subr.mxu0 0.0
    %1324 = vmatpush1.msra.mxu0 0.0
    %1325 = vmatprep.subr.mxu0 0.0
    %1326 = vmatpush1.msra.mxu0 0.0
    %1327 = vmatprep.subr.mxu0 0.0
    %1328 = vmatpush1.msra.mxu0 0.0
    %1329 = vmatprep.subr.mxu0 0.0
    %1330 = vmatpush1.msra.mxu0 0.0
    %1331 = vmatprep.subr.mxu0 0.0
    %1332 = vmatpush1.msra.mxu0 0.0
    %1333 = vmatprep.subr.mxu0 0.0
    %1334 = vmatpush1.msra.mxu0 0.0
    %1335 = vmatprep.subr.mxu0 0.0
    %1336 = vmatpush1.msra.mxu0 0.0
    %1337 = vmatprep.subr.mxu0 0.0
    %1338 = vmatpush1.msra.mxu0 0.0
    %1339 = vmatprep.subr.mxu0 0.0
    %1340 = vmatpush1.msra.mxu0 0.0
    %1341 = vmatprep.subr.mxu0 0.0
    %1342 = vmatpush1.msra.mxu0 0.0
    %1343 = vmatprep.subr.mxu0 0.0
    %1344 = vmatpush1.msra.mxu0 0.0
    %1345 = vmatprep.subr.mxu0 0.0
    %1346 = vmatpush1.msra.mxu0 0.0
    %1347 = vmatprep.subr.mxu0 0.0
    %1348 = vmatpush1.msra.mxu0 0.0
    %1349 = vmatprep.subr.mxu0 0.0
    %1350 = vmatpush1.msra.mxu0 0.0
    %1351 = vmatprep.subr.mxu0 0.0
    %1352 = vmatpush1.msra.mxu0 0.0
    %1353 = vmatprep.subr.mxu0 0.0
    %1354 = vmatpush1.msra.mxu0 0.0
    %1355 = vmatprep.subr.mxu0 0.0
    %1356 = vmatpush1.msra.mxu0 0.0
    %1357 = vmatprep.subr.mxu0 0.0
    %1358 = vmatpush1.msra.mxu0 0.0
    %1359 = vmatprep.subr.mxu0 0.0
    %1360 = vmatpush1.msra.mxu0 0.0
    %1361 = vmatprep.subr.mxu0 0.0
    %1362 = vmatpush1.msra.mxu0 0.0
    %1363 = vmatprep.subr.mxu0 0.0
    %1364 = vmatpush1.msra.mxu0 0.0
    %1365 = vmatprep.subr.mxu0 0.0
    %1366 = vmatpush1.msra.mxu0 0.0
    %1367 = vmatprep.subr.mxu0 0.0
    %1368 = vmatpush1.msra.mxu0 0.0
    %1369 = vmatprep.subr.mxu0 0.0
    %1370 = vmatpush1.msra.mxu0 0.0
    %1371 = vmatprep.subr.mxu0 0.0
    %1372 = vmatpush1.msra.mxu0 0.0
    %1373 = vmatprep.mubr.f32.mxu0 0.0
    %1374 = vmatmul.mubr.f32.gmra.mrb[0].mxu0 %v1307
    %v1375 = vpop.f32.mrb[0].mxu0
    %v1376 = vadd.f32 0.0, %v1375
    %v1377 = vpop.f32.mrb[0].mxu0
    %1378 = vdwg.mxu0
    %v1380 = vsel %vm479, %v1155, 0
    %1382 = vmatprep.subr.mxu0 0.0
    %1383 = vmatpush1.msra.mxu0 %v464
    %1384 = vmatprep.subr.mxu0 0.0
    %1385 = vmatpush1.msra.mxu0 0.0
    %1386 = vmatprep.subr.mxu0 0.0
    %1387 = vmatpush1.msra.mxu0 0.0
    %1388 = vmatprep.subr.mxu0 0.0
    %1389 = vmatpush1.msra.mxu0 0.0
    %1390 = vmatprep.subr.mxu0 0.0
    %1391 = vmatpush1.msra.mxu0 0.0
    %1392 = vmatprep.subr.mxu0 0.0
    %1393 = vmatpush1.msra.mxu0 0.0
    %1394 = vmatprep.subr.mxu0 0.0
    %1395 = vmatpush1.msra.mxu0 0.0
    %1396 = vmatprep.subr.mxu0 0.0
    %1397 = vmatpush1.msra.mxu0 0.0
    %1398 = vmatprep.subr.mxu0 0.0
    %1399 = vmatpush1.msra.mxu0 0.0
    %1400 = vmatprep.subr.mxu0 0.0
    %1401 = vmatpush1.msra.mxu0 0.0
    %1402 = vmatprep.subr.mxu0 0.0
    %1403 = vmatpush1.msra.mxu0 0.0
    %1404 = vmatprep.subr.mxu0 0.0
    %1405 = vmatpush1.msra.mxu0 0.0
    %1406 = vmatprep.subr.mxu0 0.0
    %1407 = vmatpush1.msra.mxu0 0.0
    %1408 = vmatprep.subr.mxu0 0.0
    %1409 = vmatpush1.msra.mxu0 0.0
    %1410 = vmatprep.subr.mxu0 0.0
    %1411 = vmatpush1.msra.mxu0 0.0
    %1412 = vmatprep.subr.mxu0 0.0
    %1413 = vmatpush1.msra.mxu0 0.0
    %1414 = vmatprep.subr.mxu0 0.0
    %1415 = vmatpush1.msra.mxu0 0.0
    %1416 = vmatprep.subr.mxu0 0.0
    %1417 = vmatpush1.msra.mxu0 0.0
    %1418 = vmatprep.subr.mxu0 0.0
    %1419 = vmatpush1.msra.mxu0 0.0
    %1420 = vmatprep.subr.mxu0 0.0
    %1421 = vmatpush1.msra.mxu0 0.0
    %1422 = vmatprep.subr.mxu0 0.0
    %1423 = vmatpush1.msra.mxu0 0.0
    %1424 = vmatprep.subr.mxu0 0.0
    %1425 = vmatpush1.msra.mxu0 0.0
    %1426 = vmatprep.subr.mxu0 0.0
    %1427 = vmatpush1.msra.mxu0 0.0
    %1428 = vmatprep.subr.mxu0 0.0
    %1429 = vmatpush1.msra.mxu0 0.0
    %1430 = vmatprep.subr.mxu0 0.0
    %1431 = vmatpush1.msra.mxu0 0.0
    %1432 = vmatprep.subr.mxu0 0.0
    %1433 = vmatpush1.msra.mxu0 0.0
    %1434 = vmatprep.subr.mxu0 0.0
    %1435 = vmatpush1.msra.mxu0 0.0
    %1436 = vmatprep.subr.mxu0 0.0
    %1437 = vmatpush1.msra.mxu0 0.0
    %1438 = vmatprep.subr.mxu0 0.0
    %1439 = vmatpush1.msra.mxu0 0.0
    %1440 = vmatprep.subr.mxu0 0.0
    %1441 = vmatpush1.msra.mxu0 0.0
    %1442 = vmatprep.subr.mxu0 0.0
    %1443 = vmatpush1.msra.mxu0 0.0
    %1444 = vmatprep.subr.mxu0 0.0
    %1445 = vmatpush1.msra.mxu0 0.0
    %1446 = vmatprep.mubr.f32.mxu0 0.0
    %1447 = vmatmul.mubr.f32.gmra.mrb[0].mxu0 %v1380
    %v1448 = vpop.f32.mrb[0].mxu0
    %v1449 = vadd.f32 0.0, %v1448
    %v1450 = vpop.f32.mrb[0].mxu0
    %1451 = vdwg.mxu0
    %v1453 = vsel %vm479, %v1156, 0
    %1455 = vmatprep.subr.mxu0 0.0
    %1456 = vmatpush1.msra.mxu0 %v468
    %1457 = vmatprep.subr.mxu0 0.0
    %1458 = vmatpush1.msra.mxu0 0.0
    %1459 = vmatprep.subr.mxu0 0.0
    %1460 = vmatpush1.msra.mxu0 0.0
    %1461 = vmatprep.subr.mxu0 0.0
    %1462 = vmatpush1.msra.mxu0 0.0
    %1463 = vmatprep.subr.mxu0 0.0
    %1464 = vmatpush1.msra.mxu0 0.0
    %1465 = vmatprep.subr.mxu0 0.0
    %1466 = vmatpush1.msra.mxu0 0.0
    %1467 = vmatprep.subr.mxu0 0.0
    %1468 = vmatpush1.msra.mxu0 0.0
    %1469 = vmatprep.subr.mxu0 0.0
    %1470 = vmatpush1.msra.mxu0 0.0
    %1471 = vmatprep.subr.mxu0 0.0
    %1472 = vmatpush1.msra.mxu0 0.0
    %1473 = vmatprep.subr.mxu0 0.0
    %1474 = vmatpush1.msra.mxu0 0.0
    %1475 = vmatprep.subr.mxu0 0.0
    %1476 = vmatpush1.msra.mxu0 0.0
    %1477 = vmatprep.subr.mxu0 0.0
    %1478 = vmatpush1.msra.mxu0 0.0
    %1479 = vmatprep.subr.mxu0 0.0
    %1480 = vmatpush1.msra.mxu0 0.0
    %1481 = vmatprep.subr.mxu0 0.0
    %1482 = vmatpush1.msra.mxu0 0.0
    %1483 = vmatprep.subr.mxu0 0.0
    %1484 = vmatpush1.msra.mxu0 0.0
    %1485 = vmatprep.subr.mxu0 0.0
    %1486 = vmatpush1.msra.mxu0 0.0
    %1487 = vmatprep.subr.mxu0 0.0
    %1488 = vmatpush1.msra.mxu0 0.0
    %1489 = vmatprep.subr.mxu0 0.0
    %1490 = vmatpush1.msra.mxu0 0.0
    %1491 = vmatprep.subr.mxu0 0.0
    %1492 = vmatpush1.msra.mxu0 0.0
    %1493 = vmatprep.subr.mxu0 0.0
    %1494 = vmatpush1.msra.mxu0 0.0
    %1495 = vmatprep.subr.mxu0 0.0
    %1496 = vmatpush1.msra.mxu0 0.0
    %1497 = vmatprep.subr.mxu0 0.0
    %1498 = vmatpush1.msra.mxu0 0.0
    %1499 = vmatprep.subr.mxu0 0.0
    %1500 = vmatpush1.msra.mxu0 0.0
    %1501 = vmatprep.subr.mxu0 0.0
    %1502 = vmatpush1.msra.mxu0 0.0
    %1503 = vmatprep.subr.mxu0 0.0
    %1504 = vmatpush1.msra.mxu0 0.0
    %1505 = vmatprep.subr.mxu0 0.0
    %1506 = vmatpush1.msra.mxu0 0.0
    %1507 = vmatprep.subr.mxu0 0.0
    %1508 = vmatpush1.msra.mxu0 0.0
    %1509 = vmatprep.subr.mxu0 0.0
    %1510 = vmatpush1.msra.mxu0 0.0
    %1511 = vmatprep.subr.mxu0 0.0
    %1512 = vmatpush1.msra.mxu0 0.0
    %1513 = vmatprep.subr.mxu0 0.0
    %1514 = vmatpush1.msra.mxu0 0.0
    %1515 = vmatprep.subr.mxu0 0.0
    %1516 = vmatpush1.msra.mxu0 0.0
    %1517 = vmatprep.subr.mxu0 0.0
    %1518 = vmatpush1.msra.mxu0 0.0
    %1519 = vmatprep.mubr.f32.mxu0 0.0
    %1520 = vmatmul.mubr.f32.gmra.mrb[0].mxu0 %v1453
    %v1521 = vpop.f32.mrb[0].mxu0
    %v1522 = vadd.f32 0.0, %v1521
    %v1523 = vpop.f32.mrb[0].mxu0
    %1524 = vdwg.mxu0
    %v1526 = vsel %vm479, %v1157, 0
    %1528 = vmatprep.subr.mxu0 0.0
    %1529 = vmatpush1.msra.mxu0 %v470
    %1530 = vmatprep.subr.mxu0 0.0
    %1531 = vmatpush1.msra.mxu0 0.0
    %1532 = vmatprep.subr.mxu0 0.0
    %1533 = vmatpush1.msra.mxu0 0.0
    %1534 = vmatprep.subr.mxu0 0.0
    %1535 = vmatpush1.msra.mxu0 0.0
    %1536 = vmatprep.subr.mxu0 0.0
    %1537 = vmatpush1.msra.mxu0 0.0
    %1538 = vmatprep.subr.mxu0 0.0
    %1539 = vmatpush1.msra.mxu0 0.0
    %1540 = vmatprep.subr.mxu0 0.0
    %1541 = vmatpush1.msra.mxu0 0.0
    %1542 = vmatprep.subr.mxu0 0.0
    %1543 = vmatpush1.msra.mxu0 0.0
    %1544 = vmatprep.subr.mxu0 0.0
    %1545 = vmatpush1.msra.mxu0 0.0
    %1546 = vmatprep.subr.mxu0 0.0
    %1547 = vmatpush1.msra.mxu0 0.0
    %1548 = vmatprep.subr.mxu0 0.0
    %1549 = vmatpush1.msra.mxu0 0.0
    %1550 = vmatprep.subr.mxu0 0.0
    %1551 = vmatpush1.msra.mxu0 0.0
    %1552 = vmatprep.subr.mxu0 0.0
    %1553 = vmatpush1.msra.mxu0 0.0
    %1554 = vmatprep.subr.mxu0 0.0
    %1555 = vmatpush1.msra.mxu0 0.0
    %1556 = vmatprep.subr.mxu0 0.0
    %1557 = vmatpush1.msra.mxu0 0.0
    %1558 = vmatprep.subr.mxu0 0.0
    %1559 = vmatpush1.msra.mxu0 0.0
    %1560 = vmatprep.subr.mxu0 0.0
    %1561 = vmatpush1.msra.mxu0 0.0
    %1562 = vmatprep.subr.mxu0 0.0
    %1563 = vmatpush1.msra.mxu0 0.0
    %1564 = vmatprep.subr.mxu0 0.0
    %1565 = vmatpush1.msra.mxu0 0.0
    %1566 = vmatprep.subr.mxu0 0.0
    %1567 = vmatpush1.msra.mxu0 0.0
    %1568 = vmatprep.subr.mxu0 0.0
    %1569 = vmatpush1.msra.mxu0 0.0
    %1570 = vmatprep.subr.mxu0 0.0
    %1571 = vmatpush1.msra.mxu0 0.0
    %1572 = vmatprep.subr.mxu0 0.0
    %1573 = vmatpush1.msra.mxu0 0.0
    %1574 = vmatprep.subr.mxu0 0.0
    %1575 = vmatpush1.msra.mxu0 0.0
    %1576 = vmatprep.subr.mxu0 0.0
    %1577 = vmatpush1.msra.mxu0 0.0
    %1578 = vmatprep.subr.mxu0 0.0
    %1579 = vmatpush1.msra.mxu0 0.0
    %1580 = vmatprep.subr.mxu0 0.0
    %1581 = vmatpush1.msra.mxu0 0.0
    %1582 = vmatprep.subr.mxu0 0.0
    %1583 = vmatpush1.msra.mxu0 0.0
    %1584 = vmatprep.subr.mxu0 0.0
    %1585 = vmatpush1.msra.mxu0 0.0
    %1586 = vmatprep.subr.mxu0 0.0
    %1587 = vmatpush1.msra.mxu0 0.0
    %1588 = vmatprep.subr.mxu0 0.0
    %1589 = vmatpush1.msra.mxu0 0.0
    %1590 = vmatprep.subr.mxu0 0.0
    %1591 = vmatpush1.msra.mxu0 0.0
    %1592 = vmatprep.mubr.f32.mxu0 0.0
    %1593 = vmatmul.mubr.f32.gmra.mrb[0].mxu0 %v1526
    %v1594 = vpop.f32.mrb[0].mxu0
    %v1595 = vadd.f32 0.0, %v1594
    %v1596 = vpop.f32.mrb[0].mxu0
    %1597 = vdwg.mxu0
    %v1599 = vsel %vm479, %v1158, 0
    %1601 = vmatprep.subr.mxu0 0.0
    %1602 = vmatpush1.msra.mxu0 %v474
    %1603 = vmatprep.subr.mxu0 0.0
    %1604 = vmatpush1.msra.mxu0 0.0
    %1605 = vmatprep.subr.mxu0 0.0
    %1606 = vmatpush1.msra.mxu0 0.0
    %1607 = vmatprep.subr.mxu0 0.0
    %1608 = vmatpush1.msra.mxu0 0.0
    %1609 = vmatprep.subr.mxu0 0.0
    %1610 = vmatpush1.msra.mxu0 0.0
    %1611 = vmatprep.subr.mxu0 0.0
    %1612 = vmatpush1.msra.mxu0 0.0
    %1613 = vmatprep.subr.mxu0 0.0
    %1614 = vmatpush1.msra.mxu0 0.0
    %1615 = vmatprep.subr.mxu0 0.0
    %1616 = vmatpush1.msra.mxu0 0.0
    %1617 = vmatprep.subr.mxu0 0.0
    %1618 = vmatpush1.msra.mxu0 0.0
    %1619 = vmatprep.subr.mxu0 0.0
    %1620 = vmatpush1.msra.mxu0 0.0
    %1621 = vmatprep.subr.mxu0 0.0
    %1622 = vmatpush1.msra.mxu0 0.0
    %1623 = vmatprep.subr.mxu0 0.0
    %1624 = vmatpush1.msra.mxu0 0.0
    %1625 = vmatprep.subr.mxu0 0.0
    %1626 = vmatpush1.msra.mxu0 0.0
    %1627 = vmatprep.subr.mxu0 0.0
    %1628 = vmatpush1.msra.mxu0 0.0
    %1629 = vmatprep.subr.mxu0 0.0
    %1630 = vmatpush1.msra.mxu0 0.0
    %1631 = vmatprep.subr.mxu0 0.0
    %1632 = vmatpush1.msra.mxu0 0.0
    %1633 = vmatprep.subr.mxu0 0.0
    %1634 = vmatpush1.msra.mxu0 0.0
    %1635 = vmatprep.subr.mxu0 0.0
    %1636 = vmatpush1.msra.mxu0 0.0
    %1637 = vmatprep.subr.mxu0 0.0
    %1638 = vmatpush1.msra.mxu0 0.0
    %1639 = vmatprep.subr.mxu0 0.0
    %1640 = vmatpush1.msra.mxu0 0.0
    %1641 = vmatprep.subr.mxu0 0.0
    %1642 = vmatpush1.msra.mxu0 0.0
    %1643 = vmatprep.subr.mxu0 0.0
    %1644 = vmatpush1.msra.mxu0 0.0
    %1645 = vmatprep.subr.mxu0 0.0
    %1646 = vmatpush1.msra.mxu0 0.0
    %1647 = vmatprep.subr.mxu0 0.0
    %1648 = vmatpush1.msra.mxu0 0.0
    %1649 = vmatprep.subr.mxu0 0.0
    %1650 = vmatpush1.msra.mxu0 0.0
    %1651 = vmatprep.subr.mxu0 0.0
    %1652 = vmatpush1.msra.mxu0 0.0
    %1653 = vmatprep.subr.mxu0 0.0
    %1654 = vmatpush1.msra.mxu0 0.0
    %1655 = vmatprep.subr.mxu0 0.0
    %1656 = vmatpush1.msra.mxu0 0.0
    %1657 = vmatprep.subr.mxu0 0.0
    %1658 = vmatpush1.msra.mxu0 0.0
    %1659 = vmatprep.subr.mxu0 0.0
    %1660 = vmatpush1.msra.mxu0 0.0
    %1661 = vmatprep.subr.mxu0 0.0
    %1662 = vmatpush1.msra.mxu0 0.0
    %1663 = vmatprep.subr.mxu0 0.0
    %1664 = vmatpush1.msra.mxu0 0.0
    %1665 = vmatprep.mubr.f32.mxu0 0.0
    %1666 = vmatmul.mubr.f32.gmra.mrb[0].mxu0 %v1599
    %v1667 = vpop.f32.mrb[0].mxu0
    %v1668 = vadd.f32 0.0, %v1667
    %v1669 = vpop.f32.mrb[0].mxu0
    %1670 = vdwg.mxu0
    %v1672 = vsel %vm479, %v1159, 0
    %1674 = vmatprep.subr.mxu0 0.0
    %1675 = vmatpush1.msra.mxu0 %v476
    %1676 = vmatprep.subr.mxu0 0.0
    %1677 = vmatpush1.msra.mxu0 0.0
    %1678 = vmatprep.subr.mxu0 0.0
    %1679 = vmatpush1.msra.mxu0 0.0
    %1680 = vmatprep.subr.mxu0 0.0
    %1681 = vmatpush1.msra.mxu0 0.0
    %1682 = vmatprep.subr.mxu0 0.0
    %1683 = vmatpush1.msra.mxu0 0.0
    %1684 = vmatprep.subr.mxu0 0.0
    %1685 = vmatpush1.msra.mxu0 0.0
    %1686 = vmatprep.subr.mxu0 0.0
    %1687 = vmatpush1.msra.mxu0 0.0
    %1688 = vmatprep.subr.mxu0 0.0
    %1689 = vmatpush1.msra.mxu0 0.0
    %1690 = vmatprep.subr.mxu0 0.0
    %1691 = vmatpush1.msra.mxu0 0.0
    %1692 = vmatprep.subr.mxu0 0.0
    %1693 = vmatpush1.msra.mxu0 0.0
    %1694 = vmatprep.subr.mxu0 0.0
    %1695 = vmatpush1.msra.mxu0 0.0
    %1696 = vmatprep.subr.mxu0 0.0
    %1697 = vmatpush1.msra.mxu0 0.0
    %1698 = vmatprep.subr.mxu0 0.0
    %1699 = vmatpush1.msra.mxu0 0.0
    %1700 = vmatprep.subr.mxu0 0.0
    %1701 = vmatpush1.msra.mxu0 0.0
    %1702 = vmatprep.subr.mxu0 0.0
    %1703 = vmatpush1.msra.mxu0 0.0
    %1704 = vmatprep.subr.mxu0 0.0
    %1705 = vmatpush1.msra.mxu0 0.0
    %1706 = vmatprep.subr.mxu0 0.0
    %1707 = vmatpush1.msra.mxu0 0.0
    %1708 = vmatprep.subr.mxu0 0.0
    %1709 = vmatpush1.msra.mxu0 0.0
    %1710 = vmatprep.subr.mxu0 0.0
    %1711 = vmatpush1.msra.mxu0 0.0
    %1712 = vmatprep.subr.mxu0 0.0
    %1713 = vmatpush1.msra.mxu0 0.0
    %1714 = vmatprep.subr.mxu0 0.0
    %1715 = vmatpush1.msra.mxu0 0.0
    %1716 = vmatprep.subr.mxu0 0.0
    %1717 = vmatpush1.msra.mxu0 0.0
    %1718 = vmatprep.subr.mxu0 0.0
    %1719 = vmatpush1.msra.mxu0 0.0
    %1720 = vmatprep.subr.mxu0 0.0
    %1721 = vmatpush1.msra.mxu0 0.0
    %1722 = vmatprep.subr.mxu0 0.0
    %1723 = vmatpush1.msra.mxu0 0.0
    %1724 = vmatprep.subr.mxu0 0.0
    %1725 = vmatpush1.msra.mxu0 0.0
    %1726 = vmatprep.subr.mxu0 0.0
    %1727 = vmatpush1.msra.mxu0 0.0
    %1728 = vmatprep.subr.mxu0 0.0
    %1729 = vmatpush1.msra.mxu0 0.0
    %1730 = vmatprep.subr.mxu0 0.0
    %1731 = vmatpush1.msra.mxu0 0.0
    %1732 = vmatprep.subr.mxu0 0.0
    %1733 = vmatpush1.msra.mxu0 0.0
    %1734 = vmatprep.subr.mxu0 0.0
    %1735 = vmatpush1.msra.mxu0 0.0
    %1736 = vmatprep.subr.mxu0 0.0
    %1737 = vmatpush1.msra.mxu0 0.0
    %1738 = vmatprep.mubr.f32.mxu0 0.0
    %1739 = vmatmul.mubr.f32.gmra.mrb[0].mxu0 %v1672
    %v1740 = vpop.f32.mrb[0].mxu0
    %v1741 = vadd.f32 0.0, %v1740
    %v1742 = vpop.f32.mrb[0].mxu0
    %1743 = vdwg.mxu0
    %1746 = vrot.lane.b32.xlu0 %v1376, 8
    %v1747 = vpop.permute.xlu0 %1746
    %1748 = vrot.lane.b32.xlu0 %v1449, 8
    %v1749 = vpop.permute.xlu0 %1748
    %1754 = vrot.lane.b32.xlu0 %v1522, 16
    %v1755 = vpop.permute.xlu0 %1754
    %1756 = vrot.lane.b32.xlu0 %v1595, 16
    %v1757 = vpop.permute.xlu0 %1756
    %1762 = vrot.lane.b32.xlu0 %v1668, 24
    %v1763 = vpop.permute.xlu0 %1762
    %1764 = vrot.lane.b32.xlu0 %v1741, 24
    %v1765 = vpop.permute.xlu0 %1764
    %v1768 = vsel %vm479, %v1230, %v1747
    %v1769 = vsel %vm479, %v1303, %v1749
    %vm1770 = vcmask 130048
    %v1771 = vsel %vm1770, %v1768, %v1755
    %v1772 = vsel %vm1770, %v1769, %v1757
    %vm1773 = vcmask 195584
    %v1774 = vsel %vm1773, %v1771, %v1763
    %v1775 = vsel %vm1773, %v1772, %v1765
    %v1776 = vlaneseq
    %v1777 = vshrl.u32 %v1776, 7
    %v1778 = vsub.s32 1, %v1777
    %v1779 = vrot.slane %v93, %v1778
    %v1781 = vsel %vm126, %v1774, 0
    %v1784 = vsel %vm126, %v1775, 0
    %1786 = vmatprep.subr.mxu0 0.0
    %1787 = vmatpush1.msra.mxu0 %v106
    %1788 = vmatprep.subr.mxu0 0.0
    %1789 = vmatpush1.msra.mxu0 %v107
    %1790 = vmatprep.subr.mxu0 0.0
    %1791 = vmatpush1.msra.mxu0 %v108
    %1792 = vmatprep.subr.mxu0 0.0
    %1793 = vmatpush1.msra.mxu0 %v109
    %1794 = vmatprep.subr.mxu0 0.0
    %1795 = vmatpush1.msra.mxu0 0.0
    %1796 = vmatprep.subr.mxu0 0.0
    %1797 = vmatpush1.msra.mxu0 0.0
    %1798 = vmatprep.subr.mxu0 0.0
    %1799 = vmatpush1.msra.mxu0 0.0
    %1800 = vmatprep.subr.mxu0 0.0
    %1801 = vmatpush1.msra.mxu0 0.0
    %1802 = vmatprep.subr.mxu0 0.0
    %1803 = vmatpush1.msra.mxu0 0.0
    %1804 = vmatprep.subr.mxu0 0.0
    %1805 = vmatpush1.msra.mxu0 0.0
    %1806 = vmatprep.subr.mxu0 0.0
    %1807 = vmatpush1.msra.mxu0 0.0
    %1808 = vmatprep.subr.mxu0 0.0
    %1809 = vmatpush1.msra.mxu0 0.0
    %1810 = vmatprep.subr.mxu0 0.0
    %1811 = vmatpush1.msra.mxu0 0.0
    %1812 = vmatprep.subr.mxu0 0.0
    %1813 = vmatpush1.msra.mxu0 0.0
    %1814 = vmatprep.subr.mxu0 0.0
    %1815 = vmatpush1.msra.mxu0 0.0
    %1816 = vmatprep.subr.mxu0 0.0
    %1817 = vmatpush1.msra.mxu0 0.0
    %1818 = vmatprep.subr.mxu0 0.0
    %1819 = vmatpush1.msra.mxu0 0.0
    %1820 = vmatprep.subr.mxu0 0.0
    %1821 = vmatpush1.msra.mxu0 0.0
    %1822 = vmatprep.subr.mxu0 0.0
    %1823 = vmatpush1.msra.mxu0 0.0
    %1824 = vmatprep.subr.mxu0 0.0
    %1825 = vmatpush1.msra.mxu0 0.0
    %1826 = vmatprep.subr.mxu0 0.0
    %1827 = vmatpush1.msra.mxu0 0.0
    %1828 = vmatprep.subr.mxu0 0.0
    %1829 = vmatpush1.msra.mxu0 0.0
    %1830 = vmatprep.subr.mxu0 0.0
    %1831 = vmatpush1.msra.mxu0 0.0
    %1832 = vmatprep.subr.mxu0 0.0
    %1833 = vmatpush1.msra.mxu0 0.0
    %1834 = vmatprep.subr.mxu0 0.0
    %1835 = vmatpush1.msra.mxu0 0.0
    %1836 = vmatprep.subr.mxu0 0.0
    %1837 = vmatpush1.msra.mxu0 0.0
    %1838 = vmatprep.subr.mxu0 0.0
    %1839 = vmatpush1.msra.mxu0 0.0
    %1840 = vmatprep.subr.mxu0 0.0
    %1841 = vmatpush1.msra.mxu0 0.0
    %1842 = vmatprep.subr.mxu0 0.0
    %1843 = vmatpush1.msra.mxu0 0.0
    %1844 = vmatprep.subr.mxu0 0.0
    %1845 = vmatpush1.msra.mxu0 0.0
    %1846 = vmatprep.subr.mxu0 0.0
    %1847 = vmatpush1.msra.mxu0 0.0
    %1848 = vmatprep.subr.mxu0 0.0
    %1849 = vmatpush1.msra.mxu0 0.0
    %1850 = vmatprep.mubr.f32.mxu0 0.0
    %1851 = vmatmul.mubr.f32.gmra.mrb[0].mxu0 %v1781
    %v1852 = vpop.f32.mrb[0].mxu0
    %v1853 = vadd.f32 %v1779, %v1852
    %v1854 = vpop.f32.mrb[0].mxu0
    %1855 = vmatprep.mubr.f32.mxu0 0.0
    %1856 = vmatmul.mubr.f32.gmra.mrb[0].mxu0 %v1784
    %v1857 = vpop.f32.mrb[0].mxu0
    %v1858 = vadd.f32 %v1779, %v1857
    %v1859 = vpop.f32.mrb[0].mxu0
    %1860 = vdwg.mxu0
    %v1861 = vadd.f32 %v88, %v1853
    %v1862 = vadd.f32 %v89, %v1858
    %v1863 = vsel %vm126, %v1861, 0.0
    %1864 = vadd.xlane.f32.xlu0 %v1863
    %v1865 = vpop.xlane.xlu0 %1864
    %v1866 = vsel %vm126, %v1862, 0.0
    %1867 = vadd.xlane.f32.xlu0 %v1866
    %v1868 = vpop.xlane.xlu0 %1867
    %v1869 = vmul.f32 %v1865, %v133
    %v1870 = vmul.f32 %v1868, %v133
    %v1871 = vsub.f32 %v1861, %v1869
    %v1872 = vsub.f32 %v1862, %v1870
    %v1873 = vmul.f32 %v1871, %v1871
    %v1874 = vmul.f32 %v1872, %v1872
    %v1875 = vsel %vm126, %v1873, 0.0
    %1876 = vadd.xlane.f32.xlu0 %v1875
    %v1877 = vpop.xlane.xlu0 %1876
    %v1878 = vsel %vm126, %v1874, 0.0
    %1879 = vadd.xlane.f32.xlu0 %v1878
    %v1880 = vpop.xlane.xlu0 %1879
    %v1881 = vmul.f32 %v1877, 0.032258064
    %v1882 = vmul.f32 %v1880, 0.032258064
    %v1883 = vrsqrt.pop %v1881
    %v1884 = vmul.f32 %v1881, %v1883
    %vm1885 = vcmp.eq.f32.partialorder %v1881, inf
    %v1886 = vsel %vm1885, %v1881, %v1884
    %vm1887 = vcmp.eq.f32.partialorder %v1881, 0.0
    %v1888 = vand.u32 %v1881, 2147483648
    %v1889 = vsel %vm1887, %v1888, %v1886
    %v1890 = vrsqrt.pop %v1882
    %v1891 = vmul.f32 %v1882, %v1890
    %vm1892 = vcmp.eq.f32.partialorder %v1882, inf
    %v1893 = vsel %vm1892, %v1882, %v1891
    %vm1894 = vcmp.eq.f32.partialorder %v1882, 0.0
    %v1895 = vand.u32 %v1882, 2147483648
    %v1896 = vsel %vm1894, %v1895, %v1893
    %v1897 = vadd.f32 %v1889, 1e-06
    %v1898 = vadd.f32 %v1896, 1e-06
    %v1899 = vrcp.pop %v1897
    %v1900 = vrcp.pop %v1898
    %v1901 = vlaneseq
    %v1902 = vshrl.u32 %v1901, 7
    %v1903 = vsub.s32 1, %v1902
    %v1904 = vrot.slane %v92, %v1903
    %v1905 = vmul.f32 %v1904, %v1871
    %v1906 = vmul.f32 %v1904, %v1872
    %v1907 = vmul.f32 %v1905, %v1899
    %v1908 = vmul.f32 %v1906, %v1900
    %v1909 = vlaneseq
    %v1910 = vshrl.u32 %v1909, 7
    %v1911 = vsub.s32 4, %v1910
    %v1912 = vrot.slane %v92, %v1911
    %v1913 = vadd.f32 %v1907, %v1912
    %v1914 = vadd.f32 %v1908, %v1912
    %v1915 = vld [vmem:[#allocation7] sm:$0xff]
    %v1916 = vld [vmem:[#allocation7 + $0x8] sm:$0xff]
    %v1917 = vld [vmem:[#allocation7 + $0x10] sm:$0xff]
    %v1918 = vld [vmem:[#allocation7 + $0x18] sm:$0xff]
    %v1919 = vld [vmem:[#allocation7 + $0x20] sm:$0xff]
    %v1920 = vld [vmem:[#allocation7 + $0x28] sm:$0xff]
    %v1921 = vld [vmem:[#allocation7 + $0x30] sm:$0xff]
    %v1922 = vld [vmem:[#allocation7 + $0x38] sm:$0xff]
    %v1923 = vlaneseq
    %v1924 = vshrl.u32 %v1923, 7
    %v1925 = vsub.s32 2, %v1924
    %v1926 = vrot.slane %v93, %v1925
    %v1928 = vsel %vm126, %v1913, 0
    %v1931 = vsel %vm126, %v1914, 0
    %1933 = vmatprep.subr.mxu0 0.0
    %1934 = vmatpush1.msra.mxu0 %v110
    %1935 = vmatprep.subr.mxu0 0.0
    %1936 = vmatpush1.msra.mxu0 %v111
    %1937 = vmatprep.subr.mxu0 0.0
    %1938 = vmatpush1.msra.mxu0 %v112
    %1939 = vmatprep.subr.mxu0 0.0
    %1940 = vmatpush1.msra.mxu0 %v113
    %1941 = vmatprep.subr.mxu0 0.0
    %1942 = vmatpush1.msra.mxu0 0.0
    %1943 = vmatprep.subr.mxu0 0.0
    %1944 = vmatpush1.msra.mxu0 0.0
    %1945 = vmatprep.subr.mxu0 0.0
    %1946 = vmatpush1.msra.mxu0 0.0
    %1947 = vmatprep.subr.mxu0 0.0
    %1948 = vmatpush1.msra.mxu0 0.0
    %1949 = vmatprep.subr.mxu0 0.0
    %1950 = vmatpush1.msra.mxu0 0.0
    %1951 = vmatprep.subr.mxu0 0.0
    %1952 = vmatpush1.msra.mxu0 0.0
    %1953 = vmatprep.subr.mxu0 0.0
    %1954 = vmatpush1.msra.mxu0 0.0
    %1955 = vmatprep.subr.mxu0 0.0
    %1956 = vmatpush1.msra.mxu0 0.0
    %1957 = vmatprep.subr.mxu0 0.0
    %1958 = vmatpush1.msra.mxu0 0.0
    %1959 = vmatprep.subr.mxu0 0.0
    %1960 = vmatpush1.msra.mxu0 0.0
    %1961 = vmatprep.subr.mxu0 0.0
    %1962 = vmatpush1.msra.mxu0 0.0
    %1963 = vmatprep.subr.mxu0 0.0
    %1964 = vmatpush1.msra.mxu0 0.0
    %1965 = vmatprep.subr.mxu0 0.0
    %1966 = vmatpush1.msra.mxu0 0.0
    %1967 = vmatprep.subr.mxu0 0.0
    %1968 = vmatpush1.msra.mxu0 0.0
    %1969 = vmatprep.subr.mxu0 0.0
    %1970 = vmatpush1.msra.mxu0 0.0
    %1971 = vmatprep.subr.mxu0 0.0
    %1972 = vmatpush1.msra.mxu0 0.0
    %1973 = vmatprep.subr.mxu0 0.0
    %1974 = vmatpush1.msra.mxu0 0.0
    %1975 = vmatprep.subr.mxu0 0.0
    %1976 = vmatpush1.msra.mxu0 0.0
    %1977 = vmatprep.subr.mxu0 0.0
    %1978 = vmatpush1.msra.mxu0 0.0
    %1979 = vmatprep.subr.mxu0 0.0
    %1980 = vmatpush1.msra.mxu0 0.0
    %1981 = vmatprep.subr.mxu0 0.0
    %1982 = vmatpush1.msra.mxu0 0.0
    %1983 = vmatprep.subr.mxu0 0.0
    %1984 = vmatpush1.msra.mxu0 0.0
    %1985 = vmatprep.subr.mxu0 0.0
    %1986 = vmatpush1.msra.mxu0 0.0
    %1987 = vmatprep.subr.mxu0 0.0
    %1988 = vmatpush1.msra.mxu0 0.0
    %1989 = vmatprep.subr.mxu0 0.0
    %1990 = vmatpush1.msra.mxu0 0.0
    %1991 = vmatprep.subr.mxu0 0.0
    %1992 = vmatpush1.msra.mxu0 0.0
    %1993 = vmatprep.subr.mxu0 0.0
    %1994 = vmatpush1.msra.mxu0 0.0
    %1995 = vmatprep.subr.mxu0 0.0
    %1996 = vmatpush1.msra.mxu0 0.0
    %1997 = vmatprep.mubr.f32.mxu0 0.0
    %1998 = vmatmul.mubr.f32.gmra.mrb[0].mxu0 %v1928
    %v1999 = vpop.f32.mrb[0].mxu0
    %v2000 = vadd.f32 %v1926, %v1999
    %v2001 = vpop.f32.mrb[0].mxu0
    %2002 = vmatprep.mubr.f32.mxu0 0.0
    %2003 = vmatmul.mubr.f32.gmra.mrb[0].mxu0 %v1931
    %v2004 = vpop.f32.mrb[0].mxu0
    %v2005 = vadd.f32 %v1926, %v2004
    %v2006 = vpop.f32.mrb[0].mxu0
    %2007 = vdwg.mxu0
    %v2008 = vlaneseq
    %v2009 = vshrl.u32 %v2008, 7
    %v2010 = vsub.s32 3, %v2009
    %v2011 = vrot.slane %v93, %v2010
    %v2013 = vsel %vm126, %v90, 0
    %v2016 = vsel %vm126, %v91, 0
    %2018 = vmatprep.subr.mxu0 0.0
    %2019 = vmatpush1.msra.mxu0 %v114
    %2020 = vmatprep.subr.mxu0 0.0
    %2021 = vmatpush1.msra.mxu0 %v115
    %2022 = vmatprep.subr.mxu0 0.0
    %2023 = vmatpush1.msra.mxu0 %v116
    %2024 = vmatprep.subr.mxu0 0.0
    %2025 = vmatpush1.msra.mxu0 %v117
    %2026 = vmatprep.subr.mxu0 0.0
    %2027 = vmatpush1.msra.mxu0 0.0
    %2028 = vmatprep.subr.mxu0 0.0
    %2029 = vmatpush1.msra.mxu0 0.0
    %2030 = vmatprep.subr.mxu0 0.0
    %2031 = vmatpush1.msra.mxu0 0.0
    %2032 = vmatprep.subr.mxu0 0.0
    %2033 = vmatpush1.msra.mxu0 0.0
    %2034 = vmatprep.subr.mxu0 0.0
    %2035 = vmatpush1.msra.mxu0 0.0
    %2036 = vmatprep.subr.mxu0 0.0
    %2037 = vmatpush1.msra.mxu0 0.0
    %2038 = vmatprep.subr.mxu0 0.0
    %2039 = vmatpush1.msra.mxu0 0.0
    %2040 = vmatprep.subr.mxu0 0.0
    %2041 = vmatpush1.msra.mxu0 0.0
    %2042 = vmatprep.subr.mxu0 0.0
    %2043 = vmatpush1.msra.mxu0 0.0
    %2044 = vmatprep.subr.mxu0 0.0
    %2045 = vmatpush1.msra.mxu0 0.0
    %2046 = vmatprep.subr.mxu0 0.0
    %2047 = vmatpush1.msra.mxu0 0.0
    %2048 = vmatprep.subr.mxu0 0.0
    %2049 = vmatpush1.msra.mxu0 0.0
    %2050 = vmatprep.subr.mxu0 0.0
    %2051 = vmatpush1.msra.mxu0 0.0
    %2052 = vmatprep.subr.mxu0 0.0
    %2053 = vmatpush1.msra.mxu0 0.0
    %2054 = vmatprep.subr.mxu0 0.0
    %2055 = vmatpush1.msra.mxu0 0.0
    %2056 = vmatprep.subr.mxu0 0.0
    %2057 = vmatpush1.msra.mxu0 0.0
    %2058 = vmatprep.subr.mxu0 0.0
    %2059 = vmatpush1.msra.mxu0 0.0
    %2060 = vmatprep.subr.mxu0 0.0
    %2061 = vmatpush1.msra.mxu0 0.0
    %2062 = vmatprep.subr.mxu0 0.0
    %2063 = vmatpush1.msra.mxu0 0.0
    %2064 = vmatprep.subr.mxu0 0.0
    %2065 = vmatpush1.msra.mxu0 0.0
    %2066 = vmatprep.subr.mxu0 0.0
    %2067 = vmatpush1.msra.mxu0 0.0
    %2068 = vmatprep.subr.mxu0 0.0
    %2069 = vmatpush1.msra.mxu0 0.0
    %2070 = vmatprep.subr.mxu0 0.0
    %2071 = vmatpush1.msra.mxu0 0.0
    %2072 = vmatprep.subr.mxu0 0.0
    %2073 = vmatpush1.msra.mxu0 0.0
    %2074 = vmatprep.subr.mxu0 0.0
    %2075 = vmatpush1.msra.mxu0 0.0
    %2076 = vmatprep.subr.mxu0 0.0
    %2077 = vmatpush1.msra.mxu0 0.0
    %2078 = vmatprep.subr.mxu0 0.0
    %2079 = vmatpush1.msra.mxu0 0.0
    %2080 = vmatprep.subr.mxu0 0.0
    %2081 = vmatpush1.msra.mxu0 0.0
    %2082 = vmatprep.mubr.f32.mxu0 0.0
    %2083 = vmatmul.mubr.f32.gmra.mrb[0].mxu0 %v2013
    %v2084 = vpop.f32.mrb[0].mxu0
    %v2085 = vadd.f32 %v2011, %v2084
    %v2086 = vpop.f32.mrb[0].mxu0
    %2087 = vmatprep.mubr.f32.mxu0 0.0
    %2088 = vmatmul.mubr.f32.gmra.mrb[0].mxu0 %v2016
    %v2089 = vpop.f32.mrb[0].mxu0
    %v2090 = vadd.f32 %v2011, %v2089
    %v2091 = vpop.f32.mrb[0].mxu0
    %2092 = vdwg.mxu0
    %v2093 = vlaneseq
    %v2094 = vshrl.u32 %v2093, 7
    %v2095 = vsub.s32 4, %v2094
    %v2096 = vrot.slane %v93, %v2095
    %2097 = vmatprep.subr.mxu0 0.0
    %2098 = vmatpush1.msra.mxu0 %v118
    %2099 = vmatprep.subr.mxu0 0.0
    %2100 = vmatpush1.msra.mxu0 %v119
    %2101 = vmatprep.subr.mxu0 0.0
    %2102 = vmatpush1.msra.mxu0 %v120
    %2103 = vmatprep.subr.mxu0 0.0
    %2104 = vmatpush1.msra.mxu0 %v121
    %2105 = vmatprep.subr.mxu0 0.0
    %2106 = vmatpush1.msra.mxu0 0.0
    %2107 = vmatprep.subr.mxu0 0.0
    %2108 = vmatpush1.msra.mxu0 0.0
    %2109 = vmatprep.subr.mxu0 0.0
    %2110 = vmatpush1.msra.mxu0 0.0
    %2111 = vmatprep.subr.mxu0 0.0
    %2112 = vmatpush1.msra.mxu0 0.0
    %2113 = vmatprep.subr.mxu0 0.0
    %2114 = vmatpush1.msra.mxu0 0.0
    %2115 = vmatprep.subr.mxu0 0.0
    %2116 = vmatpush1.msra.mxu0 0.0
    %2117 = vmatprep.subr.mxu0 0.0
    %2118 = vmatpush1.msra.mxu0 0.0
    %2119 = vmatprep.subr.mxu0 0.0
    %2120 = vmatpush1.msra.mxu0 0.0
    %2121 = vmatprep.subr.mxu0 0.0
    %2122 = vmatpush1.msra.mxu0 0.0
    %2123 = vmatprep.subr.mxu0 0.0
    %2124 = vmatpush1.msra.mxu0 0.0
    %2125 = vmatprep.subr.mxu0 0.0
    %2126 = vmatpush1.msra.mxu0 0.0
    %2127 = vmatprep.subr.mxu0 0.0
    %2128 = vmatpush1.msra.mxu0 0.0
    %2129 = vmatprep.subr.mxu0 0.0
    %2130 = vmatpush1.msra.mxu0 0.0
    %2131 = vmatprep.subr.mxu0 0.0
    %2132 = vmatpush1.msra.mxu0 0.0
    %2133 = vmatprep.subr.mxu0 0.0
    %2134 = vmatpush1.msra.mxu0 0.0
    %2135 = vmatprep.subr.mxu0 0.0
    %2136 = vmatpush1.msra.mxu0 0.0
    %2137 = vmatprep.subr.mxu0 0.0
    %2138 = vmatpush1.msra.mxu0 0.0
    %2139 = vmatprep.subr.mxu0 0.0
    %2140 = vmatpush1.msra.mxu0 0.0
    %2141 = vmatprep.subr.mxu0 0.0
    %2142 = vmatpush1.msra.mxu0 0.0
    %2143 = vmatprep.subr.mxu0 0.0
    %2144 = vmatpush1.msra.mxu0 0.0
    %2145 = vmatprep.subr.mxu0 0.0
    %2146 = vmatpush1.msra.mxu0 0.0
    %2147 = vmatprep.subr.mxu0 0.0
    %2148 = vmatpush1.msra.mxu0 0.0
    %2149 = vmatprep.subr.mxu0 0.0
    %2150 = vmatpush1.msra.mxu0 0.0
    %2151 = vmatprep.subr.mxu0 0.0
    %2152 = vmatpush1.msra.mxu0 0.0
    %2153 = vmatprep.subr.mxu0 0.0
    %2154 = vmatpush1.msra.mxu0 0.0
    %2155 = vmatprep.subr.mxu0 0.0
    %2156 = vmatpush1.msra.mxu0 0.0
    %2157 = vmatprep.subr.mxu0 0.0
    %2158 = vmatpush1.msra.mxu0 0.0
    %2159 = vmatprep.subr.mxu0 0.0
    %2160 = vmatpush1.msra.mxu0 0.0
    %2161 = vmatprep.mubr.f32.mxu0 0.0
    %2162 = vmatmul.mubr.f32.gmra.mrb[0].mxu0 %v2013
    %v2163 = vpop.f32.mrb[0].mxu0
    %v2164 = vadd.f32 %v2096, %v2163
    %v2165 = vpop.f32.mrb[0].mxu0
    %2166 = vmatprep.mubr.f32.mxu0 0.0
    %2167 = vmatmul.mubr.f32.gmra.mrb[0].mxu0 %v2016
    %v2168 = vpop.f32.mrb[0].mxu0
    %v2169 = vadd.f32 %v2096, %v2168
    %v2170 = vpop.f32.mrb[0].mxu0
    %2171 = vdwg.mxu0
    %2174 = vrot.lane.b32.xlu0 %v2000, 120
    %v2175 = vpop.permute.xlu0 %2174
    %2176 = vrot.lane.b32.xlu0 %v2005, 120
    %v2177 = vpop.permute.xlu0 %2176
    %2178 = vrot.lane.b32.xlu0 %v2000, 112
    %v2179 = vpop.permute.xlu0 %2178
    %2180 = vrot.lane.b32.xlu0 %v2005, 112
    %v2181 = vpop.permute.xlu0 %2180
    %2182 = vrot.lane.b32.xlu0 %v2000, 104
    %v2183 = vpop.permute.xlu0 %2182
    %2184 = vrot.lane.b32.xlu0 %v2005, 104
    %v2185 = vpop.permute.xlu0 %2184
    %2188 = vrot.lane.b32.xlu0 %v2085, 120
    %v2189 = vpop.permute.xlu0 %2188
    %2190 = vrot.lane.b32.xlu0 %v2090, 120
    %v2191 = vpop.permute.xlu0 %2190
    %2192 = vrot.lane.b32.xlu0 %v2085, 112
    %v2193 = vpop.permute.xlu0 %2192
    %2194 = vrot.lane.b32.xlu0 %v2090, 112
    %v2195 = vpop.permute.xlu0 %2194
    %2196 = vrot.lane.b32.xlu0 %v2085, 104
    %v2197 = vpop.permute.xlu0 %2196
    %2198 = vrot.lane.b32.xlu0 %v2090, 104
    %v2199 = vpop.permute.xlu0 %2198
    %2202 = vrot.lane.b32.xlu0 %v2164, 120
    %v2203 = vpop.permute.xlu0 %2202
    %2204 = vrot.lane.b32.xlu0 %v2169, 120
    %v2205 = vpop.permute.xlu0 %2204
    %2208 = vrot.lane.b32.xlu0 %v2164, 112
    %v2209 = vpop.permute.xlu0 %2208
    %2210 = vrot.lane.b32.xlu0 %v2169, 112
    %v2211 = vpop.permute.xlu0 %2210
    %2214 = vrot.lane.b32.xlu0 %v2164, 104
    %v2215 = vpop.permute.xlu0 %2214
    %2216 = vrot.lane.b32.xlu0 %v2169, 104
    %v2217 = vpop.permute.xlu0 %2216
    %v2220 = vsel %vm479, %v2000, 0
    %v2222 = vsel %vm479, %v2085, 0
    %2224 = vmatprep.subr.mxu0 0.0
    %2225 = vmatpush1.xpose.msra.mxu0 %v2222
    %2226 = vmatprep.subr.mxu0 0.0
    %2227 = vmatpush1.xpose.msra.mxu0 0.0
    %2228 = vmatprep.subr.mxu0 0.0
    %2229 = vmatpush1.xpose.msra.mxu0 0.0
    %2230 = vmatprep.subr.mxu0 0.0
    %2231 = vmatpush1.xpose.msra.mxu0 0.0
    %2232 = vmatprep.subr.mxu0 0.0
    %2233 = vmatpush1.xpose.msra.mxu0 0.0
    %2234 = vmatprep.subr.mxu0 0.0
    %2235 = vmatpush1.xpose.msra.mxu0 0.0
    %2236 = vmatprep.subr.mxu0 0.0
    %2237 = vmatpush1.xpose.msra.mxu0 0.0
    %2238 = vmatprep.subr.mxu0 0.0
    %2239 = vmatpush1.xpose.msra.mxu0 0.0
    %2240 = vmatprep.subr.mxu0 0.0
    %2241 = vmatpush1.xpose.msra.mxu0 0.0
    %2242 = vmatprep.subr.mxu0 0.0
    %2243 = vmatpush1.xpose.msra.mxu0 0.0
    %2244 = vmatprep.subr.mxu0 0.0
    %2245 = vmatpush1.xpose.msra.mxu0 0.0
    %2246 = vmatprep.subr.mxu0 0.0
    %2247 = vmatpush1.xpose.msra.mxu0 0.0
    %2248 = vmatprep.subr.mxu0 0.0
    %2249 = vmatpush1.xpose.msra.mxu0 0.0
    %2250 = vmatprep.subr.mxu0 0.0
    %2251 = vmatpush1.xpose.msra.mxu0 0.0
    %2252 = vmatprep.subr.mxu0 0.0
    %2253 = vmatpush1.xpose.msra.mxu0 0.0
    %2254 = vmatprep.subr.mxu0 0.0
    %2255 = vmatpush1.xpose.msra.mxu0 0.0
    %2256 = vmatprep.subr.mxu0 0.0
    %2257 = vmatpush1.xpose.msra.mxu0 0.0
    %2258 = vmatprep.subr.mxu0 0.0
    %2259 = vmatpush1.xpose.msra.mxu0 0.0
    %2260 = vmatprep.subr.mxu0 0.0
    %2261 = vmatpush1.xpose.msra.mxu0 0.0
    %2262 = vmatprep.subr.mxu0 0.0
    %2263 = vmatpush1.xpose.msra.mxu0 0.0
    %2264 = vmatprep.subr.mxu0 0.0
    %2265 = vmatpush1.xpose.msra.mxu0 0.0
    %2266 = vmatprep.subr.mxu0 0.0
    %2267 = vmatpush1.xpose.msra.mxu0 0.0
    %2268 = vmatprep.subr.mxu0 0.0
    %2269 = vmatpush1.xpose.msra.mxu0 0.0
    %2270 = vmatprep.subr.mxu0 0.0
    %2271 = vmatpush1.xpose.msra.mxu0 0.0
    %2272 = vmatprep.subr.mxu0 0.0
    %2273 = vmatpush1.xpose.msra.mxu0 0.0
    %2274 = vmatprep.subr.mxu0 0.0
    %2275 = vmatpush1.xpose.msra.mxu0 0.0
    %2276 = vmatprep.subr.mxu0 0.0
    %2277 = vmatpush1.xpose.msra.mxu0 0.0
    %2278 = vmatprep.subr.mxu0 0.0
    %2279 = vmatpush1.xpose.msra.mxu0 0.0
    %2280 = vmatprep.subr.mxu0 0.0
    %2281 = vmatpush1.xpose.msra.mxu0 0.0
    %2282 = vmatprep.subr.mxu0 0.0
    %2283 = vmatpush1.xpose.msra.mxu0 0.0
    %2284 = vmatprep.subr.mxu0 0.0
    %2285 = vmatpush1.xpose.msra.mxu0 0.0
    %2286 = vmatprep.subr.mxu0 0.0
    %2287 = vmatpush1.xpose.msra.mxu0 0.0
    %2288 = vmatprep.mubr.f32.mxu0 0.0
    %2289 = vmatmul.mubr.f32.gmra.mrb[0].mxu0 %v2220
    %v2290 = vpop.f32.mrb[0].mxu0
    %v2291 = vadd.f32 %v1915, %v2290
    %v2292 = vpop.f32.mrb[0].mxu0
    %2293 = vdwg.mxu0
    %v2294 = vsel %vm479, %v2005, 0
    %v2296 = vsel %vm479, %v2090, 0
    %2298 = vmatprep.subr.mxu0 0.0
    %2299 = vmatpush1.xpose.msra.mxu0 %v2296
    %2300 = vmatprep.subr.mxu0 0.0
    %2301 = vmatpush1.xpose.msra.mxu0 0.0
    %2302 = vmatprep.subr.mxu0 0.0
    %2303 = vmatpush1.xpose.msra.mxu0 0.0
    %2304 = vmatprep.subr.mxu0 0.0
    %2305 = vmatpush1.xpose.msra.mxu0 0.0
    %2306 = vmatprep.subr.mxu0 0.0
    %2307 = vmatpush1.xpose.msra.mxu0 0.0
    %2308 = vmatprep.subr.mxu0 0.0
    %2309 = vmatpush1.xpose.msra.mxu0 0.0
    %2310 = vmatprep.subr.mxu0 0.0
    %2311 = vmatpush1.xpose.msra.mxu0 0.0
    %2312 = vmatprep.subr.mxu0 0.0
    %2313 = vmatpush1.xpose.msra.mxu0 0.0
    %2314 = vmatprep.subr.mxu0 0.0
    %2315 = vmatpush1.xpose.msra.mxu0 0.0
    %2316 = vmatprep.subr.mxu0 0.0
    %2317 = vmatpush1.xpose.msra.mxu0 0.0
    %2318 = vmatprep.subr.mxu0 0.0
    %2319 = vmatpush1.xpose.msra.mxu0 0.0
    %2320 = vmatprep.subr.mxu0 0.0
    %2321 = vmatpush1.xpose.msra.mxu0 0.0
    %2322 = vmatprep.subr.mxu0 0.0
    %2323 = vmatpush1.xpose.msra.mxu0 0.0
    %2324 = vmatprep.subr.mxu0 0.0
    %2325 = vmatpush1.xpose.msra.mxu0 0.0
    %2326 = vmatprep.subr.mxu0 0.0
    %2327 = vmatpush1.xpose.msra.mxu0 0.0
    %2328 = vmatprep.subr.mxu0 0.0
    %2329 = vmatpush1.xpose.msra.mxu0 0.0
    %2330 = vmatprep.subr.mxu0 0.0
    %2331 = vmatpush1.xpose.msra.mxu0 0.0
    %2332 = vmatprep.subr.mxu0 0.0
    %2333 = vmatpush1.xpose.msra.mxu0 0.0
    %2334 = vmatprep.subr.mxu0 0.0
    %2335 = vmatpush1.xpose.msra.mxu0 0.0
    %2336 = vmatprep.subr.mxu0 0.0
    %2337 = vmatpush1.xpose.msra.mxu0 0.0
    %2338 = vmatprep.subr.mxu0 0.0
    %2339 = vmatpush1.xpose.msra.mxu0 0.0
    %2340 = vmatprep.subr.mxu0 0.0
    %2341 = vmatpush1.xpose.msra.mxu0 0.0
    %2342 = vmatprep.subr.mxu0 0.0
    %2343 = vmatpush1.xpose.msra.mxu0 0.0
    %2344 = vmatprep.subr.mxu0 0.0
    %2345 = vmatpush1.xpose.msra.mxu0 0.0
    %2346 = vmatprep.subr.mxu0 0.0
    %2347 = vmatpush1.xpose.msra.mxu0 0.0
    %2348 = vmatprep.subr.mxu0 0.0
    %2349 = vmatpush1.xpose.msra.mxu0 0.0
    %2350 = vmatprep.subr.mxu0 0.0
    %2351 = vmatpush1.xpose.msra.mxu0 0.0
    %2352 = vmatprep.subr.mxu0 0.0
    %2353 = vmatpush1.xpose.msra.mxu0 0.0
    %2354 = vmatprep.subr.mxu0 0.0
    %2355 = vmatpush1.xpose.msra.mxu0 0.0
    %2356 = vmatprep.subr.mxu0 0.0
    %2357 = vmatpush1.xpose.msra.mxu0 0.0
    %2358 = vmatprep.subr.mxu0 0.0
    %2359 = vmatpush1.xpose.msra.mxu0 0.0
    %2360 = vmatprep.subr.mxu0 0.0
    %2361 = vmatpush1.xpose.msra.mxu0 0.0
    %2362 = vmatprep.mubr.f32.mxu0 0.0
    %2363 = vmatmul.mubr.f32.gmra.mrb[0].mxu0 %v2294
    %v2364 = vpop.f32.mrb[0].mxu0
    %v2365 = vadd.f32 %v1916, %v2364
    %v2366 = vpop.f32.mrb[0].mxu0
    %2367 = vdwg.mxu0
    %v2368 = vsel %vm479, %v2175, 0
    %v2370 = vsel %vm479, %v2189, 0
    %2372 = vmatprep.subr.mxu0 0.0
    %2373 = vmatpush1.xpose.msra.mxu0 %v2370
    %2374 = vmatprep.subr.mxu0 0.0
    %2375 = vmatpush1.xpose.msra.mxu0 0.0
    %2376 = vmatprep.subr.mxu0 0.0
    %2377 = vmatpush1.xpose.msra.mxu0 0.0
    %2378 = vmatprep.subr.mxu0 0.0
    %2379 = vmatpush1.xpose.msra.mxu0 0.0
    %2380 = vmatprep.subr.mxu0 0.0
    %2381 = vmatpush1.xpose.msra.mxu0 0.0
    %2382 = vmatprep.subr.mxu0 0.0
    %2383 = vmatpush1.xpose.msra.mxu0 0.0
    %2384 = vmatprep.subr.mxu0 0.0
    %2385 = vmatpush1.xpose.msra.mxu0 0.0
    %2386 = vmatprep.subr.mxu0 0.0
    %2387 = vmatpush1.xpose.msra.mxu0 0.0
    %2388 = vmatprep.subr.mxu0 0.0
    %2389 = vmatpush1.xpose.msra.mxu0 0.0
    %2390 = vmatprep.subr.mxu0 0.0
    %2391 = vmatpush1.xpose.msra.mxu0 0.0
    %2392 = vmatprep.subr.mxu0 0.0
    %2393 = vmatpush1.xpose.msra.mxu0 0.0
    %2394 = vmatprep.subr.mxu0 0.0
    %2395 = vmatpush1.xpose.msra.mxu0 0.0
    %2396 = vmatprep.subr.mxu0 0.0
    %2397 = vmatpush1.xpose.msra.mxu0 0.0
    %2398 = vmatprep.subr.mxu0 0.0
    %2399 = vmatpush1.xpose.msra.mxu0 0.0
    %2400 = vmatprep.subr.mxu0 0.0
    %2401 = vmatpush1.xpose.msra.mxu0 0.0
    %2402 = vmatprep.subr.mxu0 0.0
    %2403 = vmatpush1.xpose.msra.mxu0 0.0
    %2404 = vmatprep.subr.mxu0 0.0
    %2405 = vmatpush1.xpose.msra.mxu0 0.0
    %2406 = vmatprep.subr.mxu0 0.0
    %2407 = vmatpush1.xpose.msra.mxu0 0.0
    %2408 = vmatprep.subr.mxu0 0.0
    %2409 = vmatpush1.xpose.msra.mxu0 0.0
    %2410 = vmatprep.subr.mxu0 0.0
    %2411 = vmatpush1.xpose.msra.mxu0 0.0
    %2412 = vmatprep.subr.mxu0 0.0
    %2413 = vmatpush1.xpose.msra.mxu0 0.0
    %2414 = vmatprep.subr.mxu0 0.0
    %2415 = vmatpush1.xpose.msra.mxu0 0.0
    %2416 = vmatprep.subr.mxu0 0.0
    %2417 = vmatpush1.xpose.msra.mxu0 0.0
    %2418 = vmatprep.subr.mxu0 0.0
    %2419 = vmatpush1.xpose.msra.mxu0 0.0
    %2420 = vmatprep.subr.mxu0 0.0
    %2421 = vmatpush1.xpose.msra.mxu0 0.0
    %2422 = vmatprep.subr.mxu0 0.0
    %2423 = vmatpush1.xpose.msra.mxu0 0.0
    %2424 = vmatprep.subr.mxu0 0.0
    %2425 = vmatpush1.xpose.msra.mxu0 0.0
    %2426 = vmatprep.subr.mxu0 0.0
    %2427 = vmatpush1.xpose.msra.mxu0 0.0
    %2428 = vmatprep.subr.mxu0 0.0
    %2429 = vmatpush1.xpose.msra.mxu0 0.0
    %2430 = vmatprep.subr.mxu0 0.0
    %2431 = vmatpush1.xpose.msra.mxu0 0.0
    %2432 = vmatprep.subr.mxu0 0.0
    %2433 = vmatpush1.xpose.msra.mxu0 0.0
    %2434 = vmatprep.subr.mxu0 0.0
    %2435 = vmatpush1.xpose.msra.mxu0 0.0
    %2436 = vmatprep.mubr.f32.mxu0 0.0
    %2437 = vmatmul.mubr.f32.gmra.mrb[0].mxu0 %v2368
    %v2438 = vpop.f32.mrb[0].mxu0
    %v2439 = vadd.f32 %v1917, %v2438
    %v2440 = vpop.f32.mrb[0].mxu0
    %2441 = vdwg.mxu0
    %v2442 = vsel %vm479, %v2177, 0
    %v2444 = vsel %vm479, %v2191, 0
    %2446 = vmatprep.subr.mxu0 0.0
    %2447 = vmatpush1.xpose.msra.mxu0 %v2444
    %2448 = vmatprep.subr.mxu0 0.0
    %2449 = vmatpush1.xpose.msra.mxu0 0.0
    %2450 = vmatprep.subr.mxu0 0.0
    %2451 = vmatpush1.xpose.msra.mxu0 0.0
    %2452 = vmatprep.subr.mxu0 0.0
    %2453 = vmatpush1.xpose.msra.mxu0 0.0
    %2454 = vmatprep.subr.mxu0 0.0
    %2455 = vmatpush1.xpose.msra.mxu0 0.0
    %2456 = vmatprep.subr.mxu0 0.0
    %2457 = vmatpush1.xpose.msra.mxu0 0.0
    %2458 = vmatprep.subr.mxu0 0.0
    %2459 = vmatpush1.xpose.msra.mxu0 0.0
    %2460 = vmatprep.subr.mxu0 0.0
    %2461 = vmatpush1.xpose.msra.mxu0 0.0
    %2462 = vmatprep.subr.mxu0 0.0
    %2463 = vmatpush1.xpose.msra.mxu0 0.0
    %2464 = vmatprep.subr.mxu0 0.0
    %2465 = vmatpush1.xpose.msra.mxu0 0.0
    %2466 = vmatprep.subr.mxu0 0.0
    %2467 = vmatpush1.xpose.msra.mxu0 0.0
    %2468 = vmatprep.subr.mxu0 0.0
    %2469 = vmatpush1.xpose.msra.mxu0 0.0
    %2470 = vmatprep.subr.mxu0 0.0
    %2471 = vmatpush1.xpose.msra.mxu0 0.0
    %2472 = vmatprep.subr.mxu0 0.0
    %2473 = vmatpush1.xpose.msra.mxu0 0.0
    %2474 = vmatprep.subr.mxu0 0.0
    %2475 = vmatpush1.xpose.msra.mxu0 0.0
    %2476 = vmatprep.subr.mxu0 0.0
    %2477 = vmatpush1.xpose.msra.mxu0 0.0
    %2478 = vmatprep.subr.mxu0 0.0
    %2479 = vmatpush1.xpose.msra.mxu0 0.0
    %2480 = vmatprep.subr.mxu0 0.0
    %2481 = vmatpush1.xpose.msra.mxu0 0.0
    %2482 = vmatprep.subr.mxu0 0.0
    %2483 = vmatpush1.xpose.msra.mxu0 0.0
    %2484 = vmatprep.subr.mxu0 0.0
    %2485 = vmatpush1.xpose.msra.mxu0 0.0
    %2486 = vmatprep.subr.mxu0 0.0
    %2487 = vmatpush1.xpose.msra.mxu0 0.0
    %2488 = vmatprep.subr.mxu0 0.0
    %2489 = vmatpush1.xpose.msra.mxu0 0.0
    %2490 = vmatprep.subr.mxu0 0.0
    %2491 = vmatpush1.xpose.msra.mxu0 0.0
    %2492 = vmatprep.subr.mxu0 0.0
    %2493 = vmatpush1.xpose.msra.mxu0 0.0
    %2494 = vmatprep.subr.mxu0 0.0
    %2495 = vmatpush1.xpose.msra.mxu0 0.0
    %2496 = vmatprep.subr.mxu0 0.0
    %2497 = vmatpush1.xpose.msra.mxu0 0.0
    %2498 = vmatprep.subr.mxu0 0.0
    %2499 = vmatpush1.xpose.msra.mxu0 0.0
    %2500 = vmatprep.subr.mxu0 0.0
    %2501 = vmatpush1.xpose.msra.mxu0 0.0
    %2502 = vmatprep.subr.mxu0 0.0
    %2503 = vmatpush1.xpose.msra.mxu0 0.0
    %2504 = vmatprep.subr.mxu0 0.0
    %2505 = vmatpush1.xpose.msra.mxu0 0.0
    %2506 = vmatprep.subr.mxu0 0.0
    %2507 = vmatpush1.xpose.msra.mxu0 0.0
    %2508 = vmatprep.subr.mxu0 0.0
    %2509 = vmatpush1.xpose.msra.mxu0 0.0
    %2510 = vmatprep.mubr.f32.mxu0 0.0
    %2511 = vmatmul.mubr.f32.gmra.mrb[0].mxu0 %v2442
    %v2512 = vpop.f32.mrb[0].mxu0
    %v2513 = vadd.f32 %v1918, %v2512
    %v2514 = vpop.f32.mrb[0].mxu0
    %2515 = vdwg.mxu0
    %v2516 = vsel %vm479, %v2179, 0
    %v2518 = vsel %vm479, %v2193, 0
    %2520 = vmatprep.subr.mxu0 0.0
    %2521 = vmatpush1.xpose.msra.mxu0 %v2518
    %2522 = vmatprep.subr.mxu0 0.0
    %2523 = vmatpush1.xpose.msra.mxu0 0.0
    %2524 = vmatprep.subr.mxu0 0.0
    %2525 = vmatpush1.xpose.msra.mxu0 0.0
    %2526 = vmatprep.subr.mxu0 0.0
    %2527 = vmatpush1.xpose.msra.mxu0 0.0
    %2528 = vmatprep.subr.mxu0 0.0
    %2529 = vmatpush1.xpose.msra.mxu0 0.0
    %2530 = vmatprep.subr.mxu0 0.0
    %2531 = vmatpush1.xpose.msra.mxu0 0.0
    %2532 = vmatprep.subr.mxu0 0.0
    %2533 = vmatpush1.xpose.msra.mxu0 0.0
    %2534 = vmatprep.subr.mxu0 0.0
    %2535 = vmatpush1.xpose.msra.mxu0 0.0
    %2536 = vmatprep.subr.mxu0 0.0
    %2537 = vmatpush1.xpose.msra.mxu0 0.0
    %2538 = vmatprep.subr.mxu0 0.0
    %2539 = vmatpush1.xpose.msra.mxu0 0.0
    %2540 = vmatprep.subr.mxu0 0.0
    %2541 = vmatpush1.xpose.msra.mxu0 0.0
    %2542 = vmatprep.subr.mxu0 0.0
    %2543 = vmatpush1.xpose.msra.mxu0 0.0
    %2544 = vmatprep.subr.mxu0 0.0
    %2545 = vmatpush1.xpose.msra.mxu0 0.0
    %2546 = vmatprep.subr.mxu0 0.0
    %2547 = vmatpush1.xpose.msra.mxu0 0.0
    %2548 = vmatprep.subr.mxu0 0.0
    %2549 = vmatpush1.xpose.msra.mxu0 0.0
    %2550 = vmatprep.subr.mxu0 0.0
    %2551 = vmatpush1.xpose.msra.mxu0 0.0
    %2552 = vmatprep.subr.mxu0 0.0
    %2553 = vmatpush1.xpose.msra.mxu0 0.0
    %2554 = vmatprep.subr.mxu0 0.0
    %2555 = vmatpush1.xpose.msra.mxu0 0.0
    %2556 = vmatprep.subr.mxu0 0.0
    %2557 = vmatpush1.xpose.msra.mxu0 0.0
    %2558 = vmatprep.subr.mxu0 0.0
    %2559 = vmatpush1.xpose.msra.mxu0 0.0
    %2560 = vmatprep.subr.mxu0 0.0
    %2561 = vmatpush1.xpose.msra.mxu0 0.0
    %2562 = vmatprep.subr.mxu0 0.0
    %2563 = vmatpush1.xpose.msra.mxu0 0.0
    %2564 = vmatprep.subr.mxu0 0.0
    %2565 = vmatpush1.xpose.msra.mxu0 0.0
    %2566 = vmatprep.subr.mxu0 0.0
    %2567 = vmatpush1.xpose.msra.mxu0 0.0
    %2568 = vmatprep.subr.mxu0 0.0
    %2569 = vmatpush1.xpose.msra.mxu0 0.0
    %2570 = vmatprep.subr.mxu0 0.0
    %2571 = vmatpush1.xpose.msra.mxu0 0.0
    %2572 = vmatprep.subr.mxu0 0.0
    %2573 = vmatpush1.xpose.msra.mxu0 0.0
    %2574 = vmatprep.subr.mxu0 0.0
    %2575 = vmatpush1.xpose.msra.mxu0 0.0
    %2576 = vmatprep.subr.mxu0 0.0
    %2577 = vmatpush1.xpose.msra.mxu0 0.0
    %2578 = vmatprep.subr.mxu0 0.0
    %2579 = vmatpush1.xpose.msra.mxu0 0.0
    %2580 = vmatprep.subr.mxu0 0.0
    %2581 = vmatpush1.xpose.msra.mxu0 0.0
    %2582 = vmatprep.subr.mxu0 0.0
    %2583 = vmatpush1.xpose.msra.mxu0 0.0
    %2584 = vmatprep.mubr.f32.mxu0 0.0
    %2585 = vmatmul.mubr.f32.gmra.mrb[0].mxu0 %v2516
    %v2586 = vpop.f32.mrb[0].mxu0
    %v2587 = vadd.f32 %v1919, %v2586
    %v2588 = vpop.f32.mrb[0].mxu0
    %2589 = vdwg.mxu0
    %v2590 = vsel %vm479, %v2181, 0
    %v2592 = vsel %vm479, %v2195, 0
    %2594 = vmatprep.subr.mxu0 0.0
    %2595 = vmatpush1.xpose.msra.mxu0 %v2592
    %2596 = vmatprep.subr.mxu0 0.0
    %2597 = vmatpush1.xpose.msra.mxu0 0.0
    %2598 = vmatprep.subr.mxu0 0.0
    %2599 = vmatpush1.xpose.msra.mxu0 0.0
    %2600 = vmatprep.subr.mxu0 0.0
    %2601 = vmatpush1.xpose.msra.mxu0 0.0
    %2602 = vmatprep.subr.mxu0 0.0
    %2603 = vmatpush1.xpose.msra.mxu0 0.0
    %2604 = vmatprep.subr.mxu0 0.0
    %2605 = vmatpush1.xpose.msra.mxu0 0.0
    %2606 = vmatprep.subr.mxu0 0.0
    %2607 = vmatpush1.xpose.msra.mxu0 0.0
    %2608 = vmatprep.subr.mxu0 0.0
    %2609 = vmatpush1.xpose.msra.mxu0 0.0
    %2610 = vmatprep.subr.mxu0 0.0
    %2611 = vmatpush1.xpose.msra.mxu0 0.0
    %2612 = vmatprep.subr.mxu0 0.0
    %2613 = vmatpush1.xpose.msra.mxu0 0.0
    %2614 = vmatprep.subr.mxu0 0.0
    %2615 = vmatpush1.xpose.msra.mxu0 0.0
    %2616 = vmatprep.subr.mxu0 0.0
    %2617 = vmatpush1.xpose.msra.mxu0 0.0
    %2618 = vmatprep.subr.mxu0 0.0
    %2619 = vmatpush1.xpose.msra.mxu0 0.0
    %2620 = vmatprep.subr.mxu0 0.0
    %2621 = vmatpush1.xpose.msra.mxu0 0.0
    %2622 = vmatprep.subr.mxu0 0.0
    %2623 = vmatpush1.xpose.msra.mxu0 0.0
    %2624 = vmatprep.subr.mxu0 0.0
    %2625 = vmatpush1.xpose.msra.mxu0 0.0
    %2626 = vmatprep.subr.mxu0 0.0
    %2627 = vmatpush1.xpose.msra.mxu0 0.0
    %2628 = vmatprep.subr.mxu0 0.0
    %2629 = vmatpush1.xpose.msra.mxu0 0.0
    %2630 = vmatprep.subr.mxu0 0.0
    %2631 = vmatpush1.xpose.msra.mxu0 0.0
    %2632 = vmatprep.subr.mxu0 0.0
    %2633 = vmatpush1.xpose.msra.mxu0 0.0
    %2634 = vmatprep.subr.mxu0 0.0
    %2635 = vmatpush1.xpose.msra.mxu0 0.0
    %2636 = vmatprep.subr.mxu0 0.0
    %2637 = vmatpush1.xpose.msra.mxu0 0.0
    %2638 = vmatprep.subr.mxu0 0.0
    %2639 = vmatpush1.xpose.msra.mxu0 0.0
    %2640 = vmatprep.subr.mxu0 0.0
    %2641 = vmatpush1.xpose.msra.mxu0 0.0
    %2642 = vmatprep.subr.mxu0 0.0
    %2643 = vmatpush1.xpose.msra.mxu0 0.0
    %2644 = vmatprep.subr.mxu0 0.0
    %2645 = vmatpush1.xpose.msra.mxu0 0.0
    %2646 = vmatprep.subr.mxu0 0.0
    %2647 = vmatpush1.xpose.msra.mxu0 0.0
    %2648 = vmatprep.subr.mxu0 0.0
    %2649 = vmatpush1.xpose.msra.mxu0 0.0
    %2650 = vmatprep.subr.mxu0 0.0
    %2651 = vmatpush1.xpose.msra.mxu0 0.0
    %2652 = vmatprep.subr.mxu0 0.0
    %2653 = vmatpush1.xpose.msra.mxu0 0.0
    %2654 = vmatprep.subr.mxu0 0.0
    %2655 = vmatpush1.xpose.msra.mxu0 0.0
    %2656 = vmatprep.subr.mxu0 0.0
    %2657 = vmatpush1.xpose.msra.mxu0 0.0
    %2658 = vmatprep.mubr.f32.mxu0 0.0
    %2659 = vmatmul.mubr.f32.gmra.mrb[0].mxu0 %v2590
    %v2660 = vpop.f32.mrb[0].mxu0
    %v2661 = vadd.f32 %v1920, %v2660
    %v2662 = vpop.f32.mrb[0].mxu0
    %2663 = vdwg.mxu0
    %v2664 = vsel %vm479, %v2183, 0
    %v2666 = vsel %vm479, %v2197, 0
    %2668 = vmatprep.subr.mxu0 0.0
    %2669 = vmatpush1.xpose.msra.mxu0 %v2666
    %2670 = vmatprep.subr.mxu0 0.0
    %2671 = vmatpush1.xpose.msra.mxu0 0.0
    %2672 = vmatprep.subr.mxu0 0.0
    %2673 = vmatpush1.xpose.msra.mxu0 0.0
    %2674 = vmatprep.subr.mxu0 0.0
    %2675 = vmatpush1.xpose.msra.mxu0 0.0
    %2676 = vmatprep.subr.mxu0 0.0
    %2677 = vmatpush1.xpose.msra.mxu0 0.0
    %2678 = vmatprep.subr.mxu0 0.0
    %2679 = vmatpush1.xpose.msra.mxu0 0.0
    %2680 = vmatprep.subr.mxu0 0.0
    %2681 = vmatpush1.xpose.msra.mxu0 0.0
    %2682 = vmatprep.subr.mxu0 0.0
    %2683 = vmatpush1.xpose.msra.mxu0 0.0
    %2684 = vmatprep.subr.mxu0 0.0
    %2685 = vmatpush1.xpose.msra.mxu0 0.0
    %2686 = vmatprep.subr.mxu0 0.0
    %2687 = vmatpush1.xpose.msra.mxu0 0.0
    %2688 = vmatprep.subr.mxu0 0.0
    %2689 = vmatpush1.xpose.msra.mxu0 0.0
    %2690 = vmatprep.subr.mxu0 0.0
    %2691 = vmatpush1.xpose.msra.mxu0 0.0
    %2692 = vmatprep.subr.mxu0 0.0
    %2693 = vmatpush1.xpose.msra.mxu0 0.0
    %2694 = vmatprep.subr.mxu0 0.0
    %2695 = vmatpush1.xpose.msra.mxu0 0.0
    %2696 = vmatprep.subr.mxu0 0.0
    %2697 = vmatpush1.xpose.msra.mxu0 0.0
    %2698 = vmatprep.subr.mxu0 0.0
    %2699 = vmatpush1.xpose.msra.mxu0 0.0
    %2700 = vmatprep.subr.mxu0 0.0
    %2701 = vmatpush1.xpose.msra.mxu0 0.0
    %2702 = vmatprep.subr.mxu0 0.0
    %2703 = vmatpush1.xpose.msra.mxu0 0.0
    %2704 = vmatprep.subr.mxu0 0.0
    %2705 = vmatpush1.xpose.msra.mxu0 0.0
    %2706 = vmatprep.subr.mxu0 0.0
    %2707 = vmatpush1.xpose.msra.mxu0 0.0
    %2708 = vmatprep.subr.mxu0 0.0
    %2709 = vmatpush1.xpose.msra.mxu0 0.0
    %2710 = vmatprep.subr.mxu0 0.0
    %2711 = vmatpush1.xpose.msra.mxu0 0.0
    %2712 = vmatprep.subr.mxu0 0.0
    %2713 = vmatpush1.xpose.msra.mxu0 0.0
    %2714 = vmatprep.subr.mxu0 0.0
    %2715 = vmatpush1.xpose.msra.mxu0 0.0
    %2716 = vmatprep.subr.mxu0 0.0
    %2717 = vmatpush1.xpose.msra.mxu0 0.0
    %2718 = vmatprep.subr.mxu0 0.0
    %2719 = vmatpush1.xpose.msra.mxu0 0.0
    %2720 = vmatprep.subr.mxu0 0.0
    %2721 = vmatpush1.xpose.msra.mxu0 0.0
    %2722 = vmatprep.subr.mxu0 0.0
    %2723 = vmatpush1.xpose.msra.mxu0 0.0
    %2724 = vmatprep.subr.mxu0 0.0
    %2725 = vmatpush1.xpose.msra.mxu0 0.0
    %2726 = vmatprep.subr.mxu0 0.0
    %2727 = vmatpush1.xpose.msra.mxu0 0.0
    %2728 = vmatprep.subr.mxu0 0.0
    %2729 = vmatpush1.xpose.msra.mxu0 0.0
    %2730 = vmatprep.subr.mxu0 0.0
    %2731 = vmatpush1.xpose.msra.mxu0 0.0
    %2732 = vmatprep.mubr.f32.mxu0 0.0
    %2733 = vmatmul.mubr.f32.gmra.mrb[0].mxu0 %v2664
    %v2734 = vpop.f32.mrb[0].mxu0
    %v2735 = vadd.f32 %v1921, %v2734
    %v2736 = vpop.f32.mrb[0].mxu0
    %2737 = vdwg.mxu0
    %v2738 = vsel %vm479, %v2185, 0
    %v2740 = vsel %vm479, %v2199, 0
    %2742 = vmatprep.subr.mxu0 0.0
    %2743 = vmatpush1.xpose.msra.mxu0 %v2740
    %2744 = vmatprep.subr.mxu0 0.0
    %2745 = vmatpush1.xpose.msra.mxu0 0.0
    %2746 = vmatprep.subr.mxu0 0.0
    %2747 = vmatpush1.xpose.msra.mxu0 0.0
    %2748 = vmatprep.subr.mxu0 0.0
    %2749 = vmatpush1.xpose.msra.mxu0 0.0
    %2750 = vmatprep.subr.mxu0 0.0
    %2751 = vmatpush1.xpose.msra.mxu0 0.0
    %2752 = vmatprep.subr.mxu0 0.0
    %2753 = vmatpush1.xpose.msra.mxu0 0.0
    %2754 = vmatprep.subr.mxu0 0.0
    %2755 = vmatpush1.xpose.msra.mxu0 0.0
    %2756 = vmatprep.subr.mxu0 0.0
    %2757 = vmatpush1.xpose.msra.mxu0 0.0
    %2758 = vmatprep.subr.mxu0 0.0
    %2759 = vmatpush1.xpose.msra.mxu0 0.0
    %2760 = vmatprep.subr.mxu0 0.0
    %2761 = vmatpush1.xpose.msra.mxu0 0.0
    %2762 = vmatprep.subr.mxu0 0.0
    %2763 = vmatpush1.xpose.msra.mxu0 0.0
    %2764 = vmatprep.subr.mxu0 0.0
    %2765 = vmatpush1.xpose.msra.mxu0 0.0
    %2766 = vmatprep.subr.mxu0 0.0
    %2767 = vmatpush1.xpose.msra.mxu0 0.0
    %2768 = vmatprep.subr.mxu0 0.0
    %2769 = vmatpush1.xpose.msra.mxu0 0.0
    %2770 = vmatprep.subr.mxu0 0.0
    %2771 = vmatpush1.xpose.msra.mxu0 0.0
    %2772 = vmatprep.subr.mxu0 0.0
    %2773 = vmatpush1.xpose.msra.mxu0 0.0
    %2774 = vmatprep.subr.mxu0 0.0
    %2775 = vmatpush1.xpose.msra.mxu0 0.0
    %2776 = vmatprep.subr.mxu0 0.0
    %2777 = vmatpush1.xpose.msra.mxu0 0.0
    %2778 = vmatprep.subr.mxu0 0.0
    %2779 = vmatpush1.xpose.msra.mxu0 0.0
    %2780 = vmatprep.subr.mxu0 0.0
    %2781 = vmatpush1.xpose.msra.mxu0 0.0
    %2782 = vmatprep.subr.mxu0 0.0
    %2783 = vmatpush1.xpose.msra.mxu0 0.0
    %2784 = vmatprep.subr.mxu0 0.0
    %2785 = vmatpush1.xpose.msra.mxu0 0.0
    %2786 = vmatprep.subr.mxu0 0.0
    %2787 = vmatpush1.xpose.msra.mxu0 0.0
    %2788 = vmatprep.subr.mxu0 0.0
    %2789 = vmatpush1.xpose.msra.mxu0 0.0
    %2790 = vmatprep.subr.mxu0 0.0
    %2791 = vmatpush1.xpose.msra.mxu0 0.0
    %2792 = vmatprep.subr.mxu0 0.0
    %2793 = vmatpush1.xpose.msra.mxu0 0.0
    %2794 = vmatprep.subr.mxu0 0.0
    %2795 = vmatpush1.xpose.msra.mxu0 0.0
    %2796 = vmatprep.subr.mxu0 0.0
    %2797 = vmatpush1.xpose.msra.mxu0 0.0
    %2798 = vmatprep.subr.mxu0 0.0
    %2799 = vmatpush1.xpose.msra.mxu0 0.0
    %2800 = vmatprep.subr.mxu0 0.0
    %2801 = vmatpush1.xpose.msra.mxu0 0.0
    %2802 = vmatprep.subr.mxu0 0.0
    %2803 = vmatpush1.xpose.msra.mxu0 0.0
    %2804 = vmatprep.subr.mxu0 0.0
    %2805 = vmatpush1.xpose.msra.mxu0 0.0
    %2806 = vmatprep.mubr.f32.mxu0 0.0
    %2807 = vmatmul.mubr.f32.gmra.mrb[0].mxu0 %v2738
    %v2808 = vpop.f32.mrb[0].mxu0
    %v2809 = vadd.f32 %v1922, %v2808
    %v2810 = vpop.f32.mrb[0].mxu0
    %2811 = vdwg.mxu0
    %v2812 = vsel %vm479, %v2291, -inf
    %2813 = vmax.xlane.f32.xlu0 %v2812
    %v2814 = vpop.xlane.xlu0 %2813
    %v2815 = vsel %vm479, %v2365, -inf
    %2816 = vmax.xlane.f32.xlu0 %v2815
    %v2817 = vpop.xlane.xlu0 %2816
    %v2818 = vsel %vm479, %v2439, -inf
    %2819 = vmax.xlane.f32.xlu0 %v2818
    %v2820 = vpop.xlane.xlu0 %2819
    %v2821 = vsel %vm479, %v2513, -inf
    %2822 = vmax.xlane.f32.xlu0 %v2821
    %v2823 = vpop.xlane.xlu0 %2822
    %v2824 = vsel %vm479, %v2587, -inf
    %2825 = vmax.xlane.f32.xlu0 %v2824
    %v2826 = vpop.xlane.xlu0 %2825
    %v2827 = vsel %vm479, %v2661, -inf
    %2828 = vmax.xlane.f32.xlu0 %v2827
    %v2829 = vpop.xlane.xlu0 %2828
    %v2830 = vsel %vm479, %v2735, -inf
    %2831 = vmax.xlane.f32.xlu0 %v2830
    %v2832 = vpop.xlane.xlu0 %2831
    %v2833 = vsel %vm479, %v2809, -inf
    %2834 = vmax.xlane.f32.xlu0 %v2833
    %v2835 = vpop.xlane.xlu0 %2834
    %v2836 = vsub.f32 %v2291, %v2814
    %v2837 = vsub.f32 %v2365, %v2817
    %v2838 = vsub.f32 %v2439, %v2820
    %v2839 = vsub.f32 %v2513, %v2823
    %v2840 = vsub.f32 %v2587, %v2826
    %v2841 = vsub.f32 %v2661, %v2829
    %v2842 = vsub.f32 %v2735, %v2832
    %v2843 = vsub.f32 %v2809, %v2835
    %v2844 = vmul.f32 %v2836, 1.442695
    %v2845 = vpow.pop %v2844
    %v2846 = vmul.f32 %v2837, 1.442695
    %v2847 = vpow.pop %v2846
    %v2848 = vmul.f32 %v2838, 1.442695
    %v2849 = vpow.pop %v2848
    %v2850 = vmul.f32 %v2839, 1.442695
    %v2851 = vpow.pop %v2850
    %v2852 = vmul.f32 %v2840, 1.442695
    %v2853 = vpow.pop %v2852
    %v2854 = vmul.f32 %v2841, 1.442695
    %v2855 = vpow.pop %v2854
    %v2856 = vmul.f32 %v2842, 1.442695
    %v2857 = vpow.pop %v2856
    %v2858 = vmul.f32 %v2843, 1.442695
    %v2859 = vpow.pop %v2858
    %v2860 = vsel %vm479, %v2845, 0.0
    %2861 = vadd.xlane.f32.xlu0 %v2860
    %v2862 = vpop.xlane.xlu0 %2861
    %v2863 = vsel %vm479, %v2847, 0.0
    %2864 = vadd.xlane.f32.xlu0 %v2863
    %v2865 = vpop.xlane.xlu0 %2864
    %v2866 = vsel %vm479, %v2849, 0.0
    %2867 = vadd.xlane.f32.xlu0 %v2866
    %v2868 = vpop.xlane.xlu0 %2867
    %v2869 = vsel %vm479, %v2851, 0.0
    %2870 = vadd.xlane.f32.xlu0 %v2869
    %v2871 = vpop.xlane.xlu0 %2870
    %v2872 = vsel %vm479, %v2853, 0.0
    %2873 = vadd.xlane.f32.xlu0 %v2872
    %v2874 = vpop.xlane.xlu0 %2873
    %v2875 = vsel %vm479, %v2855, 0.0
    %2876 = vadd.xlane.f32.xlu0 %v2875
    %v2877 = vpop.xlane.xlu0 %2876
    %v2878 = vsel %vm479, %v2857, 0.0
    %2879 = vadd.xlane.f32.xlu0 %v2878
    %v2880 = vpop.xlane.xlu0 %2879
    %v2881 = vsel %vm479, %v2859, 0.0
    %2882 = vadd.xlane.f32.xlu0 %v2881
    %v2883 = vpop.xlane.xlu0 %2882
    %v2884 = vrcp.pop %v2862
    %v2885 = vrcp.pop %v2865
    %v2886 = vrcp.pop %v2868
    %v2887 = vrcp.pop %v2871
    %v2888 = vrcp.pop %v2874
    %v2889 = vrcp.pop %v2877
    %v2890 = vrcp.pop %v2880
    %v2891 = vrcp.pop %v2883
    %v2892 = vmul.f32 %v2845, %v2884
    %v2893 = vmul.f32 %v2847, %v2885
    %v2894 = vmul.f32 %v2849, %v2886
    %v2895 = vmul.f32 %v2851, %v2887
    %v2896 = vmul.f32 %v2853, %v2888
    %v2897 = vmul.f32 %v2855, %v2889
    %v2898 = vmul.f32 %v2857, %v2890
    %v2899 = vmul.f32 %v2859, %v2891
    %v2901 = vsel %vm479, %v2892, 0
    %2903 = vmatprep.subr.mxu0 0.0
    %2904 = vmatpush1.msra.mxu0 %v2164
    %2905 = vmatprep.subr.mxu0 0.0
    %2906 = vmatpush1.msra.mxu0 0.0
    %2907 = vmatprep.subr.mxu0 0.0
    %2908 = vmatpush1.msra.mxu0 0.0
    %2909 = vmatprep.subr.mxu0 0.0
    %2910 = vmatpush1.msra.mxu0 0.0
    %2911 = vmatprep.subr.mxu0 0.0
    %2912 = vmatpush1.msra.mxu0 0.0
    %2913 = vmatprep.subr.mxu0 0.0
    %2914 = vmatpush1.msra.mxu0 0.0
    %2915 = vmatprep.subr.mxu0 0.0
    %2916 = vmatpush1.msra.mxu0 0.0
    %2917 = vmatprep.subr.mxu0 0.0
    %2918 = vmatpush1.msra.mxu0 0.0
    %2919 = vmatprep.subr.mxu0 0.0
    %2920 = vmatpush1.msra.mxu0 0.0
    %2921 = vmatprep.subr.mxu0 0.0
    %2922 = vmatpush1.msra.mxu0 0.0
    %2923 = vmatprep.subr.mxu0 0.0
    %2924 = vmatpush1.msra.mxu0 0.0
    %2925 = vmatprep.subr.mxu0 0.0
    %2926 = vmatpush1.msra.mxu0 0.0
    %2927 = vmatprep.subr.mxu0 0.0
    %2928 = vmatpush1.msra.mxu0 0.0
    %2929 = vmatprep.subr.mxu0 0.0
    %2930 = vmatpush1.msra.mxu0 0.0
    %2931 = vmatprep.subr.mxu0 0.0
    %2932 = vmatpush1.msra.mxu0 0.0
    %2933 = vmatprep.subr.mxu0 0.0
    %2934 = vmatpush1.msra.mxu0 0.0
    %2935 = vmatprep.subr.mxu0 0.0
    %2936 = vmatpush1.msra.mxu0 0.0
    %2937 = vmatprep.subr.mxu0 0.0
    %2938 = vmatpush1.msra.mxu0 0.0
    %2939 = vmatprep.subr.mxu0 0.0
    %2940 = vmatpush1.msra.mxu0 0.0
    %2941 = vmatprep.subr.mxu0 0.0
    %2942 = vmatpush1.msra.mxu0 0.0
    %2943 = vmatprep.subr.mxu0 0.0
    %2944 = vmatpush1.msra.mxu0 0.0
    %2945 = vmatprep.subr.mxu0 0.0
    %2946 = vmatpush1.msra.mxu0 0.0
    %2947 = vmatprep.subr.mxu0 0.0
    %2948 = vmatpush1.msra.mxu0 0.0
    %2949 = vmatprep.subr.mxu0 0.0
    %2950 = vmatpush1.msra.mxu0 0.0
    %2951 = vmatprep.subr.mxu0 0.0
    %2952 = vmatpush1.msra.mxu0 0.0
    %2953 = vmatprep.subr.mxu0 0.0
    %2954 = vmatpush1.msra.mxu0 0.0
    %2955 = vmatprep.subr.mxu0 0.0
    %2956 = vmatpush1.msra.mxu0 0.0
    %2957 = vmatprep.subr.mxu0 0.0
    %2958 = vmatpush1.msra.mxu0 0.0
    %2959 = vmatprep.subr.mxu0 0.0
    %2960 = vmatpush1.msra.mxu0 0.0
    %2961 = vmatprep.subr.mxu0 0.0
    %2962 = vmatpush1.msra.mxu0 0.0
    %2963 = vmatprep.subr.mxu0 0.0
    %2964 = vmatpush1.msra.mxu0 0.0
    %2965 = vmatprep.subr.mxu0 0.0
    %2966 = vmatpush1.msra.mxu0 0.0
    %2967 = vmatprep.mubr.f32.mxu0 0.0
    %2968 = vmatmul.mubr.f32.gmra.mrb[0].mxu0 %v2901
    %v2969 = vpop.f32.mrb[0].mxu0
    %v2970 = vadd.f32 0.0, %v2969
    %v2971 = vpop.f32.mrb[0].mxu0
    %2972 = vdwg.mxu0
    %v2974 = vsel %vm479, %v2893, 0
    %2976 = vmatprep.subr.mxu0 0.0
    %2977 = vmatpush1.msra.mxu0 %v2169
    %2978 = vmatprep.subr.mxu0 0.0
    %2979 = vmatpush1.msra.mxu0 0.0
    %2980 = vmatprep.subr.mxu0 0.0
    %2981 = vmatpush1.msra.mxu0 0.0
    %2982 = vmatprep.subr.mxu0 0.0
    %2983 = vmatpush1.msra.mxu0 0.0
    %2984 = vmatprep.subr.mxu0 0.0
    %2985 = vmatpush1.msra.mxu0 0.0
    %2986 = vmatprep.subr.mxu0 0.0
    %2987 = vmatpush1.msra.mxu0 0.0
    %2988 = vmatprep.subr.mxu0 0.0
    %2989 = vmatpush1.msra.mxu0 0.0
    %2990 = vmatprep.subr.mxu0 0.0
    %2991 = vmatpush1.msra.mxu0 0.0
    %2992 = vmatprep.subr.mxu0 0.0
    %2993 = vmatpush1.msra.mxu0 0.0
    %2994 = vmatprep.subr.mxu0 0.0
    %2995 = vmatpush1.msra.mxu0 0.0
    %2996 = vmatprep.subr.mxu0 0.0
    %2997 = vmatpush1.msra.mxu0 0.0
    %2998 = vmatprep.subr.mxu0 0.0
    %2999 = vmatpush1.msra.mxu0 0.0
    %3000 = vmatprep.subr.mxu0 0.0
    %3001 = vmatpush1.msra.mxu0 0.0
    %3002 = vmatprep.subr.mxu0 0.0
    %3003 = vmatpush1.msra.mxu0 0.0
    %3004 = vmatprep.subr.mxu0 0.0
    %3005 = vmatpush1.msra.mxu0 0.0
    %3006 = vmatprep.subr.mxu0 0.0
    %3007 = vmatpush1.msra.mxu0 0.0
    %3008 = vmatprep.subr.mxu0 0.0
    %3009 = vmatpush1.msra.mxu0 0.0
    %3010 = vmatprep.subr.mxu0 0.0
    %3011 = vmatpush1.msra.mxu0 0.0
    %3012 = vmatprep.subr.mxu0 0.0
    %3013 = vmatpush1.msra.mxu0 0.0
    %3014 = vmatprep.subr.mxu0 0.0
    %3015 = vmatpush1.msra.mxu0 0.0
    %3016 = vmatprep.subr.mxu0 0.0
    %3017 = vmatpush1.msra.mxu0 0.0
    %3018 = vmatprep.subr.mxu0 0.0
    %3019 = vmatpush1.msra.mxu0 0.0
    %3020 = vmatprep.subr.mxu0 0.0
    %3021 = vmatpush1.msra.mxu0 0.0
    %3022 = vmatprep.subr.mxu0 0.0
    %3023 = vmatpush1.msra.mxu0 0.0
    %3024 = vmatprep.subr.mxu0 0.0
    %3025 = vmatpush1.msra.mxu0 0.0
    %3026 = vmatprep.subr.mxu0 0.0
    %3027 = vmatpush1.msra.mxu0 0.0
    %3028 = vmatprep.subr.mxu0 0.0
    %3029 = vmatpush1.msra.mxu0 0.0
    %3030 = vmatprep.subr.mxu0 0.0
    %3031 = vmatpush1.msra.mxu0 0.0
    %3032 = vmatprep.subr.mxu0 0.0
    %3033 = vmatpush1.msra.mxu0 0.0
    %3034 = vmatprep.subr.mxu0 0.0
    %3035 = vmatpush1.msra.mxu0 0.0
    %3036 = vmatprep.subr.mxu0 0.0
    %3037 = vmatpush1.msra.mxu0 0.0
    %3038 = vmatprep.subr.mxu0 0.0
    %3039 = vmatpush1.msra.mxu0 0.0
    %3040 = vmatprep.mubr.f32.mxu0 0.0
    %3041 = vmatmul.mubr.f32.gmra.mrb[0].mxu0 %v2974
    %v3042 = vpop.f32.mrb[0].mxu0
    %v3043 = vadd.f32 0.0, %v3042
    %v3044 = vpop.f32.mrb[0].mxu0
    %3045 = vdwg.mxu0
    %v3047 = vsel %vm479, %v2894, 0
    %3049 = vmatprep.subr.mxu0 0.0
    %3050 = vmatpush1.msra.mxu0 %v2203
    %3051 = vmatprep.subr.mxu0 0.0
    %3052 = vmatpush1.msra.mxu0 0.0
    %3053 = vmatprep.subr.mxu0 0.0
    %3054 = vmatpush1.msra.mxu0 0.0
    %3055 = vmatprep.subr.mxu0 0.0
    %3056 = vmatpush1.msra.mxu0 0.0
    %3057 = vmatprep.subr.mxu0 0.0
    %3058 = vmatpush1.msra.mxu0 0.0
    %3059 = vmatprep.subr.mxu0 0.0
    %3060 = vmatpush1.msra.mxu0 0.0
    %3061 = vmatprep.subr.mxu0 0.0
    %3062 = vmatpush1.msra.mxu0 0.0
    %3063 = vmatprep.subr.mxu0 0.0
    %3064 = vmatpush1.msra.mxu0 0.0
    %3065 = vmatprep.subr.mxu0 0.0
    %3066 = vmatpush1.msra.mxu0 0.0
    %3067 = vmatprep.subr.mxu0 0.0
    %3068 = vmatpush1.msra.mxu0 0.0
    %3069 = vmatprep.subr.mxu0 0.0
    %3070 = vmatpush1.msra.mxu0 0.0
    %3071 = vmatprep.subr.mxu0 0.0
    %3072 = vmatpush1.msra.mxu0 0.0
    %3073 = vmatprep.subr.mxu0 0.0
    %3074 = vmatpush1.msra.mxu0 0.0
    %3075 = vmatprep.subr.mxu0 0.0
    %3076 = vmatpush1.msra.mxu0 0.0
    %3077 = vmatprep.subr.mxu0 0.0
    %3078 = vmatpush1.msra.mxu0 0.0
    %3079 = vmatprep.subr.mxu0 0.0
    %3080 = vmatpush1.msra.mxu0 0.0
    %3081 = vmatprep.subr.mxu0 0.0
    %3082 = vmatpush1.msra.mxu0 0.0
    %3083 = vmatprep.subr.mxu0 0.0
    %3084 = vmatpush1.msra.mxu0 0.0
    %3085 = vmatprep.subr.mxu0 0.0
    %3086 = vmatpush1.msra.mxu0 0.0
    %3087 = vmatprep.subr.mxu0 0.0
    %3088 = vmatpush1.msra.mxu0 0.0
    %3089 = vmatprep.subr.mxu0 0.0
    %3090 = vmatpush1.msra.mxu0 0.0
    %3091 = vmatprep.subr.mxu0 0.0
    %3092 = vmatpush1.msra.mxu0 0.0
    %3093 = vmatprep.subr.mxu0 0.0
    %3094 = vmatpush1.msra.mxu0 0.0
    %3095 = vmatprep.subr.mxu0 0.0
    %3096 = vmatpush1.msra.mxu0 0.0
    %3097 = vmatprep.subr.mxu0 0.0
    %3098 = vmatpush1.msra.mxu0 0.0
    %3099 = vmatprep.subr.mxu0 0.0
    %3100 = vmatpush1.msra.mxu0 0.0
    %3101 = vmatprep.subr.mxu0 0.0
    %3102 = vmatpush1.msra.mxu0 0.0
    %3103 = vmatprep.subr.mxu0 0.0
    %3104 = vmatpush1.msra.mxu0 0.0
    %3105 = vmatprep.subr.mxu0 0.0
    %3106 = vmatpush1.msra.mxu0 0.0
    %3107 = vmatprep.subr.mxu0 0.0
    %3108 = vmatpush1.msra.mxu0 0.0
    %3109 = vmatprep.subr.mxu0 0.0
    %3110 = vmatpush1.msra.mxu0 0.0
    %3111 = vmatprep.subr.mxu0 0.0
    %3112 = vmatpush1.msra.mxu0 0.0
    %3113 = vmatprep.mubr.f32.mxu0 0.0
    %3114 = vmatmul.mubr.f32.gmra.mrb[0].mxu0 %v3047
    %v3115 = vpop.f32.mrb[0].mxu0
    %v3116 = vadd.f32 0.0, %v3115
    %v3117 = vpop.f32.mrb[0].mxu0
    %3118 = vdwg.mxu0
    %v3120 = vsel %vm479, %v2895, 0
    %3122 = vmatprep.subr.mxu0 0.0
    %3123 = vmatpush1.msra.mxu0 %v2205
    %3124 = vmatprep.subr.mxu0 0.0
    %3125 = vmatpush1.msra.mxu0 0.0
    %3126 = vmatprep.subr.mxu0 0.0
    %3127 = vmatpush1.msra.mxu0 0.0
    %3128 = vmatprep.subr.mxu0 0.0
    %3129 = vmatpush1.msra.mxu0 0.0
    %3130 = vmatprep.subr.mxu0 0.0
    %3131 = vmatpush1.msra.mxu0 0.0
    %3132 = vmatprep.subr.mxu0 0.0
    %3133 = vmatpush1.msra.mxu0 0.0
    %3134 = vmatprep.subr.mxu0 0.0
    %3135 = vmatpush1.msra.mxu0 0.0
    %3136 = vmatprep.subr.mxu0 0.0
    %3137 = vmatpush1.msra.mxu0 0.0
    %3138 = vmatprep.subr.mxu0 0.0
    %3139 = vmatpush1.msra.mxu0 0.0
    %3140 = vmatprep.subr.mxu0 0.0
    %3141 = vmatpush1.msra.mxu0 0.0
    %3142 = vmatprep.subr.mxu0 0.0
    %3143 = vmatpush1.msra.mxu0 0.0
    %3144 = vmatprep.subr.mxu0 0.0
    %3145 = vmatpush1.msra.mxu0 0.0
    %3146 = vmatprep.subr.mxu0 0.0
    %3147 = vmatpush1.msra.mxu0 0.0
    %3148 = vmatprep.subr.mxu0 0.0
    %3149 = vmatpush1.msra.mxu0 0.0
    %3150 = vmatprep.subr.mxu0 0.0
    %3151 = vmatpush1.msra.mxu0 0.0
    %3152 = vmatprep.subr.mxu0 0.0
    %3153 = vmatpush1.msra.mxu0 0.0
    %3154 = vmatprep.subr.mxu0 0.0
    %3155 = vmatpush1.msra.mxu0 0.0
    %3156 = vmatprep.subr.mxu0 0.0
    %3157 = vmatpush1.msra.mxu0 0.0
    %3158 = vmatprep.subr.mxu0 0.0
    %3159 = vmatpush1.msra.mxu0 0.0
    %3160 = vmatprep.subr.mxu0 0.0
    %3161 = vmatpush1.msra.mxu0 0.0
    %3162 = vmatprep.subr.mxu0 0.0
    %3163 = vmatpush1.msra.mxu0 0.0
    %3164 = vmatprep.subr.mxu0 0.0
    %3165 = vmatpush1.msra.mxu0 0.0
    %3166 = vmatprep.subr.mxu0 0.0
    %3167 = vmatpush1.msra.mxu0 0.0
    %3168 = vmatprep.subr.mxu0 0.0
    %3169 = vmatpush1.msra.mxu0 0.0
    %3170 = vmatprep.subr.mxu0 0.0
    %3171 = vmatpush1.msra.mxu0 0.0
    %3172 = vmatprep.subr.mxu0 0.0
    %3173 = vmatpush1.msra.mxu0 0.0
    %3174 = vmatprep.subr.mxu0 0.0
    %3175 = vmatpush1.msra.mxu0 0.0
    %3176 = vmatprep.subr.mxu0 0.0
    %3177 = vmatpush1.msra.mxu0 0.0
    %3178 = vmatprep.subr.mxu0 0.0
    %3179 = vmatpush1.msra.mxu0 0.0
    %3180 = vmatprep.subr.mxu0 0.0
    %3181 = vmatpush1.msra.mxu0 0.0
    %3182 = vmatprep.subr.mxu0 0.0
    %3183 = vmatpush1.msra.mxu0 0.0
    %3184 = vmatprep.subr.mxu0 0.0
    %3185 = vmatpush1.msra.mxu0 0.0
    %3186 = vmatprep.mubr.f32.mxu0 0.0
    %3187 = vmatmul.mubr.f32.gmra.mrb[0].mxu0 %v3120
    %v3188 = vpop.f32.mrb[0].mxu0
    %v3189 = vadd.f32 0.0, %v3188
    %v3190 = vpop.f32.mrb[0].mxu0
    %3191 = vdwg.mxu0
    %v3193 = vsel %vm479, %v2896, 0
    %3195 = vmatprep.subr.mxu0 0.0
    %3196 = vmatpush1.msra.mxu0 %v2209
    %3197 = vmatprep.subr.mxu0 0.0
    %3198 = vmatpush1.msra.mxu0 0.0
    %3199 = vmatprep.subr.mxu0 0.0
    %3200 = vmatpush1.msra.mxu0 0.0
    %3201 = vmatprep.subr.mxu0 0.0
    %3202 = vmatpush1.msra.mxu0 0.0
    %3203 = vmatprep.subr.mxu0 0.0
    %3204 = vmatpush1.msra.mxu0 0.0
    %3205 = vmatprep.subr.mxu0 0.0
    %3206 = vmatpush1.msra.mxu0 0.0
    %3207 = vmatprep.subr.mxu0 0.0
    %3208 = vmatpush1.msra.mxu0 0.0
    %3209 = vmatprep.subr.mxu0 0.0
    %3210 = vmatpush1.msra.mxu0 0.0
    %3211 = vmatprep.subr.mxu0 0.0
    %3212 = vmatpush1.msra.mxu0 0.0
    %3213 = vmatprep.subr.mxu0 0.0
    %3214 = vmatpush1.msra.mxu0 0.0
    %3215 = vmatprep.subr.mxu0 0.0
    %3216 = vmatpush1.msra.mxu0 0.0
    %3217 = vmatprep.subr.mxu0 0.0
    %3218 = vmatpush1.msra.mxu0 0.0
    %3219 = vmatprep.subr.mxu0 0.0
    %3220 = vmatpush1.msra.mxu0 0.0
    %3221 = vmatprep.subr.mxu0 0.0
    %3222 = vmatpush1.msra.mxu0 0.0
    %3223 = vmatprep.subr.mxu0 0.0
    %3224 = vmatpush1.msra.mxu0 0.0
    %3225 = vmatprep.subr.mxu0 0.0
    %3226 = vmatpush1.msra.mxu0 0.0
    %3227 = vmatprep.subr.mxu0 0.0
    %3228 = vmatpush1.msra.mxu0 0.0
    %3229 = vmatprep.subr.mxu0 0.0
    %3230 = vmatpush1.msra.mxu0 0.0
    %3231 = vmatprep.subr.mxu0 0.0
    %3232 = vmatpush1.msra.mxu0 0.0
    %3233 = vmatprep.subr.mxu0 0.0
    %3234 = vmatpush1.msra.mxu0 0.0
    %3235 = vmatprep.subr.mxu0 0.0
    %3236 = vmatpush1.msra.mxu0 0.0
    %3237 = vmatprep.subr.mxu0 0.0
    %3238 = vmatpush1.msra.mxu0 0.0
    %3239 = vmatprep.subr.mxu0 0.0
    %3240 = vmatpush1.msra.mxu0 0.0
    %3241 = vmatprep.subr.mxu0 0.0
    %3242 = vmatpush1.msra.mxu0 0.0
    %3243 = vmatprep.subr.mxu0 0.0
    %3244 = vmatpush1.msra.mxu0 0.0
    %3245 = vmatprep.subr.mxu0 0.0
    %3246 = vmatpush1.msra.mxu0 0.0
    %3247 = vmatprep.subr.mxu0 0.0
    %3248 = vmatpush1.msra.mxu0 0.0
    %3249 = vmatprep.subr.mxu0 0.0
    %3250 = vmatpush1.msra.mxu0 0.0
    %3251 = vmatprep.subr.mxu0 0.0
    %3252 = vmatpush1.msra.mxu0 0.0
    %3253 = vmatprep.subr.mxu0 0.0
    %3254 = vmatpush1.msra.mxu0 0.0
    %3255 = vmatprep.subr.mxu0 0.0
    %3256 = vmatpush1.msra.mxu0 0.0
    %3257 = vmatprep.subr.mxu0 0.0
    %3258 = vmatpush1.msra.mxu0 0.0
    %3259 = vmatprep.mubr.f32.mxu0 0.0
    %3260 = vmatmul.mubr.f32.gmra.mrb[0].mxu0 %v3193
    %v3261 = vpop.f32.mrb[0].mxu0
    %v3262 = vadd.f32 0.0, %v3261
    %v3263 = vpop.f32.mrb[0].mxu0
    %3264 = vdwg.mxu0
    %v3266 = vsel %vm479, %v2897, 0
    %3268 = vmatprep.subr.mxu0 0.0
    %3269 = vmatpush1.msra.mxu0 %v2211
    %3270 = vmatprep.subr.mxu0 0.0
    %3271 = vmatpush1.msra.mxu0 0.0
    %3272 = vmatprep.subr.mxu0 0.0
    %3273 = vmatpush1.msra.mxu0 0.0
    %3274 = vmatprep.subr.mxu0 0.0
    %3275 = vmatpush1.msra.mxu0 0.0
    %3276 = vmatprep.subr.mxu0 0.0
    %3277 = vmatpush1.msra.mxu0 0.0
    %3278 = vmatprep.subr.mxu0 0.0
    %3279 = vmatpush1.msra.mxu0 0.0
    %3280 = vmatprep.subr.mxu0 0.0
    %3281 = vmatpush1.msra.mxu0 0.0
    %3282 = vmatprep.subr.mxu0 0.0
    %3283 = vmatpush1.msra.mxu0 0.0
    %3284 = vmatprep.subr.mxu0 0.0
    %3285 = vmatpush1.msra.mxu0 0.0
    %3286 = vmatprep.subr.mxu0 0.0
    %3287 = vmatpush1.msra.mxu0 0.0
    %3288 = vmatprep.subr.mxu0 0.0
    %3289 = vmatpush1.msra.mxu0 0.0
    %3290 = vmatprep.subr.mxu0 0.0
    %3291 = vmatpush1.msra.mxu0 0.0
    %3292 = vmatprep.subr.mxu0 0.0
    %3293 = vmatpush1.msra.mxu0 0.0
    %3294 = vmatprep.subr.mxu0 0.0
    %3295 = vmatpush1.msra.mxu0 0.0
    %3296 = vmatprep.subr.mxu0 0.0
    %3297 = vmatpush1.msra.mxu0 0.0
    %3298 = vmatprep.subr.mxu0 0.0
    %3299 = vmatpush1.msra.mxu0 0.0
    %3300 = vmatprep.subr.mxu0 0.0
    %3301 = vmatpush1.msra.mxu0 0.0
    %3302 = vmatprep.subr.mxu0 0.0
    %3303 = vmatpush1.msra.mxu0 0.0
    %3304 = vmatprep.subr.mxu0 0.0
    %3305 = vmatpush1.msra.mxu0 0.0
    %3306 = vmatprep.subr.mxu0 0.0
    %3307 = vmatpush1.msra.mxu0 0.0
    %3308 = vmatprep.subr.mxu0 0.0
    %3309 = vmatpush1.msra.mxu0 0.0
    %3310 = vmatprep.subr.mxu0 0.0
    %3311 = vmatpush1.msra.mxu0 0.0
    %3312 = vmatprep.subr.mxu0 0.0
    %3313 = vmatpush1.msra.mxu0 0.0
    %3314 = vmatprep.subr.mxu0 0.0
    %3315 = vmatpush1.msra.mxu0 0.0
    %3316 = vmatprep.subr.mxu0 0.0
    %3317 = vmatpush1.msra.mxu0 0.0
    %3318 = vmatprep.subr.mxu0 0.0
    %3319 = vmatpush1.msra.mxu0 0.0
    %3320 = vmatprep.subr.mxu0 0.0
    %3321 = vmatpush1.msra.mxu0 0.0
    %3322 = vmatprep.subr.mxu0 0.0
    %3323 = vmatpush1.msra.mxu0 0.0
    %3324 = vmatprep.subr.mxu0 0.0
    %3325 = vmatpush1.msra.mxu0 0.0
    %3326 = vmatprep.subr.mxu0 0.0
    %3327 = vmatpush1.msra.mxu0 0.0
    %3328 = vmatprep.subr.mxu0 0.0
    %3329 = vmatpush1.msra.mxu0 0.0
    %3330 = vmatprep.subr.mxu0 0.0
    %3331 = vmatpush1.msra.mxu0 0.0
    %3332 = vmatprep.mubr.f32.mxu0 0.0
    %3333 = vmatmul.mubr.f32.gmra.mrb[0].mxu0 %v3266
    %v3334 = vpop.f32.mrb[0].mxu0
    %v3335 = vadd.f32 0.0, %v3334
    %v3336 = vpop.f32.mrb[0].mxu0
    %3337 = vdwg.mxu0
    %v3339 = vsel %vm479, %v2898, 0
    %3341 = vmatprep.subr.mxu0 0.0
    %3342 = vmatpush1.msra.mxu0 %v2215
    %3343 = vmatprep.subr.mxu0 0.0
    %3344 = vmatpush1.msra.mxu0 0.0
    %3345 = vmatprep.subr.mxu0 0.0
    %3346 = vmatpush1.msra.mxu0 0.0
    %3347 = vmatprep.subr.mxu0 0.0
    %3348 = vmatpush1.msra.mxu0 0.0
    %3349 = vmatprep.subr.mxu0 0.0
    %3350 = vmatpush1.msra.mxu0 0.0
    %3351 = vmatprep.subr.mxu0 0.0
    %3352 = vmatpush1.msra.mxu0 0.0
    %3353 = vmatprep.subr.mxu0 0.0
    %3354 = vmatpush1.msra.mxu0 0.0
    %3355 = vmatprep.subr.mxu0 0.0
    %3356 = vmatpush1.msra.mxu0 0.0
    %3357 = vmatprep.subr.mxu0 0.0
    %3358 = vmatpush1.msra.mxu0 0.0
    %3359 = vmatprep.subr.mxu0 0.0
    %3360 = vmatpush1.msra.mxu0 0.0
    %3361 = vmatprep.subr.mxu0 0.0
    %3362 = vmatpush1.msra.mxu0 0.0
    %3363 = vmatprep.subr.mxu0 0.0
    %3364 = vmatpush1.msra.mxu0 0.0
    %3365 = vmatprep.subr.mxu0 0.0
    %3366 = vmatpush1.msra.mxu0 0.0
    %3367 = vmatprep.subr.mxu0 0.0
    %3368 = vmatpush1.msra.mxu0 0.0
    %3369 = vmatprep.subr.mxu0 0.0
    %3370 = vmatpush1.msra.mxu0 0.0
    %3371 = vmatprep.subr.mxu0 0.0
    %3372 = vmatpush1.msra.mxu0 0.0
    %3373 = vmatprep.subr.mxu0 0.0
    %3374 = vmatpush1.msra.mxu0 0.0
    %3375 = vmatprep.subr.mxu0 0.0
    %3376 = vmatpush1.msra.mxu0 0.0
    %3377 = vmatprep.subr.mxu0 0.0
    %3378 = vmatpush1.msra.mxu0 0.0
    %3379 = vmatprep.subr.mxu0 0.0
    %3380 = vmatpush1.msra.mxu0 0.0
    %3381 = vmatprep.subr.mxu0 0.0
    %3382 = vmatpush1.msra.mxu0 0.0
    %3383 = vmatprep.subr.mxu0 0.0
    %3384 = vmatpush1.msra.mxu0 0.0
    %3385 = vmatprep.subr.mxu0 0.0
    %3386 = vmatpush1.msra.mxu0 0.0
    %3387 = vmatprep.subr.mxu0 0.0
    %3388 = vmatpush1.msra.mxu0 0.0
    %3389 = vmatprep.subr.mxu0 0.0
    %3390 = vmatpush1.msra.mxu0 0.0
    %3391 = vmatprep.subr.mxu0 0.0
    %3392 = vmatpush1.msra.mxu0 0.0
    %3393 = vmatprep.subr.mxu0 0.0
    %3394 = vmatpush1.msra.mxu0 0.0
    %3395 = vmatprep.subr.mxu0 0.0
    %3396 = vmatpush1.msra.mxu0 0.0
    %3397 = vmatprep.subr.mxu0 0.0
    %3398 = vmatpush1.msra.mxu0 0.0
    %3399 = vmatprep.subr.mxu0 0.0
    %3400 = vmatpush1.msra.mxu0 0.0
    %3401 = vmatprep.subr.mxu0 0.0
    %3402 = vmatpush1.msra.mxu0 0.0
    %3403 = vmatprep.subr.mxu0 0.0
    %3404 = vmatpush1.msra.mxu0 0.0
    %3405 = vmatprep.mubr.f32.mxu0 0.0
    %3406 = vmatmul.mubr.f32.gmra.mrb[0].mxu0 %v3339
    %v3407 = vpop.f32.mrb[0].mxu0
    %v3408 = vadd.f32 0.0, %v3407
    %v3409 = vpop.f32.mrb[0].mxu0
    %3410 = vdwg.mxu0
    %v3412 = vsel %vm479, %v2899, 0
    %3414 = vmatprep.subr.mxu0 0.0
    %3415 = vmatpush1.msra.mxu0 %v2217
    %3416 = vmatprep.subr.mxu0 0.0
    %3417 = vmatpush1.msra.mxu0 0.0
    %3418 = vmatprep.subr.mxu0 0.0
    %3419 = vmatpush1.msra.mxu0 0.0
    %3420 = vmatprep.subr.mxu0 0.0
    %3421 = vmatpush1.msra.mxu0 0.0
    %3422 = vmatprep.subr.mxu0 0.0
    %3423 = vmatpush1.msra.mxu0 0.0
    %3424 = vmatprep.subr.mxu0 0.0
    %3425 = vmatpush1.msra.mxu0 0.0
    %3426 = vmatprep.subr.mxu0 0.0
    %3427 = vmatpush1.msra.mxu0 0.0
    %3428 = vmatprep.subr.mxu0 0.0
    %3429 = vmatpush1.msra.mxu0 0.0
    %3430 = vmatprep.subr.mxu0 0.0
    %3431 = vmatpush1.msra.mxu0 0.0
    %3432 = vmatprep.subr.mxu0 0.0
    %3433 = vmatpush1.msra.mxu0 0.0
    %3434 = vmatprep.subr.mxu0 0.0
    %3435 = vmatpush1.msra.mxu0 0.0
    %3436 = vmatprep.subr.mxu0 0.0
    %3437 = vmatpush1.msra.mxu0 0.0
    %3438 = vmatprep.subr.mxu0 0.0
    %3439 = vmatpush1.msra.mxu0 0.0
    %3440 = vmatprep.subr.mxu0 0.0
    %3441 = vmatpush1.msra.mxu0 0.0
    %3442 = vmatprep.subr.mxu0 0.0
    %3443 = vmatpush1.msra.mxu0 0.0
    %3444 = vmatprep.subr.mxu0 0.0
    %3445 = vmatpush1.msra.mxu0 0.0
    %3446 = vmatprep.subr.mxu0 0.0
    %3447 = vmatpush1.msra.mxu0 0.0
    %3448 = vmatprep.subr.mxu0 0.0
    %3449 = vmatpush1.msra.mxu0 0.0
    %3450 = vmatprep.subr.mxu0 0.0
    %3451 = vmatpush1.msra.mxu0 0.0
    %3452 = vmatprep.subr.mxu0 0.0
    %3453 = vmatpush1.msra.mxu0 0.0
    %3454 = vmatprep.subr.mxu0 0.0
    %3455 = vmatpush1.msra.mxu0 0.0
    %3456 = vmatprep.subr.mxu0 0.0
    %3457 = vmatpush1.msra.mxu0 0.0
    %3458 = vmatprep.subr.mxu0 0.0
    %3459 = vmatpush1.msra.mxu0 0.0
    %3460 = vmatprep.subr.mxu0 0.0
    %3461 = vmatpush1.msra.mxu0 0.0
    %3462 = vmatprep.subr.mxu0 0.0
    %3463 = vmatpush1.msra.mxu0 0.0
    %3464 = vmatprep.subr.mxu0 0.0
    %3465 = vmatpush1.msra.mxu0 0.0
    %3466 = vmatprep.subr.mxu0 0.0
    %3467 = vmatpush1.msra.mxu0 0.0
    %3468 = vmatprep.subr.mxu0 0.0
    %3469 = vmatpush1.msra.mxu0 0.0
    %3470 = vmatprep.subr.mxu0 0.0
    %3471 = vmatpush1.msra.mxu0 0.0
    %3472 = vmatprep.subr.mxu0 0.0
    %3473 = vmatpush1.msra.mxu0 0.0
    %3474 = vmatprep.subr.mxu0 0.0
    %3475 = vmatpush1.msra.mxu0 0.0
    %3476 = vmatprep.subr.mxu0 0.0
    %3477 = vmatpush1.msra.mxu0 0.0
    %3478 = vmatprep.mubr.f32.mxu0 0.0
    %3479 = vmatmul.mubr.f32.gmra.mrb[0].mxu0 %v3412
    %v3480 = vpop.f32.mrb[0].mxu0
    %v3481 = vadd.f32 0.0, %v3480
    %v3482 = vpop.f32.mrb[0].mxu0
    %3483 = vdwg.mxu0
    %3486 = vrot.lane.b32.xlu0 %v3116, 8
    %v3487 = vpop.permute.xlu0 %3486
    %3488 = vrot.lane.b32.xlu0 %v3189, 8
    %v3489 = vpop.permute.xlu0 %3488
    %3494 = vrot.lane.b32.xlu0 %v3262, 16
    %v3495 = vpop.permute.xlu0 %3494
    %3496 = vrot.lane.b32.xlu0 %v3335, 16
    %v3497 = vpop.permute.xlu0 %3496
    %3502 = vrot.lane.b32.xlu0 %v3408, 24
    %v3503 = vpop.permute.xlu0 %3502
    %3504 = vrot.lane.b32.xlu0 %v3481, 24
    %v3505 = vpop.permute.xlu0 %3504
    %v3508 = vsel %vm479, %v2970, %v3487
    %v3509 = vsel %vm479, %v3043, %v3489
    %v3510 = vsel %vm1770, %v3508, %v3495
    %v3511 = vsel %vm1770, %v3509, %v3497
    %v3512 = vsel %vm1773, %v3510, %v3503
    %v3513 = vsel %vm1773, %v3511, %v3505
    %v3514 = vlaneseq
    %v3515 = vshrl.u32 %v3514, 7
    %v3516 = vsub.s32 5, %v3515
    %v3517 = vrot.slane %v93, %v3516
    %v3519 = vsel %vm126, %v3512, 0
    %v3522 = vsel %vm126, %v3513, 0
    %3524 = vmatprep.subr.mxu0 0.0
    %3525 = vmatpush1.msra.mxu0 %v122
    %3526 = vmatprep.subr.mxu0 0.0
    %3527 = vmatpush1.msra.mxu0 %v123
    %3528 = vmatprep.subr.mxu0 0.0
    %3529 = vmatpush1.msra.mxu0 %v124
    %3530 = vmatprep.subr.mxu0 0.0
    %3531 = vmatpush1.msra.mxu0 %v125
    %3532 = vmatprep.subr.mxu0 0.0
    %3533 = vmatpush1.msra.mxu0 0.0
    %3534 = vmatprep.subr.mxu0 0.0
    %3535 = vmatpush1.msra.mxu0 0.0
    %3536 = vmatprep.subr.mxu0 0.0
    %3537 = vmatpush1.msra.mxu0 0.0
    %3538 = vmatprep.subr.mxu0 0.0
    %3539 = vmatpush1.msra.mxu0 0.0
    %3540 = vmatprep.subr.mxu0 0.0
    %3541 = vmatpush1.msra.mxu0 0.0
    %3542 = vmatprep.subr.mxu0 0.0
    %3543 = vmatpush1.msra.mxu0 0.0
    %3544 = vmatprep.subr.mxu0 0.0
    %3545 = vmatpush1.msra.mxu0 0.0
    %3546 = vmatprep.subr.mxu0 0.0
    %3547 = vmatpush1.msra.mxu0 0.0
    %3548 = vmatprep.subr.mxu0 0.0
    %3549 = vmatpush1.msra.mxu0 0.0
    %3550 = vmatprep.subr.mxu0 0.0
    %3551 = vmatpush1.msra.mxu0 0.0
    %3552 = vmatprep.subr.mxu0 0.0
    %3553 = vmatpush1.msra.mxu0 0.0
    %3554 = vmatprep.subr.mxu0 0.0
    %3555 = vmatpush1.msra.mxu0 0.0
    %3556 = vmatprep.subr.mxu0 0.0
    %3557 = vmatpush1.msra.mxu0 0.0
    %3558 = vmatprep.subr.mxu0 0.0
    %3559 = vmatpush1.msra.mxu0 0.0
    %3560 = vmatprep.subr.mxu0 0.0
    %3561 = vmatpush1.msra.mxu0 0.0
    %3562 = vmatprep.subr.mxu0 0.0
    %3563 = vmatpush1.msra.mxu0 0.0
    %3564 = vmatprep.subr.mxu0 0.0
    %3565 = vmatpush1.msra.mxu0 0.0
    %3566 = vmatprep.subr.mxu0 0.0
    %3567 = vmatpush1.msra.mxu0 0.0
    %3568 = vmatprep.subr.mxu0 0.0
    %3569 = vmatpush1.msra.mxu0 0.0
    %3570 = vmatprep.subr.mxu0 0.0
    %3571 = vmatpush1.msra.mxu0 0.0
    %3572 = vmatprep.subr.mxu0 0.0
    %3573 = vmatpush1.msra.mxu0 0.0
    %3574 = vmatprep.subr.mxu0 0.0
    %3575 = vmatpush1.msra.mxu0 0.0
    %3576 = vmatprep.subr.mxu0 0.0
    %3577 = vmatpush1.msra.mxu0 0.0
    %3578 = vmatprep.subr.mxu0 0.0
    %3579 = vmatpush1.msra.mxu0 0.0
    %3580 = vmatprep.subr.mxu0 0.0
    %3581 = vmatpush1.msra.mxu0 0.0
    %3582 = vmatprep.subr.mxu0 0.0
    %3583 = vmatpush1.msra.mxu0 0.0
    %3584 = vmatprep.subr.mxu0 0.0
    %3585 = vmatpush1.msra.mxu0 0.0
    %3586 = vmatprep.subr.mxu0 0.0
    %3587 = vmatpush1.msra.mxu0 0.0
    %3588 = vmatprep.mubr.f32.mxu0 0.0
    %3589 = vmatmul.mubr.f32.gmra.mrb[0].mxu0 %v3519
    %v3590 = vpop.f32.mrb[0].mxu0
    %v3591 = vadd.f32 %v3517, %v3590
    %v3592 = vpop.f32.mrb[0].mxu0
    %3593 = vmatprep.mubr.f32.mxu0 0.0
    %3594 = vmatmul.mubr.f32.gmra.mrb[0].mxu0 %v3522
    %v3595 = vpop.f32.mrb[0].mxu0
    %v3596 = vadd.f32 %v3517, %v3595
    %v3597 = vpop.f32.mrb[0].mxu0
    %3598 = vdwg.mxu0
    %v3599 = vadd.f32 %v1861, %v3591
    %v3600 = vadd.f32 %v1862, %v3596
    %v3601 = vsel %vm126, %v3599, 0.0
    %3602 = vadd.xlane.f32.xlu0 %v3601
    %v3603 = vpop.xlane.xlu0 %3602
    %v3604 = vsel %vm126, %v3600, 0.0
    %3605 = vadd.xlane.f32.xlu0 %v3604
    %v3606 = vpop.xlane.xlu0 %3605
    %v3607 = vmul.f32 %v3603, %v133
    %v3608 = vmul.f32 %v3606, %v133
    %v3609 = vsub.f32 %v3599, %v3607
    %v3610 = vsub.f32 %v3600, %v3608
    %v3611 = vmul.f32 %v3609, %v3609
    %v3612 = vmul.f32 %v3610, %v3610
    %v3613 = vsel %vm126, %v3611, 0.0
    %3614 = vadd.xlane.f32.xlu0 %v3613
    %v3615 = vpop.xlane.xlu0 %3614
    %v3616 = vsel %vm126, %v3612, 0.0
    %3617 = vadd.xlane.f32.xlu0 %v3616
    %v3618 = vpop.xlane.xlu0 %3617
    %v3619 = vmul.f32 %v3615, 0.032258064
    %v3620 = vmul.f32 %v3618, 0.032258064
    %v3621 = vrsqrt.pop %v3619
    %v3622 = vmul.f32 %v3619, %v3621
    %vm3623 = vcmp.eq.f32.partialorder %v3619, inf
    %v3624 = vsel %vm3623, %v3619, %v3622
    %vm3625 = vcmp.eq.f32.partialorder %v3619, 0.0
    %v3626 = vand.u32 %v3619, 2147483648
    %v3627 = vsel %vm3625, %v3626, %v3624
    %v3628 = vrsqrt.pop %v3620
    %v3629 = vmul.f32 %v3620, %v3628
    %vm3630 = vcmp.eq.f32.partialorder %v3620, inf
    %v3631 = vsel %vm3630, %v3620, %v3629
    %vm3632 = vcmp.eq.f32.partialorder %v3620, 0.0
    %v3633 = vand.u32 %v3620, 2147483648
    %v3634 = vsel %vm3632, %v3633, %v3631
    %v3635 = vadd.f32 %v3627, 1e-06
    %v3636 = vadd.f32 %v3634, 1e-06
    %v3637 = vrcp.pop %v3635
    %v3638 = vrcp.pop %v3636
    %v3639 = vlaneseq
    %v3640 = vshrl.u32 %v3639, 7
    %v3641 = vsub.s32 2, %v3640
    %v3642 = vrot.slane %v92, %v3641
    %v3643 = vmul.f32 %v3642, %v3609
    %v3644 = vmul.f32 %v3642, %v3610
    %v3645 = vmul.f32 %v3643, %v3637
    %v3646 = vmul.f32 %v3644, %v3638
    %v3647 = vlaneseq
    %v3648 = vshrl.u32 %v3647, 7
    %v3649 = vsub.s32 5, %v3648
    %v3650 = vrot.slane %v92, %v3649
    %v3651 = vadd.f32 %v3645, %v3650
    %v3652 = vadd.f32 %v3646, %v3650
    %v3653 = vld [vmem:[%s6] sm:$0xff]
    %v3654 = vld [vmem:[%s6 + $0x8] sm:$0xff]
    %v3655 = vld [vmem:[%s6 + $0x10] sm:$0xff]
    %v3656 = vld [vmem:[%s6 + $0x18] sm:$0xff]
    %v3657 = vld [vmem:[%s7] sm:$0x1]
    %v3659 = vlaneseq
    %v3660 = vshrl.u32 %v3659, 7
    %v3661 = vsub.s32 0, %v3660
    %v3662 = vrot.slane %v3657, %v3661
    %v3665 = vsel %vm126, %v3651, 0
    %v3668 = vsel %vm126, %v3652, 0
    %3670 = vmatprep.subr.mxu0 0.0
    %3671 = vmatpush1.msra.mxu0 %v3653
    %3672 = vmatprep.subr.mxu0 0.0
    %3673 = vmatpush1.msra.mxu0 %v3654
    %3674 = vmatprep.subr.mxu0 0.0
    %3675 = vmatpush1.msra.mxu0 %v3655
    %3676 = vmatprep.subr.mxu0 0.0
    %3677 = vmatpush1.msra.mxu0 %v3656
    %3678 = vmatprep.subr.mxu0 0.0
    %3679 = vmatpush1.msra.mxu0 0.0
    %3680 = vmatprep.subr.mxu0 0.0
    %3681 = vmatpush1.msra.mxu0 0.0
    %3682 = vmatprep.subr.mxu0 0.0
    %3683 = vmatpush1.msra.mxu0 0.0
    %3684 = vmatprep.subr.mxu0 0.0
    %3685 = vmatpush1.msra.mxu0 0.0
    %3686 = vmatprep.subr.mxu0 0.0
    %3687 = vmatpush1.msra.mxu0 0.0
    %3688 = vmatprep.subr.mxu0 0.0
    %3689 = vmatpush1.msra.mxu0 0.0
    %3690 = vmatprep.subr.mxu0 0.0
    %3691 = vmatpush1.msra.mxu0 0.0
    %3692 = vmatprep.subr.mxu0 0.0
    %3693 = vmatpush1.msra.mxu0 0.0
    %3694 = vmatprep.subr.mxu0 0.0
    %3695 = vmatpush1.msra.mxu0 0.0
    %3696 = vmatprep.subr.mxu0 0.0
    %3697 = vmatpush1.msra.mxu0 0.0
    %3698 = vmatprep.subr.mxu0 0.0
    %3699 = vmatpush1.msra.mxu0 0.0
    %3700 = vmatprep.subr.mxu0 0.0
    %3701 = vmatpush1.msra.mxu0 0.0
    %3702 = vmatprep.subr.mxu0 0.0
    %3703 = vmatpush1.msra.mxu0 0.0
    %3704 = vmatprep.subr.mxu0 0.0
    %3705 = vmatpush1.msra.mxu0 0.0
    %3706 = vmatprep.subr.mxu0 0.0
    %3707 = vmatpush1.msra.mxu0 0.0
    %3708 = vmatprep.subr.mxu0 0.0
    %3709 = vmatpush1.msra.mxu0 0.0
    %3710 = vmatprep.subr.mxu0 0.0
    %3711 = vmatpush1.msra.mxu0 0.0
    %3712 = vmatprep.subr.mxu0 0.0
    %3713 = vmatpush1.msra.mxu0 0.0
    %3714 = vmatprep.subr.mxu0 0.0
    %3715 = vmatpush1.msra.mxu0 0.0
    %3716 = vmatprep.subr.mxu0 0.0
    %3717 = vmatpush1.msra.mxu0 0.0
    %3718 = vmatprep.subr.mxu0 0.0
    %3719 = vmatpush1.msra.mxu0 0.0
    %3720 = vmatprep.subr.mxu0 0.0
    %3721 = vmatpush1.msra.mxu0 0.0
    %3722 = vmatprep.subr.mxu0 0.0
    %3723 = vmatpush1.msra.mxu0 0.0
    %3724 = vmatprep.subr.mxu0 0.0
    %3725 = vmatpush1.msra.mxu0 0.0
    %3726 = vmatprep.subr.mxu0 0.0
    %3727 = vmatpush1.msra.mxu0 0.0
    %3728 = vmatprep.subr.mxu0 0.0
    %3729 = vmatpush1.msra.mxu0 0.0
    %3730 = vmatprep.subr.mxu0 0.0
    %3731 = vmatpush1.msra.mxu0 0.0
    %3732 = vmatprep.subr.mxu0 0.0
    %3733 = vmatpush1.msra.mxu0 0.0
    %3734 = vmatprep.mubr.f32.mxu0 0.0
    %3735 = vmatmul.mubr.f32.gmra.mrb[0].mxu0 %v3665
    %v3736 = vpop.f32.mrb[0].mxu0
    %v3737 = vadd.f32 %v3662, %v3736
    %v3738 = vpop.f32.mrb[0].mxu0
    %3739 = vmatprep.mubr.f32.mxu0 0.0
    %3740 = vmatmul.mubr.f32.gmra.mrb[0].mxu0 %v3668
    %v3741 = vpop.f32.mrb[0].mxu0
    %v3742 = vadd.f32 %v3662, %v3741
    %v3743 = vpop.f32.mrb[0].mxu0
    %3744 = vdwg.mxu0
    %v3745 = vmax.f32 %v3737, 0.0
    %v3746 = vmax.f32 %v3742, 0.0
    %v3747 = vld [vmem:[%s8] sm:$0xff]
    %v3748 = vld [vmem:[%s8 + $0x8] sm:$0xff]
    %v3749 = vld [vmem:[%s8 + $0x10] sm:$0xff]
    %v3750 = vld [vmem:[%s8 + $0x18] sm:$0xff]
    %v3751 = vld [vmem:[%s8 + $0x20] sm:$0xff]
    %v3752 = vld [vmem:[%s8 + $0x28] sm:$0xff]
    %v3753 = vld [vmem:[%s8 + $0x30] sm:$0xff]
    %v3754 = vld [vmem:[%s8 + $0x38] sm:$0xff]
    %vm3755 = vcmask 523264
    %v3757 = vsel %vm3755, %v3745, 0
    %v3760 = vsel %vm3755, %v3746, 0
    %3762 = vmatprep.subr.mxu0 0.0
    %3763 = vmatpush1.msra.mxu0 %v3747
    %3764 = vmatprep.subr.mxu0 0.0
    %3765 = vmatpush1.msra.mxu0 %v3748
    %3766 = vmatprep.subr.mxu0 0.0
    %3767 = vmatpush1.msra.mxu0 %v3749
    %3768 = vmatprep.subr.mxu0 0.0
    %3769 = vmatpush1.msra.mxu0 %v3750
    %3770 = vmatprep.subr.mxu0 0.0
    %3771 = vmatpush1.msra.mxu0 %v3751
    %3772 = vmatprep.subr.mxu0 0.0
    %3773 = vmatpush1.msra.mxu0 %v3752
    %3774 = vmatprep.subr.mxu0 0.0
    %3775 = vmatpush1.msra.mxu0 %v3753
    %3776 = vmatprep.subr.mxu0 0.0
    %3777 = vmatpush1.msra.mxu0 %v3754
    %3778 = vmatprep.subr.mxu0 0.0
    %3779 = vmatpush1.msra.mxu0 0.0
    %3780 = vmatprep.subr.mxu0 0.0
    %3781 = vmatpush1.msra.mxu0 0.0
    %3782 = vmatprep.subr.mxu0 0.0
    %3783 = vmatpush1.msra.mxu0 0.0
    %3784 = vmatprep.subr.mxu0 0.0
    %3785 = vmatpush1.msra.mxu0 0.0
    %3786 = vmatprep.subr.mxu0 0.0
    %3787 = vmatpush1.msra.mxu0 0.0
    %3788 = vmatprep.subr.mxu0 0.0
    %3789 = vmatpush1.msra.mxu0 0.0
    %3790 = vmatprep.subr.mxu0 0.0
    %3791 = vmatpush1.msra.mxu0 0.0
    %3792 = vmatprep.subr.mxu0 0.0
    %3793 = vmatpush1.msra.mxu0 0.0
    %3794 = vmatprep.subr.mxu0 0.0
    %3795 = vmatpush1.msra.mxu0 0.0
    %3796 = vmatprep.subr.mxu0 0.0
    %3797 = vmatpush1.msra.mxu0 0.0
    %3798 = vmatprep.subr.mxu0 0.0
    %3799 = vmatpush1.msra.mxu0 0.0
    %3800 = vmatprep.subr.mxu0 0.0
    %3801 = vmatpush1.msra.mxu0 0.0
    %3802 = vmatprep.subr.mxu0 0.0
    %3803 = vmatpush1.msra.mxu0 0.0
    %3804 = vmatprep.subr.mxu0 0.0
    %3805 = vmatpush1.msra.mxu0 0.0
    %3806 = vmatprep.subr.mxu0 0.0
    %3807 = vmatpush1.msra.mxu0 0.0
    %3808 = vmatprep.subr.mxu0 0.0
    %3809 = vmatpush1.msra.mxu0 0.0
    %3810 = vmatprep.subr.mxu0 0.0
    %3811 = vmatpush1.msra.mxu0 0.0
    %3812 = vmatprep.subr.mxu0 0.0
    %3813 = vmatpush1.msra.mxu0 0.0
    %3814 = vmatprep.subr.mxu0 0.0
    %3815 = vmatpush1.msra.mxu0 0.0
    %3816 = vmatprep.subr.mxu0 0.0
    %3817 = vmatpush1.msra.mxu0 0.0
    %3818 = vmatprep.subr.mxu0 0.0
    %3819 = vmatpush1.msra.mxu0 0.0
    %3820 = vmatprep.subr.mxu0 0.0
    %3821 = vmatpush1.msra.mxu0 0.0
    %3822 = vmatprep.subr.mxu0 0.0
    %3823 = vmatpush1.msra.mxu0 0.0
    %3824 = vmatprep.subr.mxu0 0.0
    %3825 = vmatpush1.msra.mxu0 0.0
    %3826 = vmatprep.mubr.f32.mxu0 0.0
    %3827 = vmatmul.mubr.f32.gmra.mrb[0].mxu0 %v3757
    %v3828 = vpop.f32.mrb[0].mxu0
    %v3829 = vadd.f32 0.0, %v3828
    %v3830 = vpop.f32.mrb[0].mxu0
    %3831 = vmatprep.mubr.f32.mxu0 0.0
    %3832 = vmatmul.mubr.f32.gmra.mrb[0].mxu0 %v3760
    %v3833 = vpop.f32.mrb[0].mxu0
    %v3834 = vadd.f32 0.0, %v3833
    %v3835 = vpop.f32.mrb[0].mxu0
    %3836 = vdwg.mxu0
    %v3837 = vadd.f32 %v3599, %v3829
    %v3838 = vadd.f32 %v3600, %v3834
    %v3839 = vlaneseq
    %v3840 = vshrl.u32 %v3839, 7
    %v3841 = vsub.s32 6, %v3840
    %v3842 = vrot.slane %v93, %v3841
    %v3843 = vadd.f32 %v3837, %v3842
    %v3844 = vadd.f32 %v3838, %v3842
    %v3847 = vrot.slane %v3844, 7
    %vm3848 = vcmask 1041409
    %v3849 = vsel %vm3848, %v3847, %v3843
    %v3851 = vrot.slane %v3843, 1
    %v3852 = vsel %vm3848, %v3844, %v3851
    %3853 = vrot.lane.b32.xlu0 %v3852, 32
    %v3854 = vpop.permute.xlu0 %3853
    %v3856 = vrot.slane %v3843, 2
    %v3857 = vrot.slane %v3844, 1
    %v3858 = vsel %vm3848, %v3857, %v3856
    %3859 = vrot.lane.b32.xlu0 %v3858, 64
    %v3860 = vpop.permute.xlu0 %3859
    %v3862 = vrot.slane %v3843, 3
    %v3863 = vrot.slane %v3844, 2
    %v3864 = vsel %vm3848, %v3863, %v3862
    %3865 = vrot.lane.b32.xlu0 %v3864, 96
    %v3866 = vpop.permute.xlu0 %3865
    %v3868 = vrot.slane %v3843, 4
    %v3869 = vrot.slane %v3844, 3
    %v3870 = vsel %vm3848, %v3869, %v3868
    %v3872 = vrot.slane %v3843, 5
    %v3873 = vrot.slane %v3844, 4
    %v3874 = vsel %vm3848, %v3873, %v3872
    %3875 = vrot.lane.b32.xlu0 %v3874, 32
    %v3876 = vpop.permute.xlu0 %3875
    %v3878 = vrot.slane %v3843, 6
    %v3879 = vrot.slane %v3844, 5
    %v3880 = vsel %vm3848, %v3879, %v3878
    %3881 = vrot.lane.b32.xlu0 %v3880, 64
    %v3882 = vpop.permute.xlu0 %3881
    %v3884 = vrot.slane %v3843, 7
    %v3885 = vrot.slane %v3844, 6
    %v3886 = vsel %vm3848, %v3885, %v3884
    %3887 = vrot.lane.b32.xlu0 %v3886, 96
    %v3888 = vpop.permute.xlu0 %3887
    %v3890 = vsel %vm126, %v3849, %v3854
    %v3891 = vsel %vm3755, %v3890, %v3860
    %vm3892 = vcmask 785408
    %v3893 = vsel %vm3892, %v3891, %v3866
    %v3894 = vsel %vm126, %v3870, %v3876
    %v3895 = vsel %vm3755, %v3894, %v3882
    %v3896 = vsel %vm3892, %v3895, %v3888
    %v3899 = vcombine.low %v3893, %v3896
    %v3901 = vunpack.c.l.s4 1983009808
    %v3902 = vunpack.c.0.s8 %v3901
    %v3903 = vlaneseq
    %v3904 = vshrl.u32 %v3903, 7
    %v3905 = vsub.s32 %v3902, %v3904
    %v3906 = vrot.slane %v3899, %v3905
    %3908 = vst [vmem:[#allocation10] sm:$0xf] %v3906
    // Predicated region
    $region54: #{tpu_custom_call.1} parent=1 // pred_check
      _
    $region55: #{tpu_custom_call.1} parent=1 // pred_check_branch
      %3910 = sbr.rel (0) target = $region57
    $region56: #{tpu_custom_call.1} parent=1 // pred_region
      %s3912 = ssub.s32 64, 64
      %3913 = vsyncadd [#allocation4], %s3912
      %s3915 = sshll.u32 [#allocation10], 4
      %s3916 = int_to_ptr.vmem [resolvable:$true] %s3915
      %3918 = dma.vmem_to_hbm [thread:$0]  %s3916, 64, %s9, [#allocation4]
    $region57: #{tpu_custom_call.1} parent=1 // pred_fallthru
      _
    // Predicated region
    $region58: #{tpu_custom_call.1} parent=1 // pred_check
      _
    $region59: #{tpu_custom_call.1} parent=1 // pred_check_branch
      %3920 = sbr.rel (0) target = $region61
    $region60: #{tpu_custom_call.1} parent=1 // pred_region
      %3921 = dma.done [#allocation4], 64
    $region61: #{tpu_custom_call.1} parent=1 // pred_fallthru
      _
    %3922 = vsyncpa [#allocation3], 1
    %3923 = vsyncpa [#allocation6], 1
    %3924 = vsyncpa [#allocation9], 1
    %3925 = vsyncpa [#allocation4], 1

</llo_original>
